<compile_context>
chip_gen: v7x
topology: tpu7x:2x2x1
jax: 0.10.0
libtpu: 0.0.40
codegen_flags: <defaults>
</compile_context>

<pallas_src>
import numpy as np
import jax
import jax.numpy as jnp
from jax import lax
from jax.experimental import pallas as pl
from jax.experimental.pallas import tpu as pltpu


def _round_up(v, m):
    return ((v + m - 1) // m) * m


# ----------------------------------------------------------------------------
# Constant moving-average matrix (series_decomp with replicate padding)
# ----------------------------------------------------------------------------
def build_avg_matrix(L, kernel_size):
    """M such that (M @ x) == moving_avg(x) with replicate padding, stride 1."""
    pad = (kernel_size - 1) // 2
    M = np.zeros((L, L), dtype=np.float32)
    for i in range(L):
        for p in range(i, i + kernel_size):
            j = min(max(p - pad, 0), L - 1)
            M[i, j] += 1.0 / kernel_size
    return M


# ----------------------------------------------------------------------------
# Pallas kernel: whole DecoderLayer forward for a (Bt, L, D) batch tile
# ----------------------------------------------------------------------------
def decoder_layer_kernel(x_ref, cross_ref, avg_ref,
                         wqkv1_ref, wo1_ref,
                         wq2_ref, wkv2_ref, wo2_ref,
                         w1_ref, w2_ref,
                         wtp_ref, wtc_ref, wtn_ref,
                         x_out_ref, trend_out_ref):
    Bt, L, D = x_ref.shape
    S = cross_ref.shape[1]
    Dp = wo1_ref.shape[0]            # lane-padded projection width (128 multiple)
    d_ff = w1_ref.shape[1]
    c_pad = wtc_ref.shape[1]
    mxu_dt = wqkv1_ref.dtype         # bf16 fast path (all generations), else f32
    f32 = jnp.float32

    x = x_ref[...]                   # (Bt, L, D), float32 activations
    avg = avg_ref[...]               # (L, L) f32 — kept f32 for trend parity

    def rowwise(t2d, w):
        # Batch-folded position-wise matmul: (rows, Din) @ (Din, Dout), f32 acc.
        return jnp.dot(t2d.astype(mxu_dt), w, preferred_element_type=f32)

    def moving_avg(t):
        # series_decomp trend: unbatched (L, L) @ (L, D) per batch row.
        # (No broadcast (Bt, L, L) buffer; f32 operands for parity.)
        outs = [jnp.dot(avg, t[b], preferred_element_type=f32) for b in range(Bt)]
        return outs[0][None] if Bt == 1 else jnp.stack(outs, axis=0)

    def roll_seq(t, shift):
        # Circular shift along the sequence (sublane) axis, per batch row (XLU).
        if Bt == 1:
            return pltpu.roll(t[0], shift, axis=0)[None]
        return jnp.stack([pltpu.roll(t[b], shift, axis=0) for b in range(Bt)],
                         axis=0)

    def softmax(s):
        # f32 softmax (v5e-safe elementwise); the divide goes to the EUP.
        s = s - jnp.max(s, axis=-1, keepdims=True)
        p = jnp.exp(s)
        return p * pl.reciprocal(jnp.sum(p, axis=-1, keepdims=True), approx=True)

    def attention(q, k, v):
        # Contract the last dims directly (no k.T transpose); batch dim = 0.
        s = lax.dot_general(q.astype(mxu_dt), k.astype(mxu_dt),
                            dimension_numbers=(((2,), (2,)), ((0,), (0,))),
                            preferred_element_type=f32)
        p = softmax(s)
        return lax.dot_general(p.astype(mxu_dt), v.astype(mxu_dt),
                               dimension_numbers=(((2,), (1,)), ((0,), (0,))),
                               preferred_element_type=f32)

    # --- self-attention (fused QKV, 1/sqrt(D) pre-folded into Wq) + decomp1 ---
    qkv = rowwise(x.reshape(Bt * L, D), wqkv1_ref[...])          # (Bt*L, 3*Dp)
    q = qkv[:, :Dp].reshape(Bt, L, Dp)                           # 128-aligned slices
    k = qkv[:, Dp:2 * Dp].reshape(Bt, L, Dp)
    v = qkv[:, 2 * Dp:].reshape(Bt, L, Dp)
    ctx = attention(q, k, v)                                     # (Bt, L, Dp)
    x = x + rowwise(ctx.reshape(Bt * L, Dp), wo1_ref[...]).reshape(Bt, L, D)
    trend_acc = moving_avg(x)                                    # trend1
    x = x - trend_acc

    # --- cross-attention (fused KV) + decomp2 ---
    q = rowwise(x.reshape(Bt * L, D), wq2_ref[...]).reshape(Bt, L, Dp)
    kv = rowwise(cross_ref[...].reshape(Bt * S, D), wkv2_ref[...])  # (Bt*S, 2*Dp)
    k = kv[:, :Dp].reshape(Bt, S, Dp)
    v = kv[:, Dp:].reshape(Bt, S, Dp)
    ctx = attention(q, k, v)
    x = x + rowwise(ctx.reshape(Bt * L, Dp), wo2_ref[...]).reshape(Bt, L, D)
    trend2 = moving_avg(x)
    x = x - trend2
    trend_acc = trend_acc + trend2            # incremental trend accumulation

    # --- position-wise FFN, chunked over d_ff to bound the f32 ReLU buffer ---
    x2d = x.reshape(Bt * L, D)
    ffn_chunk = min(d_ff, 1024)
    y = None
    for c0 in range(0, d_ff, ffn_chunk):
        c1 = min(c0 + ffn_chunk, d_ff)
        h = jnp.maximum(rowwise(x2d, w1_ref[:, c0:c1]), 0.0)     # ReLU in f32
        part = jnp.dot(h.astype(mxu_dt), w2_ref[c0:c1, :], preferred_element_type=f32)
        y = part if y is None else y + part
    xy = x + y.reshape(Bt, L, D)
    trend3 = moving_avg(xy)
    x_out_ref[...] = (xy - trend3).astype(x_out_ref.dtype)
    trend_acc = trend_acc + trend3

    # --- residual trend: circular conv1d (k=3, pad=1) as 3 accumulated matmuls
    #     against split tap weights; sublane rolls instead of concat buffers ---
    t_prev = roll_seq(trend_acc, 1)           # trend[(l-1) % L]
    t_next = roll_seq(trend_acc, L - 1)       # trend[(l+1) % L]
    proj = (rowwise(t_prev.reshape(Bt * L, D), wtp_ref[...])
            + rowwise(trend_acc.reshape(Bt * L, D), wtc_ref[...])
            + rowwise(t_next.reshape(Bt * L, D), wtn_ref[...]))  # (Bt*L, c_pad)
    trend_out_ref[...] = proj.reshape(Bt, L, c_pad).astype(trend_out_ref.dtype)


# ----------------------------------------------------------------------------
# One-time constant transforms (fusion / prescale / padding / dtype cast)
# ----------------------------------------------------------------------------
def prepare_params(raw, seq_len, ma_kernel, mxu_dtype=jnp.float32):
    D = raw["wq1"].shape[0]
    c_out = raw["wp"].shape[0]
    Dp = _round_up(D, 128)                    # lane-aligned fused-QKV segments
    c_pad = _round_up(c_out, 128)             # lane-dense trend output
    scale = jnp.float32(1.0 / np.sqrt(D))     # fold score scale into Wq

    def pad_cols(w, n):                       # (D, k) -> (D, n), zero-padded
        return jnp.pad(w, ((0, 0), (0, n - w.shape[1])))

    def pad_rows(w, n):                       # (k, D) -> (n, D), zero-padded
        return jnp.pad(w, ((0, n - w.shape[0]), (0, 0)))

    wqkv1 = jnp.concatenate([pad_cols(raw["wq1"] * scale, Dp),
                             pad_cols(raw["wk1"], Dp),
                             pad_cols(raw["wv1"], Dp)], axis=1)     # (D, 3*Dp)
    wkv2 = jnp.concatenate([pad_cols(raw["wk2"], Dp),
                            pad_cols(raw["wv2"], Dp)], axis=1)      # (D, 2*Dp)
    wq2 = pad_cols(raw["wq2"] * scale, Dp)                          # (D, Dp)
    wo1 = pad_rows(raw["wo1"], Dp)                                  # (Dp, D)
    wo2 = pad_rows(raw["wo2"], Dp)

    wp = raw["wp"]                            # torch Conv1d layout (c_out, D, 3)
    wt_prev = jnp.pad(wp[:, :, 0].T, ((0, 0), (0, c_pad - c_out)))  # (D, c_pad)
    wt_mid = jnp.pad(wp[:, :, 1].T, ((0, 0), (0, c_pad - c_out)))
    wt_next = jnp.pad(wp[:, :, 2].T, ((0, 0), (0, c_pad - c_out)))

    avg = jnp.asarray(build_avg_matrix(seq_len, ma_kernel))         # stays f32

    cast = lambda a: a.astype(mxu_dtype)
    return {
        "avg": avg,
        "wqkv1": cast(wqkv1), "wo1": cast(wo1),
        "wq2": cast(wq2), "wkv2": cast(wkv2), "wo2": cast(wo2),
        "w1": cast(raw["w1"]), "w2": cast(raw["w2"]),
        "wt_prev": cast(wt_prev), "wt_mid": cast(wt_mid), "wt_next": cast(wt_next),
        "c_out": c_out,
    }


# ----------------------------------------------------------------------------
# Wrapper
# ----------------------------------------------------------------------------
def decoder_layer(x, cross, kp, *, block_b=None, out_dtype=jnp.float32,
                  slice_trend=True):
    B, L, D = x.shape
    S = cross.shape[1]
    Dp = kp["wo1"].shape[0]
    d_ff = kp["w1"].shape[1]
    c_pad = kp["wt_mid"].shape[1]
    c_out = kp["c_out"]
    assert L % 8 == 0 and S % 8 == 0, "seq lengths must be sublane (8) aligned"

    wnames = ("wqkv1", "wo1", "wq2", "wkv2", "wo2", "w1", "w2",
              "wt_prev", "wt_mid", "wt_next")
    weights = [kp["avg"]] + [kp[n] for n in wnames]
    weight_bytes = sum(int(a.size) * a.dtype.itemsize for a in weights)

    # --- VMEM budget (per generation) and block_b selection --------------------
    try:
        vmem_cap = int(pltpu.get_tpu_info().vmem_capacity_bytes)
    except Exception:
        vmem_cap = 64 * 2 ** 20               # conservative (v7x-sized) default
    budget = int(0.75 * vmem_cap)             # ~48 MiB on v7x, ~96 MiB on v5e/v6e

    ffn_chunk = min(d_ff, 1024)
    per_b_io = 4 * (2 * L * D + S * D + L * c_pad)       # x, x_out, cross, trend
    per_b_work = 4 * (L * 3 * Dp                          # fused qkv
                      + L * max(L, S)                     # attention scores
                      + 2 * L * Dp                        # ctx / kv pieces
                      + L * ffn_chunk                     # chunked FFN buffer
                      + 4 * L * D                         # x, trend_acc, rolls
                      + L * c_pad)                        # projection accumulator
    per_b = 2 * per_b_io + per_b_work         # IO is double-buffered by pipeline

    if block_b is None:
        bb_mem = max(1, (budget - 2 * weight_bytes) // max(per_b, 1))
        # >= 2 grid steps so v7x's two TensorCores / DMA-compute overlap get work
        bb_cap = max(1, B // 2) if B >= 2 else 1
        block_b = int(max(1, min(bb_mem, bb_cap, B)))
        while B % block_b:                    # avoid ragged last batch tile
            block_b -= 1
    block_b = max(1, min(block_b, B))
    grid = (pl.cdiv(B, block_b),)

    vmem_limit = int(min(budget,
                         max(32 * 2 ** 20,
                             2 * weight_bytes + block_b * per_b + (8 << 20))))

    # --- cost estimate for XLA scheduling --------------------------------------
    flops = 2 * B * (L * D * 3 * Dp + 2 * L * L * Dp + L * Dp * D      # self-attn
                     + L * D * Dp + S * D * 2 * Dp + 2 * L * S * Dp + L * Dp * D
                     + 2 * L * D * d_ff                                # FFN
                     + 3 * L * L * D                                   # 3 decomps
                     + 3 * L * D * c_pad)                              # projection
    cost = pl.CostEstimate(
        flops=int(flops),
        transcendentals=int(B * L * (L + S)),
        bytes_accessed=int(4 * (x.size + cross.size + B * L * D + B * L * c_pad)
                           + weight_bytes))

    def build_call(single_buffer_weights):
        def const_spec(shape):
            nd = len(shape)
            kw = {}
            if single_buffer_weights:
                # invariant operands: no double-buffering -> half weight VMEM
                kw["pipeline_mode"] = pl.Buffered(1)
            return pl.BlockSpec(shape, lambda i, _nd=nd: (0,) * _nd, **kw)

        in_specs = [
            pl.BlockSpec((block_b, L, D), lambda i: (i, 0, 0)),    # x
            pl.BlockSpec((block_b, S, D), lambda i: (i, 0, 0)),    # cross
            const_spec((L, L)),                                    # averaging matrix
            const_spec((D, 3 * Dp)), const_spec((Dp, D)),          # self-attn QKV, O
            const_spec((D, Dp)), const_spec((D, 2 * Dp)), const_spec((Dp, D)),
            const_spec((D, d_ff)), const_spec((d_ff, D)),          # FFN
            const_spec((D, c_pad)), const_spec((D, c_pad)), const_spec((D, c_pad)),
        ]
        out_specs = [
            pl.BlockSpec((block_b, L, D), lambda i: (i, 0, 0)),
            pl.BlockSpec((block_b, L, c_pad), lambda i: (i, 0, 0)),
        ]
        out_shape = [
            jax.ShapeDtypeStruct((B, L, D), out_dtype),
            jax.ShapeDtypeStruct((B, L, c_pad), out_dtype),
        ]
        return pl.pallas_call(
            decoder_layer_kernel,
            grid=grid,
            in_specs=in_specs,
            out_specs=out_specs,
            out_shape=out_shape,
            compiler_params=pltpu.CompilerParams(
                dimension_semantics=("parallel",),
                vmem_limit_bytes=vmem_limit),
            cost_estimate=cost,
        )(x, cross, *weights)

    try:
        x_out, trend_pad = build_call(True)
    except Exception:
        # Fallback: default double-buffered weights (older jax without Buffered(1)).
        x_out, trend_pad = build_call(False)

    if slice_trend:
        return x_out, trend_pad[..., :c_out]
    return x_out, trend_pad          # lane-padded; slice fused into the consumer


# ----------------------------------------------------------------------------
# Pure-JAX reference mirroring the PyTorch module (eval mode, no biases)
# ----------------------------------------------------------------------------
def reference(x, cross, raw, ma_kernel):
    D = x.shape[-1]

    def moving_avg(t):
        pad = (ma_kernel - 1) // 2
        front = jnp.repeat(t[:, :1, :], pad, axis=1)
        end = jnp.repeat(t[:, -1:, :], pad, axis=1)
        tp = jnp.concatenate([front, t, end], axis=1)
        c = jnp.cumsum(tp, axis=1)
        c = jnp.concatenate([jnp.zeros_like(c[:, :1]), c], axis=1)
        return (c[:, ma_kernel:] - c[:, :-ma_kernel]) / ma_kernel

    def decomp(t):
        m = moving_avg(t)
        return t - m, m

    def attn(q_in, kv_in, wq, wk, wv, wo):
        q, k, v = q_in @ wq, kv_in @ wk, kv_in @ wv
        s = jnp.einsum("bld,bsd->bls", q, k) / jnp.sqrt(jnp.float32(D))
        p = jax.nn.softmax(s, axis=-1)
        return jnp.einsum("bls,bsd->bld", p, v) @ wo

    x = x + attn(x, x, raw["wq1"], raw["wk1"], raw["wv1"], raw["wo1"])
    x, trend1 = decomp(x)
    x = x + attn(x, cross, raw["wq2"], raw["wk2"], raw["wv2"], raw["wo2"])
    x, trend2 = decomp(x)
    y = jnp.maximum(x @ raw["w1"], 0.0) @ raw["w2"]
    x, trend3 = decomp(x + y)

    trend = trend1 + trend2 + trend3
    L = x.shape[1]
    idx = jnp.arange(L)
    t_m1 = trend[:, (idx - 1) % L, :]
    t_p1 = trend[:, (idx + 1) % L, :]
    wp = raw["wp"]                                   # (c_out, D, 3)
    proj = t_m1 @ wp[:, :, 0].T + trend @ wp[:, :, 1].T + t_p1 @ wp[:, :, 2].T
    return x, proj


# ----------------------------------------------------------------------------
if __name__ == "__main__":
    B, L, S, D = 2, 8, 16, 32
    d_ff, c_out, ma_k = 4 * D, 8, 25

    key = jax.random.PRNGKey(0)
    ks = jax.random.split(key, 16)

    def w(k_, shape, fan_in):
        return (jax.random.normal(k_, shape) / np.sqrt(fan_in)).astype(jnp.float32)

    raw = {
        "wq1": w(ks[0], (D, D), D), "wk1": w(ks[1], (D, D), D),
        "wv1": w(ks[2], (D, D), D), "wo1": w(ks[3], (D, D), D),
        "wq2": w(ks[4], (D, D), D), "wk2": w(ks[5], (D, D), D),
        "wv2": w(ks[6], (D, D), D), "wo2": w(ks[7], (D, D), D),
        "w1": w(ks[8], (D, d_ff), D),       # conv1 (kernel_size=1, bias=False)
        "w2": w(ks[9], (d_ff, D), d_ff),    # conv2 (kernel_size=1, bias=False)
        "wp": w(ks[12], (c_out, D, 3), D * 3),  # projection Conv1d(D, c_out, 3)
    }

    x = jax.random.normal(ks[10], (B, L, D), dtype=jnp.float32)
    cross = jax.random.normal(ks[11], (B, S, D), dtype=jnp.float32)

    x_ref, trend_ref = reference(x, cross, raw, ma_k)

    # f32 MXU operands (exact path); tolerance covers the approx-EUP reciprocal.
    kp32 = prepare_params(raw, L, ma_k, mxu_dtype=jnp.float32)
    x_out, trend_out = decoder_layer(x, cross, kp32)
    jax.block_until_ready((x_out, trend_out))
    assert np.allclose(np.asarray(x_out), np.asarray(x_ref), rtol=1e-2, atol=1e-2)
    assert np.allclose(np.asarray(trend_out), np.asarray(trend_ref), rtol=1e-2, atol=1e-2)

    # bf16 MXU operands (fast path on all generations), f32 accumulation,
    # f32 softmax, f32 averaging matrix.
    kp16 = prepare_params(raw, L, ma_k, mxu_dtype=jnp.bfloat16)
    x_out16, trend_out16 = decoder_layer(x, cross, kp16)
    jax.block_until_ready((x_out16, trend_out16))
    assert np.allclose(np.asarray(x_out16), np.asarray(x_ref), rtol=5e-2, atol=5e-2)
    assert np.allclose(np.asarray(trend_out16), np.asarray(trend_ref), rtol=5e-2, atol=5e-2)

    print("KERNEL_OK")
</pallas_src>

<mosaic_0001>
module attributes {stable_mosaic.version = 11 : i64} {
  func.func @decoder_layer_kernel(%arg0: i32, %arg1: memref<1x8x32xf32, #tpu.memory_space<vmem>>, %arg2: memref<1x16x32xf32, #tpu.memory_space<vmem>>, %arg3: memref<8x8xf32, #tpu.memory_space<vmem>>, %arg4: memref<32x384xf32, #tpu.memory_space<vmem>>, %arg5: memref<128x32xf32, #tpu.memory_space<vmem>>, %arg6: memref<32x128xf32, #tpu.memory_space<vmem>>, %arg7: memref<32x256xf32, #tpu.memory_space<vmem>>, %arg8: memref<128x32xf32, #tpu.memory_space<vmem>>, %arg9: memref<32x128xf32, #tpu.memory_space<vmem>>, %arg10: memref<128x32xf32, #tpu.memory_space<vmem>>, %arg11: memref<32x128xf32, #tpu.memory_space<vmem>>, %arg12: memref<32x128xf32, #tpu.memory_space<vmem>>, %arg13: memref<32x128xf32, #tpu.memory_space<vmem>>, %arg14: memref<1x8x32xf32, #tpu.memory_space<vmem>>, %arg15: memref<1x8x128xf32, #tpu.memory_space<vmem>>) attributes {dimension_semantics = [#tpu.dimension_semantics<parallel>], iteration_bounds = array<i64: 2>, scalar_prefetch = 0 : i64, scratch_operands = 0 : i64, tpu.core_type = #tpu.core_type<tc>, window_params = [{transform_indices = @transform_0, window_bounds = array<i64: 1, 8, 32>}, {transform_indices = @transform_1, window_bounds = array<i64: 1, 16, 32>}, {pipeline_mode = #tpu.pipeline_mode<synchronous>, transform_indices = @transform_2, window_bounds = array<i64: 8, 8>}, {pipeline_mode = #tpu.pipeline_mode<synchronous>, transform_indices = @transform_3, window_bounds = array<i64: 32, 384>}, {pipeline_mode = #tpu.pipeline_mode<synchronous>, transform_indices = @transform_4, window_bounds = array<i64: 128, 32>}, {pipeline_mode = #tpu.pipeline_mode<synchronous>, transform_indices = @transform_5, window_bounds = array<i64: 32, 128>}, {pipeline_mode = #tpu.pipeline_mode<synchronous>, transform_indices = @transform_6, window_bounds = array<i64: 32, 256>}, {pipeline_mode = #tpu.pipeline_mode<synchronous>, transform_indices = @transform_7, window_bounds = array<i64: 128, 32>}, {pipeline_mode = #tpu.pipeline_mode<synchronous>, transform_indices = @transform_8, window_bounds = array<i64: 32, 128>}, {pipeline_mode = #tpu.pipeline_mode<synchronous>, transform_indices = @transform_9, window_bounds = array<i64: 128, 32>}, {pipeline_mode = #tpu.pipeline_mode<synchronous>, transform_indices = @transform_10, window_bounds = array<i64: 32, 128>}, {pipeline_mode = #tpu.pipeline_mode<synchronous>, transform_indices = @transform_11, window_bounds = array<i64: 32, 128>}, {pipeline_mode = #tpu.pipeline_mode<synchronous>, transform_indices = @transform_12, window_bounds = array<i64: 32, 128>}, {transform_indices = @transform_13, window_bounds = array<i64: 1, 8, 32>}, {transform_indices = @transform_14, window_bounds = array<i64: 1, 8, 128>}]} {
    %c0 = arith.constant 0 : index
    %c0_0 = arith.constant 0 : index
    %c0_1 = arith.constant 0 : index
    %0 = vector.load %arg1[%c0, %c0_0, %c0_1] : memref<1x8x32xf32, #tpu.memory_space<vmem>>, vector<1x8x32xf32>
    %c0_2 = arith.constant 0 : index
    %c0_3 = arith.constant 0 : index
    %1 = vector.load %arg3[%c0_2, %c0_3] : memref<8x8xf32, #tpu.memory_space<vmem>>, vector<8x8xf32>
    %2 = vector.shape_cast %0 : vector<1x8x32xf32> to vector<8x32xf32>
    %c0_4 = arith.constant 0 : index
    %c0_5 = arith.constant 0 : index
    %3 = vector.load %arg4[%c0_4, %c0_5] : memref<32x384xf32, #tpu.memory_space<vmem>>, vector<32x384xf32>
    %cst = arith.constant dense<0.000000e+00> : vector<8x384xf32>
    %4 = tpu.matmul %2, %3, %cst {dimension_numbers = #tpu.dot_dimension_numbers<[1], [0], [0], [1], [0, 0, 1, 1], [], []>} : vector<8x32xf32>, vector<32x384xf32>, vector<8x384xf32> -> vector<8x384xf32>
    %5 = vector.extract_strided_slice %4 {offsets = [0, 0], sizes = [8, 128], strides = [1, 1]} : vector<8x384xf32> to vector<8x128xf32>
    %6 = vector.shape_cast %5 : vector<8x128xf32> to vector<1x8x128xf32>
    %7 = vector.extract_strided_slice %4 {offsets = [0, 128], sizes = [8, 128], strides = [1, 1]} : vector<8x384xf32> to vector<8x128xf32>
    %8 = vector.shape_cast %7 : vector<8x128xf32> to vector<1x8x128xf32>
    %9 = vector.extract_strided_slice %4 {offsets = [0, 256], sizes = [8, 128], strides = [1, 1]} : vector<8x384xf32> to vector<8x128xf32>
    %10 = vector.shape_cast %9 : vector<8x128xf32> to vector<1x8x128xf32>
    %cst_6 = arith.constant dense<0.000000e+00> : vector<1x8x8xf32>
    %11 = tpu.matmul %6, %8, %cst_6 {dimension_numbers = #tpu.dot_dimension_numbers<[2], [2], [1], [1], [0, 0, 0, 1, 1, 1], [0], [0]>} : vector<1x8x128xf32>, vector<1x8x128xf32>, vector<1x8x8xf32> -> vector<1x8x8xf32>
    %cst_7 = arith.constant dense<0xFF800000> : vector<1x8xf32>
    %12 = vector.multi_reduction <maximumf>, %11, %cst_7 [2] : vector<1x8x8xf32> to vector<1x8xf32>
    %13 = vector.shape_cast %12 : vector<1x8xf32> to vector<1x8x1xf32>
    %14 = vector.broadcast %13 : vector<1x8x1xf32> to vector<1x8x8xf32>
    %15 = arith.subf %11, %14 : vector<1x8x8xf32>
    %16 = math.exp %15 : vector<1x8x8xf32>
    %cst_8 = arith.constant dense<0.000000e+00> : vector<1x8xf32>
    %17 = vector.multi_reduction <add>, %16, %cst_8 [2] : vector<1x8x8xf32> to vector<1x8xf32>
    %18 = vector.shape_cast %17 : vector<1x8xf32> to vector<1x8x1xf32>
    %19 = tpu.reciprocal %18 {approx = true} : vector<1x8x1xf32> -> vector<1x8x1xf32>
    %20 = vector.broadcast %19 : vector<1x8x1xf32> to vector<1x8x8xf32>
    %21 = arith.mulf %16, %20 : vector<1x8x8xf32>
    %cst_9 = arith.constant dense<0.000000e+00> : vector<1x8x128xf32>
    %22 = tpu.matmul %21, %10, %cst_9 {dimension_numbers = #tpu.dot_dimension_numbers<[2], [1], [1], [2], [0, 0, 0, 1, 1, 2], [0], [0]>} : vector<1x8x8xf32>, vector<1x8x128xf32>, vector<1x8x128xf32> -> vector<1x8x128xf32>
    %23 = vector.shape_cast %22 : vector<1x8x128xf32> to vector<8x128xf32>
    %c0_10 = arith.constant 0 : index
    %c0_11 = arith.constant 0 : index
    %24 = vector.load %arg5[%c0_10, %c0_11] : memref<128x32xf32, #tpu.memory_space<vmem>>, vector<128x32xf32>
    %cst_12 = arith.constant dense<0.000000e+00> : vector<8x32xf32>
    %25 = tpu.matmul %23, %24, %cst_12 {dimension_numbers = #tpu.dot_dimension_numbers<[1], [0], [0], [1], [0, 0, 1, 1], [], []>} : vector<8x128xf32>, vector<128x32xf32>, vector<8x32xf32> -> vector<8x32xf32>
    %26 = vector.shape_cast %25 : vector<8x32xf32> to vector<1x8x32xf32>
    %27 = arith.addf %0, %26 : vector<1x8x32xf32>
    %28 = vector.shape_cast %27 : vector<1x8x32xf32> to vector<8x32xf32>
    %cst_13 = arith.constant dense<0.000000e+00> : vector<8x32xf32>
    %29 = tpu.matmul %1, %28, %cst_13 {dimension_numbers = #tpu.dot_dimension_numbers<[1], [0], [0], [1], [0, 0, 1, 1], [], []>} : vector<8x8xf32>, vector<8x32xf32>, vector<8x32xf32> -> vector<8x32xf32>
    %30 = vector.shape_cast %29 : vector<8x32xf32> to vector<1x8x32xf32>
    %31 = arith.subf %27, %30 : vector<1x8x32xf32>
    %32 = vector.shape_cast %31 : vector<1x8x32xf32> to vector<8x32xf32>
    %c0_14 = arith.constant 0 : index
    %c0_15 = arith.constant 0 : index
    %33 = vector.load %arg6[%c0_14, %c0_15] : memref<32x128xf32, #tpu.memory_space<vmem>>, vector<32x128xf32>
    %cst_16 = arith.constant dense<0.000000e+00> : vector<8x128xf32>
    %34 = tpu.matmul %32, %33, %cst_16 {dimension_numbers = #tpu.dot_dimension_numbers<[1], [0], [0], [1], [0, 0, 1, 1], [], []>} : vector<8x32xf32>, vector<32x128xf32>, vector<8x128xf32> -> vector<8x128xf32>
    %35 = vector.shape_cast %34 : vector<8x128xf32> to vector<1x8x128xf32>
    %c0_17 = arith.constant 0 : index
    %c0_18 = arith.constant 0 : index
    %c0_19 = arith.constant 0 : index
    %36 = vector.load %arg2[%c0_17, %c0_18, %c0_19] : memref<1x16x32xf32, #tpu.memory_space<vmem>>, vector<1x16x32xf32>
    %37 = vector.shape_cast %36 : vector<1x16x32xf32> to vector<16x32xf32>
    %c0_20 = arith.constant 0 : index
    %c0_21 = arith.constant 0 : index
    %38 = vector.load %arg7[%c0_20, %c0_21] : memref<32x256xf32, #tpu.memory_space<vmem>>, vector<32x256xf32>
    %cst_22 = arith.constant dense<0.000000e+00> : vector<16x256xf32>
    %39 = tpu.matmul %37, %38, %cst_22 {dimension_numbers = #tpu.dot_dimension_numbers<[1], [0], [0], [1], [0, 0, 1, 1], [], []>} : vector<16x32xf32>, vector<32x256xf32>, vector<16x256xf32> -> vector<16x256xf32>
    %40 = vector.extract_strided_slice %39 {offsets = [0, 0], sizes = [16, 128], strides = [1, 1]} : vector<16x256xf32> to vector<16x128xf32>
    %41 = vector.shape_cast %40 : vector<16x128xf32> to vector<1x16x128xf32>
    %42 = vector.extract_strided_slice %39 {offsets = [0, 128], sizes = [16, 128], strides = [1, 1]} : vector<16x256xf32> to vector<16x128xf32>
    %43 = vector.shape_cast %42 : vector<16x128xf32> to vector<1x16x128xf32>
    %cst_23 = arith.constant dense<0.000000e+00> : vector<1x8x16xf32>
    %44 = tpu.matmul %35, %41, %cst_23 {dimension_numbers = #tpu.dot_dimension_numbers<[2], [2], [1], [1], [0, 0, 0, 1, 1, 1], [0], [0]>} : vector<1x8x128xf32>, vector<1x16x128xf32>, vector<1x8x16xf32> -> vector<1x8x16xf32>
    %cst_24 = arith.constant dense<0xFF800000> : vector<1x8xf32>
    %45 = vector.multi_reduction <maximumf>, %44, %cst_24 [2] : vector<1x8x16xf32> to vector<1x8xf32>
    %46 = vector.shape_cast %45 : vector<1x8xf32> to vector<1x8x1xf32>
    %47 = vector.broadcast %46 : vector<1x8x1xf32> to vector<1x8x16xf32>
    %48 = arith.subf %44, %47 : vector<1x8x16xf32>
    %49 = math.exp %48 : vector<1x8x16xf32>
    %cst_25 = arith.constant dense<0.000000e+00> : vector<1x8xf32>
    %50 = vector.multi_reduction <add>, %49, %cst_25 [2] : vector<1x8x16xf32> to vector<1x8xf32>
    %51 = vector.shape_cast %50 : vector<1x8xf32> to vector<1x8x1xf32>
    %52 = tpu.reciprocal %51 {approx = true} : vector<1x8x1xf32> -> vector<1x8x1xf32>
    %53 = vector.broadcast %52 : vector<1x8x1xf32> to vector<1x8x16xf32>
    %54 = arith.mulf %49, %53 : vector<1x8x16xf32>
    %cst_26 = arith.constant dense<0.000000e+00> : vector<1x8x128xf32>
    %55 = tpu.matmul %54, %43, %cst_26 {dimension_numbers = #tpu.dot_dimension_numbers<[2], [1], [1], [2], [0, 0, 0, 1, 1, 2], [0], [0]>} : vector<1x8x16xf32>, vector<1x16x128xf32>, vector<1x8x128xf32> -> vector<1x8x128xf32>
    %56 = vector.shape_cast %55 : vector<1x8x128xf32> to vector<8x128xf32>
    %c0_27 = arith.constant 0 : index
    %c0_28 = arith.constant 0 : index
    %57 = vector.load %arg8[%c0_27, %c0_28] : memref<128x32xf32, #tpu.memory_space<vmem>>, vector<128x32xf32>
    %cst_29 = arith.constant dense<0.000000e+00> : vector<8x32xf32>
    %58 = tpu.matmul %56, %57, %cst_29 {dimension_numbers = #tpu.dot_dimension_numbers<[1], [0], [0], [1], [0, 0, 1, 1], [], []>} : vector<8x128xf32>, vector<128x32xf32>, vector<8x32xf32> -> vector<8x32xf32>
    %59 = vector.shape_cast %58 : vector<8x32xf32> to vector<1x8x32xf32>
    %60 = arith.addf %31, %59 : vector<1x8x32xf32>
    %61 = vector.shape_cast %60 : vector<1x8x32xf32> to vector<8x32xf32>
    %cst_30 = arith.constant dense<0.000000e+00> : vector<8x32xf32>
    %62 = tpu.matmul %1, %61, %cst_30 {dimension_numbers = #tpu.dot_dimension_numbers<[1], [0], [0], [1], [0, 0, 1, 1], [], []>} : vector<8x8xf32>, vector<8x32xf32>, vector<8x32xf32> -> vector<8x32xf32>
    %63 = vector.shape_cast %62 : vector<8x32xf32> to vector<1x8x32xf32>
    %64 = arith.subf %60, %63 : vector<1x8x32xf32>
    %65 = arith.addf %30, %63 : vector<1x8x32xf32>
    %66 = vector.shape_cast %64 : vector<1x8x32xf32> to vector<8x32xf32>
    %c0_31 = arith.constant 0 : index
    %c0_32 = arith.constant 0 : index
    %67 = vector.load %arg9[%c0_31, %c0_32] : memref<32x128xf32, #tpu.memory_space<vmem>>, vector<32x128xf32>
    %cst_33 = arith.constant dense<0.000000e+00> : vector<8x128xf32>
    %68 = tpu.matmul %66, %67, %cst_33 {dimension_numbers = #tpu.dot_dimension_numbers<[1], [0], [0], [1], [0, 0, 1, 1], [], []>} : vector<8x32xf32>, vector<32x128xf32>, vector<8x128xf32> -> vector<8x128xf32>
    %cst_34 = arith.constant 0.000000e+00 : f32
    %69 = vector.broadcast %cst_34 : f32 to vector<8x128xf32>
    %70 = arith.maximumf %68, %69 : vector<8x128xf32>
    %c0_35 = arith.constant 0 : index
    %c0_36 = arith.constant 0 : index
    %71 = vector.load %arg10[%c0_35, %c0_36] : memref<128x32xf32, #tpu.memory_space<vmem>>, vector<128x32xf32>
    %cst_37 = arith.constant dense<0.000000e+00> : vector<8x32xf32>
    %72 = tpu.matmul %70, %71, %cst_37 {dimension_numbers = #tpu.dot_dimension_numbers<[1], [0], [0], [1], [0, 0, 1, 1], [], []>} : vector<8x128xf32>, vector<128x32xf32>, vector<8x32xf32> -> vector<8x32xf32>
    %73 = vector.shape_cast %72 : vector<8x32xf32> to vector<1x8x32xf32>
    %74 = arith.addf %64, %73 : vector<1x8x32xf32>
    %75 = vector.shape_cast %74 : vector<1x8x32xf32> to vector<8x32xf32>
    %cst_38 = arith.constant dense<0.000000e+00> : vector<8x32xf32>
    %76 = tpu.matmul %1, %75, %cst_38 {dimension_numbers = #tpu.dot_dimension_numbers<[1], [0], [0], [1], [0, 0, 1, 1], [], []>} : vector<8x8xf32>, vector<8x32xf32>, vector<8x32xf32> -> vector<8x32xf32>
    %77 = vector.shape_cast %76 : vector<8x32xf32> to vector<1x8x32xf32>
    %78 = arith.subf %74, %77 : vector<1x8x32xf32>
    %c0_39 = arith.constant 0 : index
    %c0_40 = arith.constant 0 : index
    %c0_41 = arith.constant 0 : index
    %79 = vector.load %arg14[%c0_39, %c0_40, %c0_41] : memref<1x8x32xf32, #tpu.memory_space<vmem>>, vector<1x8x32xf32>
    tpu.vector_store %arg14[%c0_39, %c0_40, %c0_41], %78 {strides = array<i32>} : memref<1x8x32xf32, #tpu.memory_space<vmem>>, vector<1x8x32xf32>,
    %80 = arith.addf %65, %77 : vector<1x8x32xf32>
    %81 = vector.shape_cast %80 : vector<1x8x32xf32> to vector<8x32xf32>
    %c1_i32 = arith.constant 1 : i32
    %82 = tpu.dynamic_rotate %81 by %c1_i32 dim 0 : vector<8x32xf32>, i32 -> vector<8x32xf32>
    %83 = vector.shape_cast %82 : vector<8x32xf32> to vector<1x8x32xf32>
    %84 = vector.shape_cast %80 : vector<1x8x32xf32> to vector<8x32xf32>
    %c7_i32 = arith.constant 7 : i32
    %85 = tpu.dynamic_rotate %84 by %c7_i32 dim 0 : vector<8x32xf32>, i32 -> vector<8x32xf32>
    %86 = vector.shape_cast %85 : vector<8x32xf32> to vector<1x8x32xf32>
    %87 = vector.shape_cast %83 : vector<1x8x32xf32> to vector<8x32xf32>
    %c0_42 = arith.constant 0 : index
    %c0_43 = arith.constant 0 : index
    %88 = vector.load %arg11[%c0_42, %c0_43] : memref<32x128xf32, #tpu.memory_space<vmem>>, vector<32x128xf32>
    %cst_44 = arith.constant dense<0.000000e+00> : vector<8x128xf32>
    %89 = tpu.matmul %87, %88, %cst_44 {dimension_numbers = #tpu.dot_dimension_numbers<[1], [0], [0], [1], [0, 0, 1, 1], [], []>} : vector<8x32xf32>, vector<32x128xf32>, vector<8x128xf32> -> vector<8x128xf32>
    %90 = vector.shape_cast %80 : vector<1x8x32xf32> to vector<8x32xf32>
    %c0_45 = arith.constant 0 : index
    %c0_46 = arith.constant 0 : index
    %91 = vector.load %arg12[%c0_45, %c0_46] : memref<32x128xf32, #tpu.memory_space<vmem>>, vector<32x128xf32>
    %cst_47 = arith.constant dense<0.000000e+00> : vector<8x128xf32>
    %92 = tpu.matmul %90, %91, %cst_47 {dimension_numbers = #tpu.dot_dimension_numbers<[1], [0], [0], [1], [0, 0, 1, 1], [], []>} : vector<8x32xf32>, vector<32x128xf32>, vector<8x128xf32> -> vector<8x128xf32>
    %93 = arith.addf %89, %92 : vector<8x128xf32>
    %94 = vector.shape_cast %86 : vector<1x8x32xf32> to vector<8x32xf32>
    %c0_48 = arith.constant 0 : index
    %c0_49 = arith.constant 0 : index
    %95 = vector.load %arg13[%c0_48, %c0_49] : memref<32x128xf32, #tpu.memory_space<vmem>>, vector<32x128xf32>
    %cst_50 = arith.constant dense<0.000000e+00> : vector<8x128xf32>
    %96 = tpu.matmul %94, %95, %cst_50 {dimension_numbers = #tpu.dot_dimension_numbers<[1], [0], [0], [1], [0, 0, 1, 1], [], []>} : vector<8x32xf32>, vector<32x128xf32>, vector<8x128xf32> -> vector<8x128xf32>
    %97 = arith.addf %93, %96 : vector<8x128xf32>
    %98 = vector.shape_cast %97 : vector<8x128xf32> to vector<1x8x128xf32>
    %c0_51 = arith.constant 0 : index
    %c0_52 = arith.constant 0 : index
    %c0_53 = arith.constant 0 : index
    %99 = vector.load %arg15[%c0_51, %c0_52, %c0_53] : memref<1x8x128xf32, #tpu.memory_space<vmem>>, vector<1x8x128xf32>
    tpu.vector_store %arg15[%c0_51, %c0_52, %c0_53], %98 {strides = array<i32>} : memref<1x8x128xf32, #tpu.memory_space<vmem>>, vector<1x8x128xf32>,
    return
  }
  func.func @transform_0(%arg0: i32) -> (i32, i32, i32) {
    %c0_i32 = arith.constant 0 : i32
    %c0_i32_0 = arith.constant 0 : i32
    %c0_i32_1 = arith.constant 0 : i32
    return %arg0, %c0_i32, %c0_i32_0 : i32, i32, i32
  }
  func.func @transform_1(%arg0: i32) -> (i32, i32, i32) {
    %c0_i32 = arith.constant 0 : i32
    %c0_i32_0 = arith.constant 0 : i32
    %c0_i32_1 = arith.constant 0 : i32
    return %arg0, %c0_i32, %c0_i32_0 : i32, i32, i32
  }
  func.func @transform_2(%arg0: i32) -> (i32, i32) {
    %c0_i32 = arith.constant 0 : i32
    %c0_i32_0 = arith.constant 0 : i32
    %c0_i32_1 = arith.constant 0 : i32
    return %c0_i32, %c0_i32_0 : i32, i32
  }
  func.func @transform_3(%arg0: i32) -> (i32, i32) {
    %c0_i32 = arith.constant 0 : i32
    %c0_i32_0 = arith.constant 0 : i32
    %c0_i32_1 = arith.constant 0 : i32
    return %c0_i32, %c0_i32_0 : i32, i32
  }
  func.func @transform_4(%arg0: i32) -> (i32, i32) {
    %c0_i32 = arith.constant 0 : i32
    %c0_i32_0 = arith.constant 0 : i32
    %c0_i32_1 = arith.constant 0 : i32
    return %c0_i32, %c0_i32_0 : i32, i32
  }
  func.func @transform_5(%arg0: i32) -> (i32, i32) {
    %c0_i32 = arith.constant 0 : i32
    %c0_i32_0 = arith.constant 0 : i32
    %c0_i32_1 = arith.constant 0 : i32
    return %c0_i32, %c0_i32_0 : i32, i32
  }
  func.func @transform_6(%arg0: i32) -> (i32, i32) {
    %c0_i32 = arith.constant 0 : i32
    %c0_i32_0 = arith.constant 0 : i32
    %c0_i32_1 = arith.constant 0 : i32
    return %c0_i32, %c0_i32_0 : i32, i32
  }
  func.func @transform_7(%arg0: i32) -> (i32, i32) {
    %c0_i32 = arith.constant 0 : i32
    %c0_i32_0 = arith.constant 0 : i32
    %c0_i32_1 = arith.constant 0 : i32
    return %c0_i32, %c0_i32_0 : i32, i32
  }
  func.func @transform_8(%arg0: i32) -> (i32, i32) {
    %c0_i32 = arith.constant 0 : i32
    %c0_i32_0 = arith.constant 0 : i32
    %c0_i32_1 = arith.constant 0 : i32
    return %c0_i32, %c0_i32_0 : i32, i32
  }
  func.func @transform_9(%arg0: i32) -> (i32, i32) {
    %c0_i32 = arith.constant 0 : i32
    %c0_i32_0 = arith.constant 0 : i32
    %c0_i32_1 = arith.constant 0 : i32
    return %c0_i32, %c0_i32_0 : i32, i32
  }
  func.func @transform_10(%arg0: i32) -> (i32, i32) {
    %c0_i32 = arith.constant 0 : i32
    %c0_i32_0 = arith.constant 0 : i32
    %c0_i32_1 = arith.constant 0 : i32
    return %c0_i32, %c0_i32_0 : i32, i32
  }
  func.func @transform_11(%arg0: i32) -> (i32, i32) {
    %c0_i32 = arith.constant 0 : i32
    %c0_i32_0 = arith.constant 0 : i32
    %c0_i32_1 = arith.constant 0 : i32
    return %c0_i32, %c0_i32_0 : i32, i32
  }
  func.func @transform_12(%arg0: i32) -> (i32, i32) {
    %c0_i32 = arith.constant 0 : i32
    %c0_i32_0 = arith.constant 0 : i32
    %c0_i32_1 = arith.constant 0 : i32
    return %c0_i32, %c0_i32_0 : i32, i32
  }
  func.func @transform_13(%arg0: i32) -> (i32, i32, i32) {
    %c0_i32 = arith.constant 0 : i32
    %c0_i32_0 = arith.constant 0 : i32
    %c0_i32_1 = arith.constant 0 : i32
    return %arg0, %c0_i32, %c0_i32_0 : i32, i32, i32
  }
  func.func @transform_14(%arg0: i32) -> (i32, i32, i32) {
    %c0_i32 = arith.constant 0 : i32
    %c0_i32_0 = arith.constant 0 : i32
    %c0_i32_1 = arith.constant 0 : i32
    return %arg0, %c0_i32, %c0_i32_0 : i32, i32, i32
  }
}

module attributes {stable_mosaic.version = 11 : i64} {
  func.func @decoder_layer_kernel(%arg0: i32, %arg1: memref<1x8x32xf32, #tpu.memory_space<vmem>>, %arg2: memref<1x16x32xf32, #tpu.memory_space<vmem>>, %arg3: memref<8x8xf32, #tpu.memory_space<vmem>>, %arg4: memref<32x384xf32, #tpu.memory_space<vmem>>, %arg5: memref<128x32xf32, #tpu.memory_space<vmem>>, %arg6: memref<32x128xf32, #tpu.memory_space<vmem>>, %arg7: memref<32x256xf32, #tpu.memory_space<vmem>>, %arg8: memref<128x32xf32, #tpu.memory_space<vmem>>, %arg9: memref<32x128xf32, #tpu.memory_space<vmem>>, %arg10: memref<128x32xf32, #tpu.memory_space<vmem>>, %arg11: memref<32x128xf32, #tpu.memory_space<vmem>>, %arg12: memref<32x128xf32, #tpu.memory_space<vmem>>, %arg13: memref<32x128xf32, #tpu.memory_space<vmem>>, %arg14: memref<1x8x32xf32, #tpu.memory_space<vmem>>, %arg15: memref<1x8x128xf32, #tpu.memory_space<vmem>>) attributes {dimension_semantics = [#tpu.dimension_semantics<parallel>], iteration_bounds = array<i64: 2>, scalar_prefetch = 0 : i64, scratch_operands = 0 : i64, tpu.core_type = #tpu.core_type<tc>, window_params = [{transform_indices = @transform_0, window_bounds = array<i64: 1, 8, 32>}, {transform_indices = @transform_1, window_bounds = array<i64: 1, 16, 32>}, {pipeline_mode = #tpu.pipeline_mode<synchronous>, transform_indices = @transform_2, window_bounds = array<i64: 8, 8>}, {pipeline_mode = #tpu.pipeline_mode<synchronous>, transform_indices = @transform_3, window_bounds = array<i64: 32, 384>}, {pipeline_mode = #tpu.pipeline_mode<synchronous>, transform_indices = @transform_4, window_bounds = array<i64: 128, 32>}, {pipeline_mode = #tpu.pipeline_mode<synchronous>, transform_indices = @transform_5, window_bounds = array<i64: 32, 128>}, {pipeline_mode = #tpu.pipeline_mode<synchronous>, transform_indices = @transform_6, window_bounds = array<i64: 32, 256>}, {pipeline_mode = #tpu.pipeline_mode<synchronous>, transform_indices = @transform_7, window_bounds = array<i64: 128, 32>}, {pipeline_mode = #tpu.pipeline_mode<synchronous>, transform_indices = @transform_8, window_bounds = array<i64: 32, 128>}, {pipeline_mode = #tpu.pipeline_mode<synchronous>, transform_indices = @transform_9, window_bounds = array<i64: 128, 32>}, {pipeline_mode = #tpu.pipeline_mode<synchronous>, transform_indices = @transform_10, window_bounds = array<i64: 32, 128>}, {pipeline_mode = #tpu.pipeline_mode<synchronous>, transform_indices = @transform_11, window_bounds = array<i64: 32, 128>}, {pipeline_mode = #tpu.pipeline_mode<synchronous>, transform_indices = @transform_12, window_bounds = array<i64: 32, 128>}, {transform_indices = @transform_13, window_bounds = array<i64: 1, 8, 32>}, {transform_indices = @transform_14, window_bounds = array<i64: 1, 8, 128>}]} {
    %c0 = arith.constant 0 : index
    %c0_0 = arith.constant 0 : index
    %c0_1 = arith.constant 0 : index
    %0 = vector.load %arg1[%c0, %c0_0, %c0_1] : memref<1x8x32xf32, #tpu.memory_space<vmem>>, vector<1x8x32xf32>
    %c0_2 = arith.constant 0 : index
    %c0_3 = arith.constant 0 : index
    %1 = vector.load %arg3[%c0_2, %c0_3] : memref<8x8xf32, #tpu.memory_space<vmem>>, vector<8x8xf32>
    %2 = vector.shape_cast %0 : vector<1x8x32xf32> to vector<8x32xf32>
    %c0_4 = arith.constant 0 : index
    %c0_5 = arith.constant 0 : index
    %3 = vector.load %arg4[%c0_4, %c0_5] : memref<32x384xf32, #tpu.memory_space<vmem>>, vector<32x384xf32>
    %cst = arith.constant dense<0.000000e+00> : vector<8x384xf32>
    %4 = tpu.matmul %2, %3, %cst {dimension_numbers = #tpu.dot_dimension_numbers<[1], [0], [0], [1], [0, 0, 1, 1], [], []>} : vector<8x32xf32>, vector<32x384xf32>, vector<8x384xf32> -> vector<8x384xf32>
    %5 = vector.extract_strided_slice %4 {offsets = [0, 0], sizes = [8, 128], strides = [1, 1]} : vector<8x384xf32> to vector<8x128xf32>
    %6 = vector.shape_cast %5 : vector<8x128xf32> to vector<1x8x128xf32>
    %7 = vector.extract_strided_slice %4 {offsets = [0, 128], sizes = [8, 128], strides = [1, 1]} : vector<8x384xf32> to vector<8x128xf32>
    %8 = vector.shape_cast %7 : vector<8x128xf32> to vector<1x8x128xf32>
    %9 = vector.extract_strided_slice %4 {offsets = [0, 256], sizes = [8, 128], strides = [1, 1]} : vector<8x384xf32> to vector<8x128xf32>
    %10 = vector.shape_cast %9 : vector<8x128xf32> to vector<1x8x128xf32>
    %cst_6 = arith.constant dense<0.000000e+00> : vector<1x8x8xf32>
    %11 = tpu.matmul %6, %8, %cst_6 {dimension_numbers = #tpu.dot_dimension_numbers<[2], [2], [1], [1], [0, 0, 0, 1, 1, 1], [0], [0]>} : vector<1x8x128xf32>, vector<1x8x128xf32>, vector<1x8x8xf32> -> vector<1x8x8xf32>
    %cst_7 = arith.constant dense<0xFF800000> : vector<1x8xf32>
    %12 = vector.multi_reduction <maximumf>, %11, %cst_7 [2] : vector<1x8x8xf32> to vector<1x8xf32>
    %13 = vector.shape_cast %12 : vector<1x8xf32> to vector<1x8x1xf32>
    %14 = vector.broadcast %13 : vector<1x8x1xf32> to vector<1x8x8xf32>
    %15 = arith.subf %11, %14 : vector<1x8x8xf32>
    %16 = math.exp %15 : vector<1x8x8xf32>
    %cst_8 = arith.constant dense<0.000000e+00> : vector<1x8xf32>
    %17 = vector.multi_reduction <add>, %16, %cst_8 [2] : vector<1x8x8xf32> to vector<1x8xf32>
    %18 = vector.shape_cast %17 : vector<1x8xf32> to vector<1x8x1xf32>
    %19 = tpu.reciprocal %18 {approx = true} : vector<1x8x1xf32> -> vector<1x8x1xf32>
    %20 = vector.broadcast %19 : vector<1x8x1xf32> to vector<1x8x8xf32>
    %21 = arith.mulf %16, %20 : vector<1x8x8xf32>
    %cst_9 = arith.constant dense<0.000000e+00> : vector<1x8x128xf32>
    %22 = tpu.matmul %21, %10, %cst_9 {dimension_numbers = #tpu.dot_dimension_numbers<[2], [1], [1], [2], [0, 0, 0, 1, 1, 2], [0], [0]>} : vector<1x8x8xf32>, vector<1x8x128xf32>, vector<1x8x128xf32> -> vector<1x8x128xf32>
    %23 = vector.shape_cast %22 : vector<1x8x128xf32> to vector<8x128xf32>
    %c0_10 = arith.constant 0 : index
    %c0_11 = arith.constant 0 : index
    %24 = vector.load %arg5[%c0_10, %c0_11] : memref<128x32xf32, #tpu.memory_space<vmem>>, vector<128x32xf32>
    %cst_12 = arith.constant dense<0.000000e+00> : vector<8x32xf32>
    %25 = tpu.matmul %23, %24, %cst_12 {dimension_numbers = #tpu.dot_dimension_numbers<[1], [0], [0], [1], [0, 0, 1, 1], [], []>} : vector<8x128xf32>, vector<128x32xf32>, vector<8x32xf32> -> vector<8x32xf32>
    %26 = vector.shape_cast %25 : vector<8x32xf32> to vector<1x8x32xf32>
    %27 = arith.addf %0, %26 : vector<1x8x32xf32>
    %28 = vector.shape_cast %27 : vector<1x8x32xf32> to vector<8x32xf32>
    %cst_13 = arith.constant dense<0.000000e+00> : vector<8x32xf32>
    %29 = tpu.matmul %1, %28, %cst_13 {dimension_numbers = #tpu.dot_dimension_numbers<[1], [0], [0], [1], [0, 0, 1, 1], [], []>} : vector<8x8xf32>, vector<8x32xf32>, vector<8x32xf32> -> vector<8x32xf32>
    %30 = vector.shape_cast %29 : vector<8x32xf32> to vector<1x8x32xf32>
    %31 = arith.subf %27, %30 : vector<1x8x32xf32>
    %32 = vector.shape_cast %31 : vector<1x8x32xf32> to vector<8x32xf32>
    %c0_14 = arith.constant 0 : index
    %c0_15 = arith.constant 0 : index
    %33 = vector.load %arg6[%c0_14, %c0_15] : memref<32x128xf32, #tpu.memory_space<vmem>>, vector<32x128xf32>
    %cst_16 = arith.constant dense<0.000000e+00> : vector<8x128xf32>
    %34 = tpu.matmul %32, %33, %cst_16 {dimension_numbers = #tpu.dot_dimension_numbers<[1], [0], [0], [1], [0, 0, 1, 1], [], []>} : vector<8x32xf32>, vector<32x128xf32>, vector<8x128xf32> -> vector<8x128xf32>
    %35 = vector.shape_cast %34 : vector<8x128xf32> to vector<1x8x128xf32>
    %c0_17 = arith.constant 0 : index
    %c0_18 = arith.constant 0 : index
    %c0_19 = arith.constant 0 : index
    %36 = vector.load %arg2[%c0_17, %c0_18, %c0_19] : memref<1x16x32xf32, #tpu.memory_space<vmem>>, vector<1x16x32xf32>
    %37 = vector.shape_cast %36 : vector<1x16x32xf32> to vector<16x32xf32>
    %c0_20 = arith.constant 0 : index
    %c0_21 = arith.constant 0 : index
    %38 = vector.load %arg7[%c0_20, %c0_21] : memref<32x256xf32, #tpu.memory_space<vmem>>, vector<32x256xf32>
    %cst_22 = arith.constant dense<0.000000e+00> : vector<16x256xf32>
    %39 = tpu.matmul %37, %38, %cst_22 {dimension_numbers = #tpu.dot_dimension_numbers<[1], [0], [0], [1], [0, 0, 1, 1], [], []>} : vector<16x32xf32>, vector<32x256xf32>, vector<16x256xf32> -> vector<16x256xf32>
    %40 = vector.extract_strided_slice %39 {offsets = [0, 0], sizes = [16, 128], strides = [1, 1]} : vector<16x256xf32> to vector<16x128xf32>
    %41 = vector.shape_cast %40 : vector<16x128xf32> to vector<1x16x128xf32>
    %42 = vector.extract_strided_slice %39 {offsets = [0, 128], sizes = [16, 128], strides = [1, 1]} : vector<16x256xf32> to vector<16x128xf32>
    %43 = vector.shape_cast %42 : vector<16x128xf32> to vector<1x16x128xf32>
    %cst_23 = arith.constant dense<0.000000e+00> : vector<1x8x16xf32>
    %44 = tpu.matmul %35, %41, %cst_23 {dimension_numbers = #tpu.dot_dimension_numbers<[2], [2], [1], [1], [0, 0, 0, 1, 1, 1], [0], [0]>} : vector<1x8x128xf32>, vector<1x16x128xf32>, vector<1x8x16xf32> -> vector<1x8x16xf32>
    %cst_24 = arith.constant dense<0xFF800000> : vector<1x8xf32>
    %45 = vector.multi_reduction <maximumf>, %44, %cst_24 [2] : vector<1x8x16xf32> to vector<1x8xf32>
    %46 = vector.shape_cast %45 : vector<1x8xf32> to vector<1x8x1xf32>
    %47 = vector.broadcast %46 : vector<1x8x1xf32> to vector<1x8x16xf32>
    %48 = arith.subf %44, %47 : vector<1x8x16xf32>
    %49 = math.exp %48 : vector<1x8x16xf32>
    %cst_25 = arith.constant dense<0.000000e+00> : vector<1x8xf32>
    %50 = vector.multi_reduction <add>, %49, %cst_25 [2] : vector<1x8x16xf32> to vector<1x8xf32>
    %51 = vector.shape_cast %50 : vector<1x8xf32> to vector<1x8x1xf32>
    %52 = tpu.reciprocal %51 {approx = true} : vector<1x8x1xf32> -> vector<1x8x1xf32>
    %53 = vector.broadcast %52 : vector<1x8x1xf32> to vector<1x8x16xf32>
    %54 = arith.mulf %49, %53 : vector<1x8x16xf32>
    %cst_26 = arith.constant dense<0.000000e+00> : vector<1x8x128xf32>
    %55 = tpu.matmul %54, %43, %cst_26 {dimension_numbers = #tpu.dot_dimension_numbers<[2], [1], [1], [2], [0, 0, 0, 1, 1, 2], [0], [0]>} : vector<1x8x16xf32>, vector<1x16x128xf32>, vector<1x8x128xf32> -> vector<1x8x128xf32>
    %56 = vector.shape_cast %55 : vector<1x8x128xf32> to vector<8x128xf32>
    %c0_27 = arith.constant 0 : index
    %c0_28 = arith.constant 0 : index
    %57 = vector.load %arg8[%c0_27, %c0_28] : memref<128x32xf32, #tpu.memory_space<vmem>>, vector<128x32xf32>
    %cst_29 = arith.constant dense<0.000000e+00> : vector<8x32xf32>
    %58 = tpu.matmul %56, %57, %cst_29 {dimension_numbers = #tpu.dot_dimension_numbers<[1], [0], [0], [1], [0, 0, 1, 1], [], []>} : vector<8x128xf32>, vector<128x32xf32>, vector<8x32xf32> -> vector<8x32xf32>
    %59 = vector.shape_cast %58 : vector<8x32xf32> to vector<1x8x32xf32>
    %60 = arith.addf %31, %59 : vector<1x8x32xf32>
    %61 = vector.shape_cast %60 : vector<1x8x32xf32> to vector<8x32xf32>
    %cst_30 = arith.constant dense<0.000000e+00> : vector<8x32xf32>
    %62 = tpu.matmul %1, %61, %cst_30 {dimension_numbers = #tpu.dot_dimension_numbers<[1], [0], [0], [1], [0, 0, 1, 1], [], []>} : vector<8x8xf32>, vector<8x32xf32>, vector<8x32xf32> -> vector<8x32xf32>
    %63 = vector.shape_cast %62 : vector<8x32xf32> to vector<1x8x32xf32>
    %64 = arith.subf %60, %63 : vector<1x8x32xf32>
    %65 = arith.addf %30, %63 : vector<1x8x32xf32>
    %66 = vector.shape_cast %64 : vector<1x8x32xf32> to vector<8x32xf32>
    %c0_31 = arith.constant 0 : index
    %c0_32 = arith.constant 0 : index
    %67 = vector.load %arg9[%c0_31, %c0_32] : memref<32x128xf32, #tpu.memory_space<vmem>>, vector<32x128xf32>
    %cst_33 = arith.constant dense<0.000000e+00> : vector<8x128xf32>
    %68 = tpu.matmul %66, %67, %cst_33 {dimension_numbers = #tpu.dot_dimension_numbers<[1], [0], [0], [1], [0, 0, 1, 1], [], []>} : vector<8x32xf32>, vector<32x128xf32>, vector<8x128xf32> -> vector<8x128xf32>
    %cst_34 = arith.constant 0.000000e+00 : f32
    %69 = vector.broadcast %cst_34 : f32 to vector<8x128xf32>
    %70 = arith.maximumf %68, %69 : vector<8x128xf32>
    %c0_35 = arith.constant 0 : index
    %c0_36 = arith.constant 0 : index
    %71 = vector.load %arg10[%c0_35, %c0_36] : memref<128x32xf32, #tpu.memory_space<vmem>>, vector<128x32xf32>
    %cst_37 = arith.constant dense<0.000000e+00> : vector<8x32xf32>
    %72 = tpu.matmul %70, %71, %cst_37 {dimension_numbers = #tpu.dot_dimension_numbers<[1], [0], [0], [1], [0, 0, 1, 1], [], []>} : vector<8x128xf32>, vector<128x32xf32>, vector<8x32xf32> -> vector<8x32xf32>
    %73 = vector.shape_cast %72 : vector<8x32xf32> to vector<1x8x32xf32>
    %74 = arith.addf %64, %73 : vector<1x8x32xf32>
    %75 = vector.shape_cast %74 : vector<1x8x32xf32> to vector<8x32xf32>
    %cst_38 = arith.constant dense<0.000000e+00> : vector<8x32xf32>
    %76 = tpu.matmul %1, %75, %cst_38 {dimension_numbers = #tpu.dot_dimension_numbers<[1], [0], [0], [1], [0, 0, 1, 1], [], []>} : vector<8x8xf32>, vector<8x32xf32>, vector<8x32xf32> -> vector<8x32xf32>
    %77 = vector.shape_cast %76 : vector<8x32xf32> to vector<1x8x32xf32>
    %78 = arith.subf %74, %77 : vector<1x8x32xf32>
    %c0_39 = arith.constant 0 : index
    %c0_40 = arith.constant 0 : index
    %c0_41 = arith.constant 0 : index
    %79 = vector.load %arg14[%c0_39, %c0_40, %c0_41] : memref<1x8x32xf32, #tpu.memory_space<vmem>>, vector<1x8x32xf32>
    tpu.vector_store %arg14[%c0_39, %c0_40, %c0_41], %78 {strides = array<i32>} : memref<1x8x32xf32, #tpu.memory_space<vmem>>, vector<1x8x32xf32>,
    %80 = arith.addf %65, %77 : vector<1x8x32xf32>
    %81 = vector.shape_cast %80 : vector<1x8x32xf32> to vector<8x32xf32>
    %c1_i32 = arith.constant 1 : i32
    %82 = tpu.dynamic_rotate %81 by %c1_i32 dim 0 : vector<8x32xf32>, i32 -> vector<8x32xf32>
    %83 = vector.shape_cast %82 : vector<8x32xf32> to vector<1x8x32xf32>
    %84 = vector.shape_cast %80 : vector<1x8x32xf32> to vector<8x32xf32>
    %c7_i32 = arith.constant 7 : i32
    %85 = tpu.dynamic_rotate %84 by %c7_i32 dim 0 : vector<8x32xf32>, i32 -> vector<8x32xf32>
    %86 = vector.shape_cast %85 : vector<8x32xf32> to vector<1x8x32xf32>
    %87 = vector.shape_cast %83 : vector<1x8x32xf32> to vector<8x32xf32>
    %c0_42 = arith.constant 0 : index
    %c0_43 = arith.constant 0 : index
    %88 = vector.load %arg11[%c0_42, %c0_43] : memref<32x128xf32, #tpu.memory_space<vmem>>, vector<32x128xf32>
    %cst_44 = arith.constant dense<0.000000e+00> : vector<8x128xf32>
    %89 = tpu.matmul %87, %88, %cst_44 {dimension_numbers = #tpu.dot_dimension_numbers<[1], [0], [0], [1], [0, 0, 1, 1], [], []>} : vector<8x32xf32>, vector<32x128xf32>, vector<8x128xf32> -> vector<8x128xf32>
    %90 = vector.shape_cast %80 : vector<1x8x32xf32> to vector<8x32xf32>
    %c0_45 = arith.constant 0 : index
    %c0_46 = arith.constant 0 : index
    %91 = vector.load %arg12[%c0_45, %c0_46] : memref<32x128xf32, #tpu.memory_space<vmem>>, vector<32x128xf32>
    %cst_47 = arith.constant dense<0.000000e+00> : vector<8x128xf32>
    %92 = tpu.matmul %90, %91, %cst_47 {dimension_numbers = #tpu.dot_dimension_numbers<[1], [0], [0], [1], [0, 0, 1, 1], [], []>} : vector<8x32xf32>, vector<32x128xf32>, vector<8x128xf32> -> vector<8x128xf32>
    %93 = arith.addf %89, %92 : vector<8x128xf32>
    %94 = vector.shape_cast %86 : vector<1x8x32xf32> to vector<8x32xf32>
    %c0_48 = arith.constant 0 : index
    %c0_49 = arith.constant 0 : index
    %95 = vector.load %arg13[%c0_48, %c0_49] : memref<32x128xf32, #tpu.memory_space<vmem>>, vector<32x128xf32>
    %cst_50 = arith.constant dense<0.000000e+00> : vector<8x128xf32>
    %96 = tpu.matmul %94, %95, %cst_50 {dimension_numbers = #tpu.dot_dimension_numbers<[1], [0], [0], [1], [0, 0, 1, 1], [], []>} : vector<8x32xf32>, vector<32x128xf32>, vector<8x128xf32> -> vector<8x128xf32>
    %97 = arith.addf %93, %96 : vector<8x128xf32>
    %98 = vector.shape_cast %97 : vector<8x128xf32> to vector<1x8x128xf32>
    %c0_51 = arith.constant 0 : index
    %c0_52 = arith.constant 0 : index
    %c0_53 = arith.constant 0 : index
    %99 = vector.load %arg15[%c0_51, %c0_52, %c0_53] : memref<1x8x128xf32, #tpu.memory_space<vmem>>, vector<1x8x128xf32>
    tpu.vector_store %arg15[%c0_51, %c0_52, %c0_53], %98 {strides = array<i32>} : memref<1x8x128xf32, #tpu.memory_space<vmem>>, vector<1x8x128xf32>,
    return
  }
  func.func @transform_0(%arg0: i32) -> (i32, i32, i32) {
    %c0_i32 = arith.constant 0 : i32
    %c0_i32_0 = arith.constant 0 : i32
    %c0_i32_1 = arith.constant 0 : i32
    return %arg0, %c0_i32, %c0_i32_0 : i32, i32, i32
  }
  func.func @transform_1(%arg0: i32) -> (i32, i32, i32) {
    %c0_i32 = arith.constant 0 : i32
    %c0_i32_0 = arith.constant 0 : i32
    %c0_i32_1 = arith.constant 0 : i32
    return %arg0, %c0_i32, %c0_i32_0 : i32, i32, i32
  }
  func.func @transform_2(%arg0: i32) -> (i32, i32) {
    %c0_i32 = arith.constant 0 : i32
    %c0_i32_0 = arith.constant 0 : i32
    %c0_i32_1 = arith.constant 0 : i32
    return %c0_i32, %c0_i32_0 : i32, i32
  }
  func.func @transform_3(%arg0: i32) -> (i32, i32) {
    %c0_i32 = arith.constant 0 : i32
    %c0_i32_0 = arith.constant 0 : i32
    %c0_i32_1 = arith.constant 0 : i32
    return %c0_i32, %c0_i32_0 : i32, i32
  }
  func.func @transform_4(%arg0: i32) -> (i32, i32) {
    %c0_i32 = arith.constant 0 : i32
    %c0_i32_0 = arith.constant 0 : i32
    %c0_i32_1 = arith.constant 0 : i32
    return %c0_i32, %c0_i32_0 : i32, i32
  }
  func.func @transform_5(%arg0: i32) -> (i32, i32) {
    %c0_i32 = arith.constant 0 : i32
    %c0_i32_0 = arith.constant 0 : i32
    %c0_i32_1 = arith.constant 0 : i32
    return %c0_i32, %c0_i32_0 : i32, i32
  }
  func.func @transform_6(%arg0: i32) -> (i32, i32) {
    %c0_i32 = arith.constant 0 : i32
    %c0_i32_0 = arith.constant 0 : i32
    %c0_i32_1 = arith.constant 0 : i32
    return %c0_i32, %c0_i32_0 : i32, i32
  }
  func.func @transform_7(%arg0: i32) -> (i32, i32) {
    %c0_i32 = arith.constant 0 : i32
    %c0_i32_0 = arith.constant 0 : i32
    %c0_i32_1 = arith.constant 0 : i32
    return %c0_i32, %c0_i32_0 : i32, i32
  }
  func.func @transform_8(%arg0: i32) -> (i32, i32) {
    %c0_i32 = arith.constant 0 : i32
    %c0_i32_0 = arith.constant 0 : i32
    %c0_i32_1 = arith.constant 0 : i32
    return %c0_i32, %c0_i32_0 : i32, i32
  }
  func.func @transform_9(%arg0: i32) -> (i32, i32) {
    %c0_i32 = arith.constant 0 : i32
    %c0_i32_0 = arith.constant 0 : i32
    %c0_i32_1 = arith.constant 0 : i32
    return %c0_i32, %c0_i32_0 : i32, i32
  }
  func.func @transform_10(%arg0: i32) -> (i32, i32) {
    %c0_i32 = arith.constant 0 : i32
    %c0_i32_0 = arith.constant 0 : i32
    %c0_i32_1 = arith.constant 0 : i32
    return %c0_i32, %c0_i32_0 : i32, i32
  }
  func.func @transform_11(%arg0: i32) -> (i32, i32) {
    %c0_i32 = arith.constant 0 : i32
    %c0_i32_0 = arith.constant 0 : i32
    %c0_i32_1 = arith.constant 0 : i32
    return %c0_i32, %c0_i32_0 : i32, i32
  }
  func.func @transform_12(%arg0: i32) -> (i32, i32) {
    %c0_i32 = arith.constant 0 : i32
    %c0_i32_0 = arith.constant 0 : i32
    %c0_i32_1 = arith.constant 0 : i32
    return %c0_i32, %c0_i32_0 : i32, i32
  }
  func.func @transform_13(%arg0: i32) -> (i32, i32, i32) {
    %c0_i32 = arith.constant 0 : i32
    %c0_i32_0 = arith.constant 0 : i32
    %c0_i32_1 = arith.constant 0 : i32
    return %arg0, %c0_i32, %c0_i32_0 : i32, i32, i32
  }
  func.func @transform_14(%arg0: i32) -> (i32, i32, i32) {
    %c0_i32 = arith.constant 0 : i32
    %c0_i32_0 = arith.constant 0 : i32
    %c0_i32_1 = arith.constant 0 : i32
    return %arg0, %c0_i32, %c0_i32_0 : i32, i32, i32
  }
}

</mosaic_0001>

<llo_original>
// kernel: tpu_custom_call.1
$region0: #{tpu_custom_call.1}
  #allocation0 [shape = 'u32[]', space=smem, size = 0x4, offset = 0x4, fixed_abs, tag = 'smem constant byte address 0x4 - core index']
  #allocation1 [shape = 'u32[144,128]{1,0:T(1,128)}', space=vmem, size = 0x12000, scoped, tag = 'internal scratch']
  %s0 = inlined_call_operand.vmem [shape: f32[2,8,32], index: 0, kind: input, shape index: {}]
  %s1 = inlined_call_operand.vmem [shape: f32[2,16,32], index: 1, kind: input, shape index: {}]
  %s2 = inlined_call_operand.vmem [shape: f32[8,8], index: 2, kind: input, shape index: {}]
  %s3 = inlined_call_operand.vmem [shape: f32[32,384], index: 3, kind: input, shape index: {}]
  %s4 = inlined_call_operand.vmem [shape: f32[128,32], index: 4, kind: input, shape index: {}]
  %s5 = inlined_call_operand.vmem [shape: f32[32,128], index: 5, kind: input, shape index: {}]
  %s6 = inlined_call_operand.vmem [shape: f32[32,256], index: 6, kind: input, shape index: {}]
  %s7 = inlined_call_operand.vmem [shape: f32[128,32], index: 7, kind: input, shape index: {}]
  %s8 = inlined_call_operand.vmem [shape: f32[32,128], index: 8, kind: input, shape index: {}]
  %s9 = inlined_call_operand.vmem [shape: f32[128,32], index: 9, kind: input, shape index: {}]
  %s10 = inlined_call_operand.vmem [shape: f32[32,128], index: 10, kind: input, shape index: {}]
  %s11 = inlined_call_operand.vmem [shape: f32[32,128], index: 11, kind: input, shape index: {}]
  %s12 = inlined_call_operand.vmem [shape: f32[32,128], index: 12, kind: input, shape index: {}]
  %s13 = inlined_call_operand.hbm [shape: f32[2,8,32], index: 13, kind: output, shape index: {0}]
  %s14 = inlined_call_operand.hbm [shape: f32[2,8,128], index: 14, kind: output, shape index: {1}]
  %15 = xla_tuple %s13, %s14
  %s16 = sld [smem:[#allocation0]]
  $region93: #{tpu_custom_call.1} parent=0
    _
  %s18 = ssub.s32 1, %s16
  %s19 = scalar_select 0, %s18, %s16
  $region1: #{tpu_custom_call.1} parent=0
    #allocation2 [shape = 'u8[8192]{0}', space=vmem, size = 0x2000, scoped, tag = 'output window, operand 0']
    #allocation3 [shape = 's32[2]{0}', space=sflag, size = 0x8, scoped, tag = 'scoped memory for tpu_custom_call.1']
    #allocation4 [shape = 'u8[8192]{0}', space=vmem, size = 0x2000, scoped, tag = 'output window, operand 1']
    #allocation5 [shape = 's32[2]{0}', space=sflag, size = 0x8, scoped, tag = 'scoped memory for tpu_custom_call.1']
    %20 = vsyncpa [#allocation3], 0
    %s21 = scalar_lea.sflag [#allocation3], 1
    %22 = vsyncpa %s21, 0
    %23 = vsyncpa [#allocation5], 0
    %s24 = scalar_lea.sflag [#allocation5], 1
    %25 = vsyncpa %s24, 0
    loop: start=0, step=1, limit=4
    $region2: #{tpu_custom_call.1} parent=1 // loop_pre_header
      _
    $region3: #{tpu_custom_call.1} parent=1 // loop_header
      %s27 = sphi 0, %s31
      %p28 = scmp.ge.s32.totalorder %s27, 4
      %s37 = sphi 0, %s39
      %s40 = sphi 0, %s37
      %s41 = sphi 0, %s40
      %s57 = sphi 0, %s41
      %s63 = sphi 0, %s65
      %s66 = sphi 0, %s63
      %s67 = sphi 0, %s66
      %s83 = sphi 0, %s67
      %s87 = sphi 0, %s87
      %s89 = sphi 0, %s87
      %s90 = sphi 0, %s89
      %s104 = sphi 0, %s90
      %s108 = sphi 0, %s108
      %s110 = sphi 0, %s108
      %s111 = sphi 0, %s110
      %s125 = sphi 0, %s111
      %s129 = sphi 0, %s129
      %s131 = sphi 0, %s129
      %s132 = sphi 0, %s131
      %s146 = sphi 0, %s132
      %s150 = sphi 0, %s150
      %s152 = sphi 0, %s150
      %s153 = sphi 0, %s152
      %s167 = sphi 0, %s153
      %s171 = sphi 0, %s171
      %s173 = sphi 0, %s171
      %s174 = sphi 0, %s173
      %s188 = sphi 0, %s174
      %s192 = sphi 0, %s192
      %s194 = sphi 0, %s192
      %s195 = sphi 0, %s194
      %s209 = sphi 0, %s195
      %s213 = sphi 0, %s213
      %s215 = sphi 0, %s213
      %s216 = sphi 0, %s215
      %s230 = sphi 0, %s216
      %s234 = sphi 0, %s234
      %s236 = sphi 0, %s234
      %s237 = sphi 0, %s236
      %s251 = sphi 0, %s237
      %s255 = sphi 0, %s255
      %s257 = sphi 0, %s255
      %s258 = sphi 0, %s257
      %s272 = sphi 0, %s258
      %s276 = sphi 0, %s276
      %s278 = sphi 0, %s276
      %s279 = sphi 0, %s278
      %s293 = sphi 0, %s279
      %s297 = sphi 0, %s297
      %s299 = sphi 0, %s297
      %s300 = sphi 0, %s299
      %s314 = sphi 0, %s300
      %s320 = sphi 0, %s322
      %s323 = sphi 0, %s320
      %s324 = sphi 0, %s323
      %s340 = sphi 0, %s324
      %s346 = sphi 0, %s348
      %s349 = sphi 0, %s346
      %s350 = sphi 0, %s349
      %s366 = sphi 0, %s350
    $region4: #{tpu_custom_call.1} parent=1 // loop_header_branch
      %30 = sbr.rel (%p28) target = $region8
    $region5: #{tpu_custom_call.1} parent=1 // loop_body
      %s32 = ssub.s32 %s27, 1
      %s33 = ssub.s32 %s27, 2
      %s34 = sadd.s32 %s27, 1
      %s35 = ssub.s32 %s27, %s34
      %p36 = scmp.eq.s32.totalorder %s35, 0
      %s38 = sadd.s32 %s37, 1
      %s39 = scalar_select %p36, %s37, %s38
      %p42 = pneg %p36
      %p43 = scmp.eq.s32.totalorder %s27, 1
      %p44 = por %p42, %p43
      %p45 = scmp.ne.s32.totalorder %s37, %s40
      %p46 = scmp.eq.s32.totalorder %s27, 0
      %p47 = por %p45, %p46
      %p48 = scmp.ne.s32.totalorder %s37, %s40
      %p49 = scmp.eq.s32.totalorder %s32, 1
      %p50 = por %p48, %p49
      %p51 = scmp.ne.s32.totalorder %s40, %s41
      %p52 = scmp.eq.s32.totalorder %s32, 0
      %p53 = por %p51, %p52
      %p54 = scmp.ne.s32.totalorder %s40, %s41
      %p55 = scmp.eq.s32.totalorder %s33, 1
      %p56 = por %p54, %p55
      %p58 = scmp.ne.s32.totalorder %s41, %s57
      %p59 = scmp.eq.s32.totalorder %s33, 0
      %p60 = por %p58, %p59
      %s61 = ssub.s32 %s27, %s34
      %p62 = scmp.eq.s32.totalorder %s61, 0
      %s64 = sadd.s32 %s63, 1
      %s65 = scalar_select %p62, %s63, %s64
      %p68 = pneg %p62
      %p69 = scmp.eq.s32.totalorder %s27, 1
      %p70 = por %p68, %p69
      %p71 = scmp.ne.s32.totalorder %s63, %s66
      %p72 = scmp.eq.s32.totalorder %s27, 0
      %p73 = por %p71, %p72
      %p74 = scmp.ne.s32.totalorder %s63, %s66
      %p75 = scmp.eq.s32.totalorder %s32, 1
      %p76 = por %p74, %p75
      %p77 = scmp.ne.s32.totalorder %s66, %s67
      %p78 = scmp.eq.s32.totalorder %s32, 0
      %p79 = por %p77, %p78
      %p80 = scmp.ne.s32.totalorder %s66, %s67
      %p81 = scmp.eq.s32.totalorder %s33, 1
      %p82 = por %p80, %p81
      %p84 = scmp.ne.s32.totalorder %s67, %s83
      %p85 = scmp.eq.s32.totalorder %s33, 0
      %p86 = por %p84, %p85
      %s88 = sadd.s32 %s87, 1
      %p91 = scmp.eq.s32.totalorder %s27, 1
      %p92 = scmp.ne.s32.totalorder %s87, %s89
      %p93 = scmp.eq.s32.totalorder %s27, 0
      %p94 = por %p92, %p93
      %p95 = scmp.ne.s32.totalorder %s87, %s89
      %p96 = scmp.eq.s32.totalorder %s32, 1
      %p97 = por %p95, %p96
      %p98 = scmp.ne.s32.totalorder %s89, %s90
      %p99 = scmp.eq.s32.totalorder %s32, 0
      %p100 = por %p98, %p99
      %p101 = scmp.ne.s32.totalorder %s89, %s90
      %p102 = scmp.eq.s32.totalorder %s33, 1
      %p103 = por %p101, %p102
      %p105 = scmp.ne.s32.totalorder %s90, %s104
      %p106 = scmp.eq.s32.totalorder %s33, 0
      %p107 = por %p105, %p106
      %s109 = sadd.s32 %s108, 1
      %p112 = scmp.eq.s32.totalorder %s27, 1
      %p113 = scmp.ne.s32.totalorder %s108, %s110
      %p114 = scmp.eq.s32.totalorder %s27, 0
      %p115 = por %p113, %p114
      %p116 = scmp.ne.s32.totalorder %s108, %s110
      %p117 = scmp.eq.s32.totalorder %s32, 1
      %p118 = por %p116, %p117
      %p119 = scmp.ne.s32.totalorder %s110, %s111
      %p120 = scmp.eq.s32.totalorder %s32, 0
      %p121 = por %p119, %p120
      %p122 = scmp.ne.s32.totalorder %s110, %s111
      %p123 = scmp.eq.s32.totalorder %s33, 1
      %p124 = por %p122, %p123
      %p126 = scmp.ne.s32.totalorder %s111, %s125
      %p127 = scmp.eq.s32.totalorder %s33, 0
      %p128 = por %p126, %p127
      %s130 = sadd.s32 %s129, 1
      %p133 = scmp.eq.s32.totalorder %s27, 1
      %p134 = scmp.ne.s32.totalorder %s129, %s131
      %p135 = scmp.eq.s32.totalorder %s27, 0
      %p136 = por %p134, %p135
      %p137 = scmp.ne.s32.totalorder %s129, %s131
      %p138 = scmp.eq.s32.totalorder %s32, 1
      %p139 = por %p137, %p138
      %p140 = scmp.ne.s32.totalorder %s131, %s132
      %p141 = scmp.eq.s32.totalorder %s32, 0
      %p142 = por %p140, %p141
      %p143 = scmp.ne.s32.totalorder %s131, %s132
      %p144 = scmp.eq.s32.totalorder %s33, 1
      %p145 = por %p143, %p144
      %p147 = scmp.ne.s32.totalorder %s132, %s146
      %p148 = scmp.eq.s32.totalorder %s33, 0
      %p149 = por %p147, %p148
      %s151 = sadd.s32 %s150, 1
      %p154 = scmp.eq.s32.totalorder %s27, 1
      %p155 = scmp.ne.s32.totalorder %s150, %s152
      %p156 = scmp.eq.s32.totalorder %s27, 0
      %p157 = por %p155, %p156
      %p158 = scmp.ne.s32.totalorder %s150, %s152
      %p159 = scmp.eq.s32.totalorder %s32, 1
      %p160 = por %p158, %p159
      %p161 = scmp.ne.s32.totalorder %s152, %s153
      %p162 = scmp.eq.s32.totalorder %s32, 0
      %p163 = por %p161, %p162
      %p164 = scmp.ne.s32.totalorder %s152, %s153
      %p165 = scmp.eq.s32.totalorder %s33, 1
      %p166 = por %p164, %p165
      %p168 = scmp.ne.s32.totalorder %s153, %s167
      %p169 = scmp.eq.s32.totalorder %s33, 0
      %p170 = por %p168, %p169
      %s172 = sadd.s32 %s171, 1
      %p175 = scmp.eq.s32.totalorder %s27, 1
      %p176 = scmp.ne.s32.totalorder %s171, %s173
      %p177 = scmp.eq.s32.totalorder %s27, 0
      %p178 = por %p176, %p177
      %p179 = scmp.ne.s32.totalorder %s171, %s173
      %p180 = scmp.eq.s32.totalorder %s32, 1
      %p181 = por %p179, %p180
      %p182 = scmp.ne.s32.totalorder %s173, %s174
      %p183 = scmp.eq.s32.totalorder %s32, 0
      %p184 = por %p182, %p183
      %p185 = scmp.ne.s32.totalorder %s173, %s174
      %p186 = scmp.eq.s32.totalorder %s33, 1
      %p187 = por %p185, %p186
      %p189 = scmp.ne.s32.totalorder %s174, %s188
      %p190 = scmp.eq.s32.totalorder %s33, 0
      %p191 = por %p189, %p190
      %s193 = sadd.s32 %s192, 1
      %p196 = scmp.eq.s32.totalorder %s27, 1
      %p197 = scmp.ne.s32.totalorder %s192, %s194
      %p198 = scmp.eq.s32.totalorder %s27, 0
      %p199 = por %p197, %p198
      %p200 = scmp.ne.s32.totalorder %s192, %s194
      %p201 = scmp.eq.s32.totalorder %s32, 1
      %p202 = por %p200, %p201
      %p203 = scmp.ne.s32.totalorder %s194, %s195
      %p204 = scmp.eq.s32.totalorder %s32, 0
      %p205 = por %p203, %p204
      %p206 = scmp.ne.s32.totalorder %s194, %s195
      %p207 = scmp.eq.s32.totalorder %s33, 1
      %p208 = por %p206, %p207
      %p210 = scmp.ne.s32.totalorder %s195, %s209
      %p211 = scmp.eq.s32.totalorder %s33, 0
      %p212 = por %p210, %p211
      %s214 = sadd.s32 %s213, 1
      %p217 = scmp.eq.s32.totalorder %s27, 1
      %p218 = scmp.ne.s32.totalorder %s213, %s215
      %p219 = scmp.eq.s32.totalorder %s27, 0
      %p220 = por %p218, %p219
      %p221 = scmp.ne.s32.totalorder %s213, %s215
      %p222 = scmp.eq.s32.totalorder %s32, 1
      %p223 = por %p221, %p222
      %p224 = scmp.ne.s32.totalorder %s215, %s216
      %p225 = scmp.eq.s32.totalorder %s32, 0
      %p226 = por %p224, %p225
      %p227 = scmp.ne.s32.totalorder %s215, %s216
      %p228 = scmp.eq.s32.totalorder %s33, 1
      %p229 = por %p227, %p228
      %p231 = scmp.ne.s32.totalorder %s216, %s230
      %p232 = scmp.eq.s32.totalorder %s33, 0
      %p233 = por %p231, %p232
      %s235 = sadd.s32 %s234, 1
      %p238 = scmp.eq.s32.totalorder %s27, 1
      %p239 = scmp.ne.s32.totalorder %s234, %s236
      %p240 = scmp.eq.s32.totalorder %s27, 0
      %p241 = por %p239, %p240
      %p242 = scmp.ne.s32.totalorder %s234, %s236
      %p243 = scmp.eq.s32.totalorder %s32, 1
      %p244 = por %p242, %p243
      %p245 = scmp.ne.s32.totalorder %s236, %s237
      %p246 = scmp.eq.s32.totalorder %s32, 0
      %p247 = por %p245, %p246
      %p248 = scmp.ne.s32.totalorder %s236, %s237
      %p249 = scmp.eq.s32.totalorder %s33, 1
      %p250 = por %p248, %p249
      %p252 = scmp.ne.s32.totalorder %s237, %s251
      %p253 = scmp.eq.s32.totalorder %s33, 0
      %p254 = por %p252, %p253
      %s256 = sadd.s32 %s255, 1
      %p259 = scmp.eq.s32.totalorder %s27, 1
      %p260 = scmp.ne.s32.totalorder %s255, %s257
      %p261 = scmp.eq.s32.totalorder %s27, 0
      %p262 = por %p260, %p261
      %p263 = scmp.ne.s32.totalorder %s255, %s257
      %p264 = scmp.eq.s32.totalorder %s32, 1
      %p265 = por %p263, %p264
      %p266 = scmp.ne.s32.totalorder %s257, %s258
      %p267 = scmp.eq.s32.totalorder %s32, 0
      %p268 = por %p266, %p267
      %p269 = scmp.ne.s32.totalorder %s257, %s258
      %p270 = scmp.eq.s32.totalorder %s33, 1
      %p271 = por %p269, %p270
      %p273 = scmp.ne.s32.totalorder %s258, %s272
      %p274 = scmp.eq.s32.totalorder %s33, 0
      %p275 = por %p273, %p274
      %s277 = sadd.s32 %s276, 1
      %p280 = scmp.eq.s32.totalorder %s27, 1
      %p281 = scmp.ne.s32.totalorder %s276, %s278
      %p282 = scmp.eq.s32.totalorder %s27, 0
      %p283 = por %p281, %p282
      %p284 = scmp.ne.s32.totalorder %s276, %s278
      %p285 = scmp.eq.s32.totalorder %s32, 1
      %p286 = por %p284, %p285
      %p287 = scmp.ne.s32.totalorder %s278, %s279
      %p288 = scmp.eq.s32.totalorder %s32, 0
      %p289 = por %p287, %p288
      %p290 = scmp.ne.s32.totalorder %s278, %s279
      %p291 = scmp.eq.s32.totalorder %s33, 1
      %p292 = por %p290, %p291
      %p294 = scmp.ne.s32.totalorder %s279, %s293
      %p295 = scmp.eq.s32.totalorder %s33, 0
      %p296 = por %p294, %p295
      %s298 = sadd.s32 %s297, 1
      %p301 = scmp.eq.s32.totalorder %s27, 1
      %p302 = scmp.ne.s32.totalorder %s297, %s299
      %p303 = scmp.eq.s32.totalorder %s27, 0
      %p304 = por %p302, %p303
      %p305 = scmp.ne.s32.totalorder %s297, %s299
      %p306 = scmp.eq.s32.totalorder %s32, 1
      %p307 = por %p305, %p306
      %p308 = scmp.ne.s32.totalorder %s299, %s300
      %p309 = scmp.eq.s32.totalorder %s32, 0
      %p310 = por %p308, %p309
      %p311 = scmp.ne.s32.totalorder %s299, %s300
      %p312 = scmp.eq.s32.totalorder %s33, 1
      %p313 = por %p311, %p312
      %p315 = scmp.ne.s32.totalorder %s300, %s314
      %p316 = scmp.eq.s32.totalorder %s33, 0
      %p317 = por %p315, %p316
      %s318 = ssub.s32 %s27, %s34
      %p319 = scmp.eq.s32.totalorder %s318, 0
      %s321 = sadd.s32 %s320, 1
      %s322 = scalar_select %p319, %s320, %s321
      %p325 = pneg %p319
      %p326 = scmp.eq.s32.totalorder %s27, 1
      %p327 = por %p325, %p326
      %p328 = scmp.ne.s32.totalorder %s320, %s323
      %p329 = scmp.eq.s32.totalorder %s27, 0
      %p330 = por %p328, %p329
      %p331 = scmp.ne.s32.totalorder %s320, %s323
      %p332 = scmp.eq.s32.totalorder %s32, 1
      %p333 = por %p331, %p332
      %p334 = scmp.ne.s32.totalorder %s323, %s324
      %p335 = scmp.eq.s32.totalorder %s32, 0
      %p336 = por %p334, %p335
      %p337 = scmp.ne.s32.totalorder %s323, %s324
      %p338 = scmp.eq.s32.totalorder %s33, 1
      %p339 = por %p337, %p338
      %p341 = scmp.ne.s32.totalorder %s324, %s340
      %p342 = scmp.eq.s32.totalorder %s33, 0
      %p343 = por %p341, %p342
      %s344 = ssub.s32 %s27, %s34
      %p345 = scmp.eq.s32.totalorder %s344, 0
      %s347 = sadd.s32 %s346, 1
      %s348 = scalar_select %p345, %s346, %s347
      %p351 = pneg %p345
      %p352 = scmp.eq.s32.totalorder %s27, 1
      %p353 = por %p351, %p352
      %p354 = scmp.ne.s32.totalorder %s346, %s349
      %p355 = scmp.eq.s32.totalorder %s27, 0
      %p356 = por %p354, %p355
      %p357 = scmp.ne.s32.totalorder %s346, %s349
      %p358 = scmp.eq.s32.totalorder %s32, 1
      %p359 = por %p357, %p358
      %p360 = scmp.ne.s32.totalorder %s349, %s350
      %p361 = scmp.eq.s32.totalorder %s32, 0
      %p362 = por %p360, %p361
      %p363 = scmp.ne.s32.totalorder %s349, %s350
      %p364 = scmp.eq.s32.totalorder %s33, 1
      %p365 = por %p363, %p364
      %p367 = scmp.ne.s32.totalorder %s350, %s366
      %p368 = scmp.eq.s32.totalorder %s33, 0
      %p369 = por %p367, %p368
      %p370 = scmp.le.s32.totalorder 1, %s27
      %p371 = scmp.lt.s32.totalorder %s27, 3
      %p372 = pnand %p370, %p371
      %p373 = pneg %p372
      // Predicated region
      $region9: #{tpu_custom_call.1} parent=5 // pred_check
        _
      $region10: #{tpu_custom_call.1} parent=5 // pred_check_branch
        %375 = sbr.rel (%p372) target = $region12
      $region11: #{tpu_custom_call.1} parent=5 // pred_region
        %s376 = ssub.s32 %s27, 1
        // Predicated region
        $region13: #{tpu_custom_call.1} parent=11 // pred_check
          %p377 = pneg %p100
        $region14: #{tpu_custom_call.1} parent=11 // pred_check_branch
          %379 = sbr.rel (%p377) target = $region16
        $region15: #{tpu_custom_call.1} parent=11 // pred_region
          _
        $region16: #{tpu_custom_call.1} parent=11 // pred_fallthru
          _
        // Predicated region
        $region17: #{tpu_custom_call.1} parent=11 // pred_check
          %p380 = pneg %p121
        $region18: #{tpu_custom_call.1} parent=11 // pred_check_branch
          %382 = sbr.rel (%p380) target = $region20
        $region19: #{tpu_custom_call.1} parent=11 // pred_region
          _
        $region20: #{tpu_custom_call.1} parent=11 // pred_fallthru
          _
        // Predicated region
        $region21: #{tpu_custom_call.1} parent=11 // pred_check
          %p383 = pneg %p142
        $region22: #{tpu_custom_call.1} parent=11 // pred_check_branch
          %385 = sbr.rel (%p383) target = $region24
        $region23: #{tpu_custom_call.1} parent=11 // pred_region
          _
        $region24: #{tpu_custom_call.1} parent=11 // pred_fallthru
          _
        // Predicated region
        $region25: #{tpu_custom_call.1} parent=11 // pred_check
          %p386 = pneg %p163
        $region26: #{tpu_custom_call.1} parent=11 // pred_check_branch
          %388 = sbr.rel (%p386) target = $region28
        $region27: #{tpu_custom_call.1} parent=11 // pred_region
          _
        $region28: #{tpu_custom_call.1} parent=11 // pred_fallthru
          _
        // Predicated region
        $region29: #{tpu_custom_call.1} parent=11 // pred_check
          %p389 = pneg %p184
        $region30: #{tpu_custom_call.1} parent=11 // pred_check_branch
          %391 = sbr.rel (%p389) target = $region32
        $region31: #{tpu_custom_call.1} parent=11 // pred_region
          _
        $region32: #{tpu_custom_call.1} parent=11 // pred_fallthru
          _
        // Predicated region
        $region33: #{tpu_custom_call.1} parent=11 // pred_check
          %p392 = pneg %p205
        $region34: #{tpu_custom_call.1} parent=11 // pred_check_branch
          %394 = sbr.rel (%p392) target = $region36
        $region35: #{tpu_custom_call.1} parent=11 // pred_region
          _
        $region36: #{tpu_custom_call.1} parent=11 // pred_fallthru
          _
        // Predicated region
        $region37: #{tpu_custom_call.1} parent=11 // pred_check
          %p395 = pneg %p226
        $region38: #{tpu_custom_call.1} parent=11 // pred_check_branch
          %397 = sbr.rel (%p395) target = $region40
        $region39: #{tpu_custom_call.1} parent=11 // pred_region
          _
        $region40: #{tpu_custom_call.1} parent=11 // pred_fallthru
          _
        // Predicated region
        $region41: #{tpu_custom_call.1} parent=11 // pred_check
          %p398 = pneg %p247
        $region42: #{tpu_custom_call.1} parent=11 // pred_check_branch
          %400 = sbr.rel (%p398) target = $region44
        $region43: #{tpu_custom_call.1} parent=11 // pred_region
          _
        $region44: #{tpu_custom_call.1} parent=11 // pred_fallthru
          _
        // Predicated region
        $region45: #{tpu_custom_call.1} parent=11 // pred_check
          %p401 = pneg %p268
        $region46: #{tpu_custom_call.1} parent=11 // pred_check_branch
          %403 = sbr.rel (%p401) target = $region48
        $region47: #{tpu_custom_call.1} parent=11 // pred_region
          _
        $region48: #{tpu_custom_call.1} parent=11 // pred_fallthru
          _
        // Predicated region
        $region49: #{tpu_custom_call.1} parent=11 // pred_check
          %p404 = pneg %p289
        $region50: #{tpu_custom_call.1} parent=11 // pred_check_branch
          %406 = sbr.rel (%p404) target = $region52
        $region51: #{tpu_custom_call.1} parent=11 // pred_region
          _
        $region52: #{tpu_custom_call.1} parent=11 // pred_fallthru
          _
        // Predicated region
        $region53: #{tpu_custom_call.1} parent=11 // pred_check
          %p407 = pneg %p310
        $region54: #{tpu_custom_call.1} parent=11 // pred_check_branch
          %409 = sbr.rel (%p407) target = $region56
        $region55: #{tpu_custom_call.1} parent=11 // pred_region
          _
        $region56: #{tpu_custom_call.1} parent=11 // pred_fallthru
          _
      $region12: #{tpu_custom_call.1} parent=5 // pred_fallthru
        _
      %p410 = scmp.lt.s32.totalorder %s27, 2
      // Predicated region
      $region57: #{tpu_custom_call.1} parent=5 // pred_check
        %p411 = pneg %p410
      $region58: #{tpu_custom_call.1} parent=5 // pred_check_branch
        %413 = sbr.rel (%p411) target = $region60
      $region59: #{tpu_custom_call.1} parent=5 // pred_region
        // Predicated region
        $region61: #{tpu_custom_call.1} parent=59 // pred_check
          %p414 = pneg %p47
        $region62: #{tpu_custom_call.1} parent=59 // pred_check_branch
          %416 = sbr.rel (%p414) target = $region64
        $region63: #{tpu_custom_call.1} parent=59 // pred_region
          %p417 = scmp.lt.s32.totalorder %s27, 1
          %s418 = scalar_select %p417, %s27, 1
          %s419 = smul.addr %s418, 8
          %s420 = scalar_lea.vmem %s0, %s419
        $region64: #{tpu_custom_call.1} parent=59 // pred_fallthru
          _
        // Predicated region
        $region65: #{tpu_custom_call.1} parent=59 // pred_check
          %p421 = pneg %p73
        $region66: #{tpu_custom_call.1} parent=59 // pred_check_branch
          %423 = sbr.rel (%p421) target = $region68
        $region67: #{tpu_custom_call.1} parent=59 // pred_region
          %p424 = scmp.lt.s32.totalorder %s27, 1
          %s425 = scalar_select %p424, %s27, 1
          %s426 = smul.addr %s425, 2
          %s427 = smul.addr %s426, 8
          %s428 = scalar_lea.vmem %s1, %s427
        $region68: #{tpu_custom_call.1} parent=59 // pred_fallthru
          _
      $region60: #{tpu_custom_call.1} parent=5 // pred_fallthru
        _
      %p429 = scmp.le.s32.totalorder 1, %s27
      %p430 = scmp.lt.s32.totalorder %s27, 3
      %p431 = pnand %p429, %p430
      %p432 = pneg %p431
      // Predicated region
      $region69: #{tpu_custom_call.1} parent=5 // pred_check
        _
      $region70: #{tpu_custom_call.1} parent=5 // pred_check_branch
        %434 = sbr.rel (%p431) target = $region72
      $region71: #{tpu_custom_call.1} parent=5 // pred_region
        %s435 = ssub.s32 %s27, 1
        %p436 = scmp.lt.s32.totalorder %s32, 1
        %s437 = scalar_select %p436, %s32, 1
        %s438 = smul.addr %s437, 8
        %s439 = scalar_lea.vmem %s0, %s438
        %p440 = pneg %p53
        %p441 = pneg %p50
        %p442 = scmp.lt.s32.totalorder %s32, 1
        %s443 = scalar_select %p442, %s32, 1
        %s444 = smul.addr %s443, 2
        %s445 = smul.addr %s444, 8
        %s446 = scalar_lea.vmem %s1, %s445
        %p447 = pneg %p79
        %p448 = pneg %p76
        %p449 = pneg %p100
        %p450 = pneg %p97
        %p451 = pneg %p121
        %p452 = pneg %p118
        %p453 = pneg %p142
        %p454 = pneg %p139
        %p455 = pneg %p163
        %p456 = pneg %p160
        %p457 = pneg %p184
        %p458 = pneg %p181
        %p459 = pneg %p205
        %p460 = pneg %p202
        %p461 = pneg %p226
        %p462 = pneg %p223
        %p463 = pneg %p247
        %p464 = pneg %p244
        %p465 = pneg %p268
        %p466 = pneg %p265
        %p467 = pneg %p289
        %p468 = pneg %p286
        %p469 = pneg %p310
        %p470 = pneg %p307
        %p471 = pneg %p336
        %p472 = pneg %p333
        %s473 = sand.u32 %s323, 1
        %s474 = scalar_lea.sflag [#allocation3], %s473
        %s475 = sand.u32 %s323, 1
        %s476 = smul.addr %s475, 8
        %s477 = scalar_lea.vmem [#allocation2], %s476
        %p478 = pneg %p362
        %p479 = pneg %p359
        %s480 = sand.u32 %s349, 1
        %s481 = scalar_lea.sflag [#allocation5], %s480
        %s482 = sand.u32 %s349, 1
        %s483 = smul.addr %s482, 8
        %s484 = scalar_lea.vmem [#allocation4], %s483
        %p485 = scmp.lt.s32.totalorder %s32, 1
        %s486 = scalar_select %p485, %s32, 1
        %s487 = smul.addr %s486, 8
        %s488 = scalar_lea.vmem %s0, %s487
        %p489 = scmp.lt.s32.totalorder %s32, 1
        %s490 = scalar_select %p489, %s32, 1
        %s491 = smul.addr %s490, 2
        %s492 = smul.addr %s491, 8
        %s493 = scalar_lea.vmem %s1, %s492
        %v494 = vld [vmem:[%s488] sm:$0xff]
        %v495 = vld [vmem:[%s2] sm:$0xff]
        %v496 = vld [vmem:[%s3] sm:$0xff]
        %v497 = vld [vmem:[%s3 + $0x8] sm:$0xff]
        %v498 = vld [vmem:[%s3 + $0x10] sm:$0xff]
        %v499 = vld [vmem:[%s3 + $0x18] sm:$0xff]
        %v500 = vld [vmem:[%s3 + $0x20] sm:$0xff]
        %v501 = vld [vmem:[%s3 + $0x28] sm:$0xff]
        %v502 = vld [vmem:[%s3 + $0x30] sm:$0xff]
        %v503 = vld [vmem:[%s3 + $0x38] sm:$0xff]
        %v504 = vld [vmem:[%s3 + $0x40] sm:$0xff]
        %v505 = vld [vmem:[%s3 + $0x48] sm:$0xff]
        %v506 = vld [vmem:[%s3 + $0x50] sm:$0xff]
        %v507 = vld [vmem:[%s3 + $0x58] sm:$0xff]
        %vm508 = vcmask 261120
        %v510 = vsel %vm508, %v494, 0
        %512 = vmatprep.subr.mxu0 %v497
        %513 = vmatpush1.msra.mxu0 %v496
        %514 = vmatprep.subr.mxu0 %v500
        %515 = vmatpush1.msra.mxu0 %v499
        %516 = vmatprep.subr.mxu0 %v503
        %517 = vmatpush1.msra.mxu0 %v502
        %518 = vmatprep.subr.mxu0 %v506
        %519 = vmatpush1.msra.mxu0 %v505
        %520 = vmatprep.subr.mxu0 0.0
        %521 = vmatpush1.msra.mxu0 0.0
        %522 = vmatprep.subr.mxu0 0.0
        %523 = vmatpush1.msra.mxu0 0.0
        %524 = vmatprep.subr.mxu0 0.0
        %525 = vmatpush1.msra.mxu0 0.0
        %526 = vmatprep.subr.mxu0 0.0
        %527 = vmatpush1.msra.mxu0 0.0
        %528 = vmatprep.subr.mxu0 0.0
        %529 = vmatpush1.msra.mxu0 0.0
        %530 = vmatprep.subr.mxu0 0.0
        %531 = vmatpush1.msra.mxu0 0.0
        %532 = vmatprep.subr.mxu0 0.0
        %533 = vmatpush1.msra.mxu0 0.0
        %534 = vmatprep.subr.mxu0 0.0
        %535 = vmatpush1.msra.mxu0 0.0
        %536 = vmatprep.subr.mxu0 0.0
        %537 = vmatpush1.msra.mxu0 0.0
        %538 = vmatprep.subr.mxu0 0.0
        %539 = vmatpush1.msra.mxu0 0.0
        %540 = vmatprep.subr.mxu0 0.0
        %541 = vmatpush1.msra.mxu0 0.0
        %542 = vmatprep.subr.mxu0 0.0
        %543 = vmatpush1.msra.mxu0 0.0
        %544 = vmatprep.subr.mxu0 0.0
        %545 = vmatpush1.msra.mxu0 0.0
        %546 = vmatprep.subr.mxu0 0.0
        %547 = vmatpush1.msra.mxu0 0.0
        %548 = vmatprep.subr.mxu0 0.0
        %549 = vmatpush1.msra.mxu0 0.0
        %550 = vmatprep.subr.mxu0 0.0
        %551 = vmatpush1.msra.mxu0 0.0
        %552 = vmatprep.subr.mxu0 0.0
        %553 = vmatpush1.msra.mxu0 0.0
        %554 = vmatprep.subr.mxu0 0.0
        %555 = vmatpush1.msra.mxu0 0.0
        %556 = vmatprep.subr.mxu0 0.0
        %557 = vmatpush1.msra.mxu0 0.0
        %558 = vmatprep.subr.mxu0 0.0
        %559 = vmatpush1.msra.mxu0 0.0
        %560 = vmatprep.subr.mxu0 0.0
        %561 = vmatpush1.msra.mxu0 0.0
        %562 = vmatprep.subr.mxu0 0.0
        %563 = vmatpush1.msra.mxu0 0.0
        %564 = vmatprep.subr.mxu0 0.0
        %565 = vmatpush1.msra.mxu0 0.0
        %566 = vmatprep.subr.mxu0 0.0
        %567 = vmatpush1.msra.mxu0 0.0
        %568 = vmatprep.subr.mxu0 0.0
        %569 = vmatpush1.msra.mxu0 0.0
        %570 = vmatprep.subr.mxu0 0.0
        %571 = vmatpush1.msra.mxu0 0.0
        %572 = vmatprep.subr.mxu0 0.0
        %573 = vmatpush1.msra.mxu0 0.0
        %574 = vmatprep.subr.mxu0 0.0
        %575 = vmatpush1.msra.mxu0 0.0
        %576 = vmatprep.mubr.f32.mxu0 0.0
        %577 = vmatmul.mubr.f32.gmra.mrb[0].mxu0 %v510
        %v578 = vpop.f32.mrb[0].mxu0
        %v579 = vadd.f32 0.0, %v578
        %v580 = vpop.f32.mrb[0].mxu0
        %v581 = vadd.f32 0.0, %v580
        %582 = vdwg.mxu0
        %583 = vmatprep.subr.mxu0 0.0
        %584 = vmatpush1.msra.mxu0 %v498
        %585 = vmatprep.subr.mxu0 0.0
        %586 = vmatpush1.msra.mxu0 %v501
        %587 = vmatprep.subr.mxu0 0.0
        %588 = vmatpush1.msra.mxu0 %v504
        %589 = vmatprep.subr.mxu0 0.0
        %590 = vmatpush1.msra.mxu0 %v507
        %591 = vmatprep.subr.mxu0 0.0
        %592 = vmatpush1.msra.mxu0 0.0
        %593 = vmatprep.subr.mxu0 0.0
        %594 = vmatpush1.msra.mxu0 0.0
        %595 = vmatprep.subr.mxu0 0.0
        %596 = vmatpush1.msra.mxu0 0.0
        %597 = vmatprep.subr.mxu0 0.0
        %598 = vmatpush1.msra.mxu0 0.0
        %599 = vmatprep.subr.mxu0 0.0
        %600 = vmatpush1.msra.mxu0 0.0
        %601 = vmatprep.subr.mxu0 0.0
        %602 = vmatpush1.msra.mxu0 0.0
        %603 = vmatprep.subr.mxu0 0.0
        %604 = vmatpush1.msra.mxu0 0.0
        %605 = vmatprep.subr.mxu0 0.0
        %606 = vmatpush1.msra.mxu0 0.0
        %607 = vmatprep.subr.mxu0 0.0
        %608 = vmatpush1.msra.mxu0 0.0
        %609 = vmatprep.subr.mxu0 0.0
        %610 = vmatpush1.msra.mxu0 0.0
        %611 = vmatprep.subr.mxu0 0.0
        %612 = vmatpush1.msra.mxu0 0.0
        %613 = vmatprep.subr.mxu0 0.0
        %614 = vmatpush1.msra.mxu0 0.0
        %615 = vmatprep.subr.mxu0 0.0
        %616 = vmatpush1.msra.mxu0 0.0
        %617 = vmatprep.subr.mxu0 0.0
        %618 = vmatpush1.msra.mxu0 0.0
        %619 = vmatprep.subr.mxu0 0.0
        %620 = vmatpush1.msra.mxu0 0.0
        %621 = vmatprep.subr.mxu0 0.0
        %622 = vmatpush1.msra.mxu0 0.0
        %623 = vmatprep.subr.mxu0 0.0
        %624 = vmatpush1.msra.mxu0 0.0
        %625 = vmatprep.subr.mxu0 0.0
        %626 = vmatpush1.msra.mxu0 0.0
        %627 = vmatprep.subr.mxu0 0.0
        %628 = vmatpush1.msra.mxu0 0.0
        %629 = vmatprep.subr.mxu0 0.0
        %630 = vmatpush1.msra.mxu0 0.0
        %631 = vmatprep.subr.mxu0 0.0
        %632 = vmatpush1.msra.mxu0 0.0
        %633 = vmatprep.subr.mxu0 0.0
        %634 = vmatpush1.msra.mxu0 0.0
        %635 = vmatprep.subr.mxu0 0.0
        %636 = vmatpush1.msra.mxu0 0.0
        %637 = vmatprep.subr.mxu0 0.0
        %638 = vmatpush1.msra.mxu0 0.0
        %639 = vmatprep.subr.mxu0 0.0
        %640 = vmatpush1.msra.mxu0 0.0
        %641 = vmatprep.subr.mxu0 0.0
        %642 = vmatpush1.msra.mxu0 0.0
        %643 = vmatprep.subr.mxu0 0.0
        %644 = vmatpush1.msra.mxu0 0.0
        %645 = vmatprep.subr.mxu0 0.0
        %646 = vmatpush1.msra.mxu0 0.0
        %647 = vmatprep.mubr.f32.mxu0 0.0
        %648 = vmatmul.mubr.f32.gmra.mrb[0].mxu0 %v510
        %v649 = vpop.f32.mrb[0].mxu0
        %v650 = vadd.f32 0.0, %v649
        %v651 = vpop.f32.mrb[0].mxu0
        %652 = vdwg.mxu0
        %653 = vmatprep.subr.mxu0 0.0
        %654 = vmatpush1.xpose.msra.mxu0 %v581
        %655 = vmatprep.subr.mxu0 0.0
        %656 = vmatpush1.xpose.msra.mxu0 0.0
        %657 = vmatprep.subr.mxu0 0.0
        %658 = vmatpush1.xpose.msra.mxu0 0.0
        %659 = vmatprep.subr.mxu0 0.0
        %660 = vmatpush1.xpose.msra.mxu0 0.0
        %661 = vmatprep.subr.mxu0 0.0
        %662 = vmatpush1.xpose.msra.mxu0 0.0
        %663 = vmatprep.subr.mxu0 0.0
        %664 = vmatpush1.xpose.msra.mxu0 0.0
        %665 = vmatprep.subr.mxu0 0.0
        %666 = vmatpush1.xpose.msra.mxu0 0.0
        %667 = vmatprep.subr.mxu0 0.0
        %668 = vmatpush1.xpose.msra.mxu0 0.0
        %669 = vmatprep.subr.mxu0 0.0
        %670 = vmatpush1.xpose.msra.mxu0 0.0
        %671 = vmatprep.subr.mxu0 0.0
        %672 = vmatpush1.xpose.msra.mxu0 0.0
        %673 = vmatprep.subr.mxu0 0.0
        %674 = vmatpush1.xpose.msra.mxu0 0.0
        %675 = vmatprep.subr.mxu0 0.0
        %676 = vmatpush1.xpose.msra.mxu0 0.0
        %677 = vmatprep.subr.mxu0 0.0
        %678 = vmatpush1.xpose.msra.mxu0 0.0
        %679 = vmatprep.subr.mxu0 0.0
        %680 = vmatpush1.xpose.msra.mxu0 0.0
        %681 = vmatprep.subr.mxu0 0.0
        %682 = vmatpush1.xpose.msra.mxu0 0.0
        %683 = vmatprep.subr.mxu0 0.0
        %684 = vmatpush1.xpose.msra.mxu0 0.0
        %685 = vmatprep.subr.mxu0 0.0
        %686 = vmatpush1.xpose.msra.mxu0 0.0
        %687 = vmatprep.subr.mxu0 0.0
        %688 = vmatpush1.xpose.msra.mxu0 0.0
        %689 = vmatprep.subr.mxu0 0.0
        %690 = vmatpush1.xpose.msra.mxu0 0.0
        %691 = vmatprep.subr.mxu0 0.0
        %692 = vmatpush1.xpose.msra.mxu0 0.0
        %693 = vmatprep.subr.mxu0 0.0
        %694 = vmatpush1.xpose.msra.mxu0 0.0
        %695 = vmatprep.subr.mxu0 0.0
        %696 = vmatpush1.xpose.msra.mxu0 0.0
        %697 = vmatprep.subr.mxu0 0.0
        %698 = vmatpush1.xpose.msra.mxu0 0.0
        %699 = vmatprep.subr.mxu0 0.0
        %700 = vmatpush1.xpose.msra.mxu0 0.0
        %701 = vmatprep.subr.mxu0 0.0
        %702 = vmatpush1.xpose.msra.mxu0 0.0
        %703 = vmatprep.subr.mxu0 0.0
        %704 = vmatpush1.xpose.msra.mxu0 0.0
        %705 = vmatprep.subr.mxu0 0.0
        %706 = vmatpush1.xpose.msra.mxu0 0.0
        %707 = vmatprep.subr.mxu0 0.0
        %708 = vmatpush1.xpose.msra.mxu0 0.0
        %709 = vmatprep.subr.mxu0 0.0
        %710 = vmatpush1.xpose.msra.mxu0 0.0
        %711 = vmatprep.subr.mxu0 0.0
        %712 = vmatpush1.xpose.msra.mxu0 0.0
        %713 = vmatprep.subr.mxu0 0.0
        %714 = vmatpush1.xpose.msra.mxu0 0.0
        %715 = vmatprep.subr.mxu0 0.0
        %716 = vmatpush1.xpose.msra.mxu0 0.0
        %717 = vmatprep.mubr.f32.mxu0 0.0
        %718 = vmatmul.mubr.f32.gmra.mrb[0].mxu0 %v579
        %v719 = vpop.f32.mrb[0].mxu0
        %v720 = vadd.f32 0.0, %v719
        %v721 = vpop.f32.mrb[0].mxu0
        %722 = vdwg.mxu0
        %vm723 = vcmask 64512
        %v724 = vsel %vm723, %v720, -inf
        %725 = vmax.xlane.f32.xlu0 %v724
        %v726 = vpop.xlane.xlu0 %725
        %v727 = vsub.f32 %v720, %v726
        %v728 = vmul.f32 %v727, 1.442695
        %v729 = vpow.pop %v728
        %v730 = vsel %vm723, %v729, 0.0
        %731 = vadd.xlane.f32.xlu0 %v730
        %v732 = vpop.xlane.xlu0 %731
        %v733 = vrcp.pop %v732
        %v734 = vmul.f32 %v729, %v733
        %v736 = vsel %vm723, %v734, 0
        %738 = vmatprep.subr.mxu0 0.0
        %739 = vmatpush1.msra.mxu0 %v650
        %740 = vmatprep.subr.mxu0 0.0
        %741 = vmatpush1.msra.mxu0 0.0
        %742 = vmatprep.subr.mxu0 0.0
        %743 = vmatpush1.msra.mxu0 0.0
        %744 = vmatprep.subr.mxu0 0.0
        %745 = vmatpush1.msra.mxu0 0.0
        %746 = vmatprep.subr.mxu0 0.0
        %747 = vmatpush1.msra.mxu0 0.0
        %748 = vmatprep.subr.mxu0 0.0
        %749 = vmatpush1.msra.mxu0 0.0
        %750 = vmatprep.subr.mxu0 0.0
        %751 = vmatpush1.msra.mxu0 0.0
        %752 = vmatprep.subr.mxu0 0.0
        %753 = vmatpush1.msra.mxu0 0.0
        %754 = vmatprep.subr.mxu0 0.0
        %755 = vmatpush1.msra.mxu0 0.0
        %756 = vmatprep.subr.mxu0 0.0
        %757 = vmatpush1.msra.mxu0 0.0
        %758 = vmatprep.subr.mxu0 0.0
        %759 = vmatpush1.msra.mxu0 0.0
        %760 = vmatprep.subr.mxu0 0.0
        %761 = vmatpush1.msra.mxu0 0.0
        %762 = vmatprep.subr.mxu0 0.0
        %763 = vmatpush1.msra.mxu0 0.0
        %764 = vmatprep.subr.mxu0 0.0
        %765 = vmatpush1.msra.mxu0 0.0
        %766 = vmatprep.subr.mxu0 0.0
        %767 = vmatpush1.msra.mxu0 0.0
        %768 = vmatprep.subr.mxu0 0.0
        %769 = vmatpush1.msra.mxu0 0.0
        %770 = vmatprep.subr.mxu0 0.0
        %771 = vmatpush1.msra.mxu0 0.0
        %772 = vmatprep.subr.mxu0 0.0
        %773 = vmatpush1.msra.mxu0 0.0
        %774 = vmatprep.subr.mxu0 0.0
        %775 = vmatpush1.msra.mxu0 0.0
        %776 = vmatprep.subr.mxu0 0.0
        %777 = vmatpush1.msra.mxu0 0.0
        %778 = vmatprep.subr.mxu0 0.0
        %779 = vmatpush1.msra.mxu0 0.0
        %780 = vmatprep.subr.mxu0 0.0
        %781 = vmatpush1.msra.mxu0 0.0
        %782 = vmatprep.subr.mxu0 0.0
        %783 = vmatpush1.msra.mxu0 0.0
        %784 = vmatprep.subr.mxu0 0.0
        %785 = vmatpush1.msra.mxu0 0.0
        %786 = vmatprep.subr.mxu0 0.0
        %787 = vmatpush1.msra.mxu0 0.0
        %788 = vmatprep.subr.mxu0 0.0
        %789 = vmatpush1.msra.mxu0 0.0
        %790 = vmatprep.subr.mxu0 0.0
        %791 = vmatpush1.msra.mxu0 0.0
        %792 = vmatprep.subr.mxu0 0.0
        %793 = vmatpush1.msra.mxu0 0.0
        %794 = vmatprep.subr.mxu0 0.0
        %795 = vmatpush1.msra.mxu0 0.0
        %796 = vmatprep.subr.mxu0 0.0
        %797 = vmatpush1.msra.mxu0 0.0
        %798 = vmatprep.subr.mxu0 0.0
        %799 = vmatpush1.msra.mxu0 0.0
        %800 = vmatprep.subr.mxu0 0.0
        %801 = vmatpush1.msra.mxu0 0.0
        %802 = vmatprep.mubr.f32.mxu0 0.0
        %803 = vmatmul.mubr.f32.gmra.mrb[0].mxu0 %v736
        %v804 = vpop.f32.mrb[0].mxu0
        %v805 = vadd.f32 0.0, %v804
        %v806 = vpop.f32.mrb[0].mxu0
        %807 = vdwg.mxu0
        %v808 = vld [vmem:[%s4] sm:$0xff]
        %v809 = vld [vmem:[%s4 + $0x8] sm:$0xff]
        %v810 = vld [vmem:[%s4 + $0x10] sm:$0xff]
        %v811 = vld [vmem:[%s4 + $0x18] sm:$0xff]
        %v812 = vld [vmem:[%s4 + $0x20] sm:$0xff]
        %v813 = vld [vmem:[%s4 + $0x28] sm:$0xff]
        %v814 = vld [vmem:[%s4 + $0x30] sm:$0xff]
        %v815 = vld [vmem:[%s4 + $0x38] sm:$0xff]
        %v816 = vld [vmem:[%s4 + $0x40] sm:$0xff]
        %v817 = vld [vmem:[%s4 + $0x48] sm:$0xff]
        %v818 = vld [vmem:[%s4 + $0x50] sm:$0xff]
        %v819 = vld [vmem:[%s4 + $0x58] sm:$0xff]
        %v820 = vld [vmem:[%s4 + $0x60] sm:$0xff]
        %v821 = vld [vmem:[%s4 + $0x68] sm:$0xff]
        %v822 = vld [vmem:[%s4 + $0x70] sm:$0xff]
        %v823 = vld [vmem:[%s4 + $0x78] sm:$0xff]
        %824 = vmatprep.subr.mxu0 0.0
        %825 = vmatpush1.msra.mxu0 %v808
        %826 = vmatprep.subr.mxu0 0.0
        %827 = vmatpush1.msra.mxu0 %v809
        %828 = vmatprep.subr.mxu0 0.0
        %829 = vmatpush1.msra.mxu0 %v810
        %830 = vmatprep.subr.mxu0 0.0
        %831 = vmatpush1.msra.mxu0 %v811
        %832 = vmatprep.subr.mxu0 0.0
        %833 = vmatpush1.msra.mxu0 %v812
        %834 = vmatprep.subr.mxu0 0.0
        %835 = vmatpush1.msra.mxu0 %v813
        %836 = vmatprep.subr.mxu0 0.0
        %837 = vmatpush1.msra.mxu0 %v814
        %838 = vmatprep.subr.mxu0 0.0
        %839 = vmatpush1.msra.mxu0 %v815
        %840 = vmatprep.subr.mxu0 0.0
        %841 = vmatpush1.msra.mxu0 %v816
        %842 = vmatprep.subr.mxu0 0.0
        %843 = vmatpush1.msra.mxu0 %v817
        %844 = vmatprep.subr.mxu0 0.0
        %845 = vmatpush1.msra.mxu0 %v818
        %846 = vmatprep.subr.mxu0 0.0
        %847 = vmatpush1.msra.mxu0 %v819
        %848 = vmatprep.subr.mxu0 0.0
        %849 = vmatpush1.msra.mxu0 %v820
        %850 = vmatprep.subr.mxu0 0.0
        %851 = vmatpush1.msra.mxu0 %v821
        %852 = vmatprep.subr.mxu0 0.0
        %853 = vmatpush1.msra.mxu0 %v822
        %854 = vmatprep.subr.mxu0 0.0
        %855 = vmatpush1.msra.mxu0 %v823
        %856 = vmatprep.subr.mxu0 0.0
        %857 = vmatpush1.msra.mxu0 0.0
        %858 = vmatprep.subr.mxu0 0.0
        %859 = vmatpush1.msra.mxu0 0.0
        %860 = vmatprep.subr.mxu0 0.0
        %861 = vmatpush1.msra.mxu0 0.0
        %862 = vmatprep.subr.mxu0 0.0
        %863 = vmatpush1.msra.mxu0 0.0
        %864 = vmatprep.subr.mxu0 0.0
        %865 = vmatpush1.msra.mxu0 0.0
        %866 = vmatprep.subr.mxu0 0.0
        %867 = vmatpush1.msra.mxu0 0.0
        %868 = vmatprep.subr.mxu0 0.0
        %869 = vmatpush1.msra.mxu0 0.0
        %870 = vmatprep.subr.mxu0 0.0
        %871 = vmatpush1.msra.mxu0 0.0
        %872 = vmatprep.subr.mxu0 0.0
        %873 = vmatpush1.msra.mxu0 0.0
        %874 = vmatprep.subr.mxu0 0.0
        %875 = vmatpush1.msra.mxu0 0.0
        %876 = vmatprep.subr.mxu0 0.0
        %877 = vmatpush1.msra.mxu0 0.0
        %878 = vmatprep.subr.mxu0 0.0
        %879 = vmatpush1.msra.mxu0 0.0
        %880 = vmatprep.subr.mxu0 0.0
        %881 = vmatpush1.msra.mxu0 0.0
        %882 = vmatprep.subr.mxu0 0.0
        %883 = vmatpush1.msra.mxu0 0.0
        %884 = vmatprep.subr.mxu0 0.0
        %885 = vmatpush1.msra.mxu0 0.0
        %886 = vmatprep.subr.mxu0 0.0
        %887 = vmatpush1.msra.mxu0 0.0
        %888 = vmatprep.mubr.f32.mxu0 0.0
        %889 = vmatmul.mubr.f32.gmra.mrb[0].mxu0 %v805
        %v890 = vpop.f32.mrb[0].mxu0
        %v891 = vadd.f32 0.0, %v890
        %v892 = vpop.f32.mrb[0].mxu0
        %893 = vdwg.mxu0
        %v894 = vadd.f32 %v494, %v891
        %v896 = vsel %vm723, %v495, 0
        %898 = vmatprep.subr.mxu0 0.0
        %899 = vmatpush1.msra.mxu0 %v894
        %900 = vmatprep.subr.mxu0 0.0
        %901 = vmatpush1.msra.mxu0 0.0
        %902 = vmatprep.subr.mxu0 0.0
        %903 = vmatpush1.msra.mxu0 0.0
        %904 = vmatprep.subr.mxu0 0.0
        %905 = vmatpush1.msra.mxu0 0.0
        %906 = vmatprep.subr.mxu0 0.0
        %907 = vmatpush1.msra.mxu0 0.0
        %908 = vmatprep.subr.mxu0 0.0
        %909 = vmatpush1.msra.mxu0 0.0
        %910 = vmatprep.subr.mxu0 0.0
        %911 = vmatpush1.msra.mxu0 0.0
        %912 = vmatprep.subr.mxu0 0.0
        %913 = vmatpush1.msra.mxu0 0.0
        %914 = vmatprep.subr.mxu0 0.0
        %915 = vmatpush1.msra.mxu0 0.0
        %916 = vmatprep.subr.mxu0 0.0
        %917 = vmatpush1.msra.mxu0 0.0
        %918 = vmatprep.subr.mxu0 0.0
        %919 = vmatpush1.msra.mxu0 0.0
        %920 = vmatprep.subr.mxu0 0.0
        %921 = vmatpush1.msra.mxu0 0.0
        %922 = vmatprep.subr.mxu0 0.0
        %923 = vmatpush1.msra.mxu0 0.0
        %924 = vmatprep.subr.mxu0 0.0
        %925 = vmatpush1.msra.mxu0 0.0
        %926 = vmatprep.subr.mxu0 0.0
        %927 = vmatpush1.msra.mxu0 0.0
        %928 = vmatprep.subr.mxu0 0.0
        %929 = vmatpush1.msra.mxu0 0.0
        %930 = vmatprep.subr.mxu0 0.0
        %931 = vmatpush1.msra.mxu0 0.0
        %932 = vmatprep.subr.mxu0 0.0
        %933 = vmatpush1.msra.mxu0 0.0
        %934 = vmatprep.subr.mxu0 0.0
        %935 = vmatpush1.msra.mxu0 0.0
        %936 = vmatprep.subr.mxu0 0.0
        %937 = vmatpush1.msra.mxu0 0.0
        %938 = vmatprep.subr.mxu0 0.0
        %939 = vmatpush1.msra.mxu0 0.0
        %940 = vmatprep.subr.mxu0 0.0
        %941 = vmatpush1.msra.mxu0 0.0
        %942 = vmatprep.subr.mxu0 0.0
        %943 = vmatpush1.msra.mxu0 0.0
        %944 = vmatprep.subr.mxu0 0.0
        %945 = vmatpush1.msra.mxu0 0.0
        %946 = vmatprep.subr.mxu0 0.0
        %947 = vmatpush1.msra.mxu0 0.0
        %948 = vmatprep.subr.mxu0 0.0
        %949 = vmatpush1.msra.mxu0 0.0
        %950 = vmatprep.subr.mxu0 0.0
        %951 = vmatpush1.msra.mxu0 0.0
        %952 = vmatprep.subr.mxu0 0.0
        %953 = vmatpush1.msra.mxu0 0.0
        %954 = vmatprep.subr.mxu0 0.0
        %955 = vmatpush1.msra.mxu0 0.0
        %956 = vmatprep.subr.mxu0 0.0
        %957 = vmatpush1.msra.mxu0 0.0
        %958 = vmatprep.subr.mxu0 0.0
        %959 = vmatpush1.msra.mxu0 0.0
        %960 = vmatprep.subr.mxu0 0.0
        %961 = vmatpush1.msra.mxu0 0.0
        %962 = vmatprep.mubr.f32.mxu0 0.0
        %963 = vmatmul.mubr.f32.gmra.mrb[0].mxu0 %v896
        %v964 = vpop.f32.mrb[0].mxu0
        %v965 = vadd.f32 0.0, %v964
        %v966 = vpop.f32.mrb[0].mxu0
        %967 = vdwg.mxu0
        %v968 = vsub.f32 %v894, %v965
        %v969 = vld [vmem:[%s5] sm:$0xff]
        %v970 = vld [vmem:[%s5 + $0x8] sm:$0xff]
        %v971 = vld [vmem:[%s5 + $0x10] sm:$0xff]
        %v972 = vld [vmem:[%s5 + $0x18] sm:$0xff]
        %v974 = vsel %vm508, %v968, 0
        %976 = vmatprep.subr.mxu0 0.0
        %977 = vmatpush1.msra.mxu0 %v969
        %978 = vmatprep.subr.mxu0 0.0
        %979 = vmatpush1.msra.mxu0 %v970
        %980 = vmatprep.subr.mxu0 0.0
        %981 = vmatpush1.msra.mxu0 %v971
        %982 = vmatprep.subr.mxu0 0.0
        %983 = vmatpush1.msra.mxu0 %v972
        %984 = vmatprep.subr.mxu0 0.0
        %985 = vmatpush1.msra.mxu0 0.0
        %986 = vmatprep.subr.mxu0 0.0
        %987 = vmatpush1.msra.mxu0 0.0
        %988 = vmatprep.subr.mxu0 0.0
        %989 = vmatpush1.msra.mxu0 0.0
        %990 = vmatprep.subr.mxu0 0.0
        %991 = vmatpush1.msra.mxu0 0.0
        %992 = vmatprep.subr.mxu0 0.0
        %993 = vmatpush1.msra.mxu0 0.0
        %994 = vmatprep.subr.mxu0 0.0
        %995 = vmatpush1.msra.mxu0 0.0
        %996 = vmatprep.subr.mxu0 0.0
        %997 = vmatpush1.msra.mxu0 0.0
        %998 = vmatprep.subr.mxu0 0.0
        %999 = vmatpush1.msra.mxu0 0.0
        %1000 = vmatprep.subr.mxu0 0.0
        %1001 = vmatpush1.msra.mxu0 0.0
        %1002 = vmatprep.subr.mxu0 0.0
        %1003 = vmatpush1.msra.mxu0 0.0
        %1004 = vmatprep.subr.mxu0 0.0
        %1005 = vmatpush1.msra.mxu0 0.0
        %1006 = vmatprep.subr.mxu0 0.0
        %1007 = vmatpush1.msra.mxu0 0.0
        %1008 = vmatprep.subr.mxu0 0.0
        %1009 = vmatpush1.msra.mxu0 0.0
        %1010 = vmatprep.subr.mxu0 0.0
        %1011 = vmatpush1.msra.mxu0 0.0
        %1012 = vmatprep.subr.mxu0 0.0
        %1013 = vmatpush1.msra.mxu0 0.0
        %1014 = vmatprep.subr.mxu0 0.0
        %1015 = vmatpush1.msra.mxu0 0.0
        %1016 = vmatprep.subr.mxu0 0.0
        %1017 = vmatpush1.msra.mxu0 0.0
        %1018 = vmatprep.subr.mxu0 0.0
        %1019 = vmatpush1.msra.mxu0 0.0
        %1020 = vmatprep.subr.mxu0 0.0
        %1021 = vmatpush1.msra.mxu0 0.0
        %1022 = vmatprep.subr.mxu0 0.0
        %1023 = vmatpush1.msra.mxu0 0.0
        %1024 = vmatprep.subr.mxu0 0.0
        %1025 = vmatpush1.msra.mxu0 0.0
        %1026 = vmatprep.subr.mxu0 0.0
        %1027 = vmatpush1.msra.mxu0 0.0
        %1028 = vmatprep.subr.mxu0 0.0
        %1029 = vmatpush1.msra.mxu0 0.0
        %1030 = vmatprep.subr.mxu0 0.0
        %1031 = vmatpush1.msra.mxu0 0.0
        %1032 = vmatprep.subr.mxu0 0.0
        %1033 = vmatpush1.msra.mxu0 0.0
        %1034 = vmatprep.subr.mxu0 0.0
        %1035 = vmatpush1.msra.mxu0 0.0
        %1036 = vmatprep.subr.mxu0 0.0
        %1037 = vmatpush1.msra.mxu0 0.0
        %1038 = vmatprep.subr.mxu0 0.0
        %1039 = vmatpush1.msra.mxu0 0.0
        %1040 = vmatprep.mubr.f32.mxu0 0.0
        %1041 = vmatmul.mubr.f32.gmra.mrb[0].mxu0 %v974
        %v1042 = vpop.f32.mrb[0].mxu0
        %v1043 = vadd.f32 0.0, %v1042
        %v1044 = vpop.f32.mrb[0].mxu0
        %1045 = vdwg.mxu0
        %v1046 = vld [vmem:[%s493] sm:$0xff]
        %v1047 = vld [vmem:[%s493 + $0x8] sm:$0xff]
        %v1048 = vld [vmem:[%s6] sm:$0xff]
        %v1049 = vld [vmem:[%s6 + $0x8] sm:$0xff]
        %v1050 = vld [vmem:[%s6 + $0x10] sm:$0xff]
        %v1051 = vld [vmem:[%s6 + $0x18] sm:$0xff]
        %v1052 = vld [vmem:[%s6 + $0x20] sm:$0xff]
        %v1053 = vld [vmem:[%s6 + $0x28] sm:$0xff]
        %v1054 = vld [vmem:[%s6 + $0x30] sm:$0xff]
        %v1055 = vld [vmem:[%s6 + $0x38] sm:$0xff]
        %v1057 = vsel %vm508, %v1046, 0
        %v1060 = vsel %vm508, %v1047, 0
        %1062 = vmatprep.subr.mxu0 %v1049
        %1063 = vmatpush1.msra.mxu0 %v1048
        %1064 = vmatprep.subr.mxu0 %v1051
        %1065 = vmatpush1.msra.mxu0 %v1050
        %1066 = vmatprep.subr.mxu0 %v1053
        %1067 = vmatpush1.msra.mxu0 %v1052
        %1068 = vmatprep.subr.mxu0 %v1055
        %1069 = vmatpush1.msra.mxu0 %v1054
        %1070 = vmatprep.subr.mxu0 0.0
        %1071 = vmatpush1.msra.mxu0 0.0
        %1072 = vmatprep.subr.mxu0 0.0
        %1073 = vmatpush1.msra.mxu0 0.0
        %1074 = vmatprep.subr.mxu0 0.0
        %1075 = vmatpush1.msra.mxu0 0.0
        %1076 = vmatprep.subr.mxu0 0.0
        %1077 = vmatpush1.msra.mxu0 0.0
        %1078 = vmatprep.subr.mxu0 0.0
        %1079 = vmatpush1.msra.mxu0 0.0
        %1080 = vmatprep.subr.mxu0 0.0
        %1081 = vmatpush1.msra.mxu0 0.0
        %1082 = vmatprep.subr.mxu0 0.0
        %1083 = vmatpush1.msra.mxu0 0.0
        %1084 = vmatprep.subr.mxu0 0.0
        %1085 = vmatpush1.msra.mxu0 0.0
        %1086 = vmatprep.subr.mxu0 0.0
        %1087 = vmatpush1.msra.mxu0 0.0
        %1088 = vmatprep.subr.mxu0 0.0
        %1089 = vmatpush1.msra.mxu0 0.0
        %1090 = vmatprep.subr.mxu0 0.0
        %1091 = vmatpush1.msra.mxu0 0.0
        %1092 = vmatprep.subr.mxu0 0.0
        %1093 = vmatpush1.msra.mxu0 0.0
        %1094 = vmatprep.subr.mxu0 0.0
        %1095 = vmatpush1.msra.mxu0 0.0
        %1096 = vmatprep.subr.mxu0 0.0
        %1097 = vmatpush1.msra.mxu0 0.0
        %1098 = vmatprep.subr.mxu0 0.0
        %1099 = vmatpush1.msra.mxu0 0.0
        %1100 = vmatprep.subr.mxu0 0.0
        %1101 = vmatpush1.msra.mxu0 0.0
        %1102 = vmatprep.subr.mxu0 0.0
        %1103 = vmatpush1.msra.mxu0 0.0
        %1104 = vmatprep.subr.mxu0 0.0
        %1105 = vmatpush1.msra.mxu0 0.0
        %1106 = vmatprep.subr.mxu0 0.0
        %1107 = vmatpush1.msra.mxu0 0.0
        %1108 = vmatprep.subr.mxu0 0.0
        %1109 = vmatpush1.msra.mxu0 0.0
        %1110 = vmatprep.subr.mxu0 0.0
        %1111 = vmatpush1.msra.mxu0 0.0
        %1112 = vmatprep.subr.mxu0 0.0
        %1113 = vmatpush1.msra.mxu0 0.0
        %1114 = vmatprep.subr.mxu0 0.0
        %1115 = vmatpush1.msra.mxu0 0.0
        %1116 = vmatprep.subr.mxu0 0.0
        %1117 = vmatpush1.msra.mxu0 0.0
        %1118 = vmatprep.subr.mxu0 0.0
        %1119 = vmatpush1.msra.mxu0 0.0
        %1120 = vmatprep.subr.mxu0 0.0
        %1121 = vmatpush1.msra.mxu0 0.0
        %1122 = vmatprep.subr.mxu0 0.0
        %1123 = vmatpush1.msra.mxu0 0.0
        %1124 = vmatprep.subr.mxu0 0.0
        %1125 = vmatpush1.msra.mxu0 0.0
        %1126 = vmatprep.mubr.f32.mxu0 0.0
        %1127 = vmatmul.mubr.f32.gmra.mrb[0].mxu0 %v1057
        %v1128 = vpop.f32.mrb[0].mxu0
        %v1129 = vadd.f32 0.0, %v1128
        %v1130 = vpop.f32.mrb[0].mxu0
        %v1131 = vadd.f32 0.0, %v1130
        %1132 = vmatprep.mubr.f32.mxu0 0.0
        %1133 = vmatmul.mubr.f32.gmra.mrb[0].mxu0 %v1060
        %v1134 = vpop.f32.mrb[0].mxu0
        %v1135 = vadd.f32 0.0, %v1134
        %v1136 = vpop.f32.mrb[0].mxu0
        %v1137 = vadd.f32 0.0, %v1136
        %1138 = vdwg.mxu0
        %1139 = vmatprep.subr.mxu0 0.0
        %1140 = vmatpush1.xpose.msra.mxu0 %v1129
        %1141 = vmatprep.subr.mxu0 0.0
        %1142 = vmatpush1.xpose.msra.mxu0 %v1135
        %1143 = vmatprep.subr.mxu0 0.0
        %1144 = vmatpush1.xpose.msra.mxu0 0.0
        %1145 = vmatprep.subr.mxu0 0.0
        %1146 = vmatpush1.xpose.msra.mxu0 0.0
        %1147 = vmatprep.subr.mxu0 0.0
        %1148 = vmatpush1.xpose.msra.mxu0 0.0
        %1149 = vmatprep.subr.mxu0 0.0
        %1150 = vmatpush1.xpose.msra.mxu0 0.0
        %1151 = vmatprep.subr.mxu0 0.0
        %1152 = vmatpush1.xpose.msra.mxu0 0.0
        %1153 = vmatprep.subr.mxu0 0.0
        %1154 = vmatpush1.xpose.msra.mxu0 0.0
        %1155 = vmatprep.subr.mxu0 0.0
        %1156 = vmatpush1.xpose.msra.mxu0 0.0
        %1157 = vmatprep.subr.mxu0 0.0
        %1158 = vmatpush1.xpose.msra.mxu0 0.0
        %1159 = vmatprep.subr.mxu0 0.0
        %1160 = vmatpush1.xpose.msra.mxu0 0.0
        %1161 = vmatprep.subr.mxu0 0.0
        %1162 = vmatpush1.xpose.msra.mxu0 0.0
        %1163 = vmatprep.subr.mxu0 0.0
        %1164 = vmatpush1.xpose.msra.mxu0 0.0
        %1165 = vmatprep.subr.mxu0 0.0
        %1166 = vmatpush1.xpose.msra.mxu0 0.0
        %1167 = vmatprep.subr.mxu0 0.0
        %1168 = vmatpush1.xpose.msra.mxu0 0.0
        %1169 = vmatprep.subr.mxu0 0.0
        %1170 = vmatpush1.xpose.msra.mxu0 0.0
        %1171 = vmatprep.subr.mxu0 0.0
        %1172 = vmatpush1.xpose.msra.mxu0 0.0
        %1173 = vmatprep.subr.mxu0 0.0
        %1174 = vmatpush1.xpose.msra.mxu0 0.0
        %1175 = vmatprep.subr.mxu0 0.0
        %1176 = vmatpush1.xpose.msra.mxu0 0.0
        %1177 = vmatprep.subr.mxu0 0.0
        %1178 = vmatpush1.xpose.msra.mxu0 0.0
        %1179 = vmatprep.subr.mxu0 0.0
        %1180 = vmatpush1.xpose.msra.mxu0 0.0
        %1181 = vmatprep.subr.mxu0 0.0
        %1182 = vmatpush1.xpose.msra.mxu0 0.0
        %1183 = vmatprep.subr.mxu0 0.0
        %1184 = vmatpush1.xpose.msra.mxu0 0.0
        %1185 = vmatprep.subr.mxu0 0.0
        %1186 = vmatpush1.xpose.msra.mxu0 0.0
        %1187 = vmatprep.subr.mxu0 0.0
        %1188 = vmatpush1.xpose.msra.mxu0 0.0
        %1189 = vmatprep.subr.mxu0 0.0
        %1190 = vmatpush1.xpose.msra.mxu0 0.0
        %1191 = vmatprep.subr.mxu0 0.0
        %1192 = vmatpush1.xpose.msra.mxu0 0.0
        %1193 = vmatprep.subr.mxu0 0.0
        %1194 = vmatpush1.xpose.msra.mxu0 0.0
        %1195 = vmatprep.subr.mxu0 0.0
        %1196 = vmatpush1.xpose.msra.mxu0 0.0
        %1197 = vmatprep.subr.mxu0 0.0
        %1198 = vmatpush1.xpose.msra.mxu0 0.0
        %1199 = vmatprep.subr.mxu0 0.0
        %1200 = vmatpush1.xpose.msra.mxu0 0.0
        %1201 = vmatprep.subr.mxu0 0.0
        %1202 = vmatpush1.xpose.msra.mxu0 0.0
        %1203 = vmatprep.mubr.f32.mxu0 0.0
        %1204 = vmatmul.mubr.f32.gmra.mrb[0].mxu0 %v1043
        %v1205 = vpop.f32.mrb[0].mxu0
        %v1206 = vadd.f32 0.0, %v1205
        %v1207 = vpop.f32.mrb[0].mxu0
        %1208 = vdwg.mxu0
        %vm1209 = vcmask 130048
        %v1210 = vsel %vm1209, %v1206, -inf
        %1211 = vmax.xlane.f32.xlu0 %v1210
        %v1212 = vpop.xlane.xlu0 %1211
        %v1213 = vsub.f32 %v1206, %v1212
        %v1214 = vmul.f32 %v1213, 1.442695
        %v1215 = vpow.pop %v1214
        %v1216 = vsel %vm1209, %v1215, 0.0
        %1217 = vadd.xlane.f32.xlu0 %v1216
        %v1218 = vpop.xlane.xlu0 %1217
        %v1219 = vrcp.pop %v1218
        %v1220 = vmul.f32 %v1215, %v1219
        %v1222 = vsel %vm1209, %v1220, 0
        %1224 = vmatprep.subr.mxu0 0.0
        %1225 = vmatpush1.msra.mxu0 %v1131
        %1226 = vmatprep.subr.mxu0 0.0
        %1227 = vmatpush1.msra.mxu0 %v1137
        %1228 = vmatprep.subr.mxu0 0.0
        %1229 = vmatpush1.msra.mxu0 0.0
        %1230 = vmatprep.subr.mxu0 0.0
        %1231 = vmatpush1.msra.mxu0 0.0
        %1232 = vmatprep.subr.mxu0 0.0
        %1233 = vmatpush1.msra.mxu0 0.0
        %1234 = vmatprep.subr.mxu0 0.0
        %1235 = vmatpush1.msra.mxu0 0.0
        %1236 = vmatprep.subr.mxu0 0.0
        %1237 = vmatpush1.msra.mxu0 0.0
        %1238 = vmatprep.subr.mxu0 0.0
        %1239 = vmatpush1.msra.mxu0 0.0
        %1240 = vmatprep.subr.mxu0 0.0
        %1241 = vmatpush1.msra.mxu0 0.0
        %1242 = vmatprep.subr.mxu0 0.0
        %1243 = vmatpush1.msra.mxu0 0.0
        %1244 = vmatprep.subr.mxu0 0.0
        %1245 = vmatpush1.msra.mxu0 0.0
        %1246 = vmatprep.subr.mxu0 0.0
        %1247 = vmatpush1.msra.mxu0 0.0
        %1248 = vmatprep.subr.mxu0 0.0
        %1249 = vmatpush1.msra.mxu0 0.0
        %1250 = vmatprep.subr.mxu0 0.0
        %1251 = vmatpush1.msra.mxu0 0.0
        %1252 = vmatprep.subr.mxu0 0.0
        %1253 = vmatpush1.msra.mxu0 0.0
        %1254 = vmatprep.subr.mxu0 0.0
        %1255 = vmatpush1.msra.mxu0 0.0
        %1256 = vmatprep.subr.mxu0 0.0
        %1257 = vmatpush1.msra.mxu0 0.0
        %1258 = vmatprep.subr.mxu0 0.0
        %1259 = vmatpush1.msra.mxu0 0.0
        %1260 = vmatprep.subr.mxu0 0.0
        %1261 = vmatpush1.msra.mxu0 0.0
        %1262 = vmatprep.subr.mxu0 0.0
        %1263 = vmatpush1.msra.mxu0 0.0
        %1264 = vmatprep.subr.mxu0 0.0
        %1265 = vmatpush1.msra.mxu0 0.0
        %1266 = vmatprep.subr.mxu0 0.0
        %1267 = vmatpush1.msra.mxu0 0.0
        %1268 = vmatprep.subr.mxu0 0.0
        %1269 = vmatpush1.msra.mxu0 0.0
        %1270 = vmatprep.subr.mxu0 0.0
        %1271 = vmatpush1.msra.mxu0 0.0
        %1272 = vmatprep.subr.mxu0 0.0
        %1273 = vmatpush1.msra.mxu0 0.0
        %1274 = vmatprep.subr.mxu0 0.0
        %1275 = vmatpush1.msra.mxu0 0.0
        %1276 = vmatprep.subr.mxu0 0.0
        %1277 = vmatpush1.msra.mxu0 0.0
        %1278 = vmatprep.subr.mxu0 0.0
        %1279 = vmatpush1.msra.mxu0 0.0
        %1280 = vmatprep.subr.mxu0 0.0
        %1281 = vmatpush1.msra.mxu0 0.0
        %1282 = vmatprep.subr.mxu0 0.0
        %1283 = vmatpush1.msra.mxu0 0.0
        %1284 = vmatprep.subr.mxu0 0.0
        %1285 = vmatpush1.msra.mxu0 0.0
        %1286 = vmatprep.subr.mxu0 0.0
        %1287 = vmatpush1.msra.mxu0 0.0
        %1288 = vmatprep.mubr.f32.mxu0 0.0
        %1289 = vmatmul.mubr.f32.gmra.mrb[0].mxu0 %v1222
        %v1290 = vpop.f32.mrb[0].mxu0
        %v1291 = vadd.f32 0.0, %v1290
        %v1292 = vpop.f32.mrb[0].mxu0
        %1293 = vdwg.mxu0
        %v1294 = vld [vmem:[%s7] sm:$0xff]
        %v1295 = vld [vmem:[%s7 + $0x8] sm:$0xff]
        %v1296 = vld [vmem:[%s7 + $0x10] sm:$0xff]
        %v1297 = vld [vmem:[%s7 + $0x18] sm:$0xff]
        %v1298 = vld [vmem:[%s7 + $0x20] sm:$0xff]
        %v1299 = vld [vmem:[%s7 + $0x28] sm:$0xff]
        %v1300 = vld [vmem:[%s7 + $0x30] sm:$0xff]
        %v1301 = vld [vmem:[%s7 + $0x38] sm:$0xff]
        %v1302 = vld [vmem:[%s7 + $0x40] sm:$0xff]
        %v1303 = vld [vmem:[%s7 + $0x48] sm:$0xff]
        %v1304 = vld [vmem:[%s7 + $0x50] sm:$0xff]
        %v1305 = vld [vmem:[%s7 + $0x58] sm:$0xff]
        %v1306 = vld [vmem:[%s7 + $0x60] sm:$0xff]
        %v1307 = vld [vmem:[%s7 + $0x68] sm:$0xff]
        %v1308 = vld [vmem:[%s7 + $0x70] sm:$0xff]
        %v1309 = vld [vmem:[%s7 + $0x78] sm:$0xff]
        %1310 = vmatprep.subr.mxu0 0.0
        %1311 = vmatpush1.msra.mxu0 %v1294
        %1312 = vmatprep.subr.mxu0 0.0
        %1313 = vmatpush1.msra.mxu0 %v1295
        %1314 = vmatprep.subr.mxu0 0.0
        %1315 = vmatpush1.msra.mxu0 %v1296
        %1316 = vmatprep.subr.mxu0 0.0
        %1317 = vmatpush1.msra.mxu0 %v1297
        %1318 = vmatprep.subr.mxu0 0.0
        %1319 = vmatpush1.msra.mxu0 %v1298
        %1320 = vmatprep.subr.mxu0 0.0
        %1321 = vmatpush1.msra.mxu0 %v1299
        %1322 = vmatprep.subr.mxu0 0.0
        %1323 = vmatpush1.msra.mxu0 %v1300
        %1324 = vmatprep.subr.mxu0 0.0
        %1325 = vmatpush1.msra.mxu0 %v1301
        %1326 = vmatprep.subr.mxu0 0.0
        %1327 = vmatpush1.msra.mxu0 %v1302
        %1328 = vmatprep.subr.mxu0 0.0
        %1329 = vmatpush1.msra.mxu0 %v1303
        %1330 = vmatprep.subr.mxu0 0.0
        %1331 = vmatpush1.msra.mxu0 %v1304
        %1332 = vmatprep.subr.mxu0 0.0
        %1333 = vmatpush1.msra.mxu0 %v1305
        %1334 = vmatprep.subr.mxu0 0.0
        %1335 = vmatpush1.msra.mxu0 %v1306
        %1336 = vmatprep.subr.mxu0 0.0
        %1337 = vmatpush1.msra.mxu0 %v1307
        %1338 = vmatprep.subr.mxu0 0.0
        %1339 = vmatpush1.msra.mxu0 %v1308
        %1340 = vmatprep.subr.mxu0 0.0
        %1341 = vmatpush1.msra.mxu0 %v1309
        %1342 = vmatprep.subr.mxu0 0.0
        %1343 = vmatpush1.msra.mxu0 0.0
        %1344 = vmatprep.subr.mxu0 0.0
        %1345 = vmatpush1.msra.mxu0 0.0
        %1346 = vmatprep.subr.mxu0 0.0
        %1347 = vmatpush1.msra.mxu0 0.0
        %1348 = vmatprep.subr.mxu0 0.0
        %1349 = vmatpush1.msra.mxu0 0.0
        %1350 = vmatprep.subr.mxu0 0.0
        %1351 = vmatpush1.msra.mxu0 0.0
        %1352 = vmatprep.subr.mxu0 0.0
        %1353 = vmatpush1.msra.mxu0 0.0
        %1354 = vmatprep.subr.mxu0 0.0
        %1355 = vmatpush1.msra.mxu0 0.0
        %1356 = vmatprep.subr.mxu0 0.0
        %1357 = vmatpush1.msra.mxu0 0.0
        %1358 = vmatprep.subr.mxu0 0.0
        %1359 = vmatpush1.msra.mxu0 0.0
        %1360 = vmatprep.subr.mxu0 0.0
        %1361 = vmatpush1.msra.mxu0 0.0
        %1362 = vmatprep.subr.mxu0 0.0
        %1363 = vmatpush1.msra.mxu0 0.0
        %1364 = vmatprep.subr.mxu0 0.0
        %1365 = vmatpush1.msra.mxu0 0.0
        %1366 = vmatprep.subr.mxu0 0.0
        %1367 = vmatpush1.msra.mxu0 0.0
        %1368 = vmatprep.subr.mxu0 0.0
        %1369 = vmatpush1.msra.mxu0 0.0
        %1370 = vmatprep.subr.mxu0 0.0
        %1371 = vmatpush1.msra.mxu0 0.0
        %1372 = vmatprep.subr.mxu0 0.0
        %1373 = vmatpush1.msra.mxu0 0.0
        %1374 = vmatprep.mubr.f32.mxu0 0.0
        %1375 = vmatmul.mubr.f32.gmra.mrb[0].mxu0 %v1291
        %v1376 = vpop.f32.mrb[0].mxu0
        %v1377 = vadd.f32 0.0, %v1376
        %v1378 = vpop.f32.mrb[0].mxu0
        %1379 = vdwg.mxu0
        %v1380 = vadd.f32 %v968, %v1377
        %1381 = vmatprep.subr.mxu0 0.0
        %1382 = vmatpush1.msra.mxu0 %v1380
        %1383 = vmatprep.subr.mxu0 0.0
        %1384 = vmatpush1.msra.mxu0 0.0
        %1385 = vmatprep.subr.mxu0 0.0
        %1386 = vmatpush1.msra.mxu0 0.0
        %1387 = vmatprep.subr.mxu0 0.0
        %1388 = vmatpush1.msra.mxu0 0.0
        %1389 = vmatprep.subr.mxu0 0.0
        %1390 = vmatpush1.msra.mxu0 0.0
        %1391 = vmatprep.subr.mxu0 0.0
        %1392 = vmatpush1.msra.mxu0 0.0
        %1393 = vmatprep.subr.mxu0 0.0
        %1394 = vmatpush1.msra.mxu0 0.0
        %1395 = vmatprep.subr.mxu0 0.0
        %1396 = vmatpush1.msra.mxu0 0.0
        %1397 = vmatprep.subr.mxu0 0.0
        %1398 = vmatpush1.msra.mxu0 0.0
        %1399 = vmatprep.subr.mxu0 0.0
        %1400 = vmatpush1.msra.mxu0 0.0
        %1401 = vmatprep.subr.mxu0 0.0
        %1402 = vmatpush1.msra.mxu0 0.0
        %1403 = vmatprep.subr.mxu0 0.0
        %1404 = vmatpush1.msra.mxu0 0.0
        %1405 = vmatprep.subr.mxu0 0.0
        %1406 = vmatpush1.msra.mxu0 0.0
        %1407 = vmatprep.subr.mxu0 0.0
        %1408 = vmatpush1.msra.mxu0 0.0
        %1409 = vmatprep.subr.mxu0 0.0
        %1410 = vmatpush1.msra.mxu0 0.0
        %1411 = vmatprep.subr.mxu0 0.0
        %1412 = vmatpush1.msra.mxu0 0.0
        %1413 = vmatprep.subr.mxu0 0.0
        %1414 = vmatpush1.msra.mxu0 0.0
        %1415 = vmatprep.subr.mxu0 0.0
        %1416 = vmatpush1.msra.mxu0 0.0
        %1417 = vmatprep.subr.mxu0 0.0
        %1418 = vmatpush1.msra.mxu0 0.0
        %1419 = vmatprep.subr.mxu0 0.0
        %1420 = vmatpush1.msra.mxu0 0.0
        %1421 = vmatprep.subr.mxu0 0.0
        %1422 = vmatpush1.msra.mxu0 0.0
        %1423 = vmatprep.subr.mxu0 0.0
        %1424 = vmatpush1.msra.mxu0 0.0
        %1425 = vmatprep.subr.mxu0 0.0
        %1426 = vmatpush1.msra.mxu0 0.0
        %1427 = vmatprep.subr.mxu0 0.0
        %1428 = vmatpush1.msra.mxu0 0.0
        %1429 = vmatprep.subr.mxu0 0.0
        %1430 = vmatpush1.msra.mxu0 0.0
        %1431 = vmatprep.subr.mxu0 0.0
        %1432 = vmatpush1.msra.mxu0 0.0
        %1433 = vmatprep.subr.mxu0 0.0
        %1434 = vmatpush1.msra.mxu0 0.0
        %1435 = vmatprep.subr.mxu0 0.0
        %1436 = vmatpush1.msra.mxu0 0.0
        %1437 = vmatprep.subr.mxu0 0.0
        %1438 = vmatpush1.msra.mxu0 0.0
        %1439 = vmatprep.subr.mxu0 0.0
        %1440 = vmatpush1.msra.mxu0 0.0
        %1441 = vmatprep.subr.mxu0 0.0
        %1442 = vmatpush1.msra.mxu0 0.0
        %1443 = vmatprep.subr.mxu0 0.0
        %1444 = vmatpush1.msra.mxu0 0.0
        %1445 = vmatprep.mubr.f32.mxu0 0.0
        %1446 = vmatmul.mubr.f32.gmra.mrb[0].mxu0 %v896
        %v1447 = vpop.f32.mrb[0].mxu0
        %v1448 = vadd.f32 0.0, %v1447
        %v1449 = vpop.f32.mrb[0].mxu0
        %1450 = vdwg.mxu0
        %v1451 = vsub.f32 %v1380, %v1448
        %v1452 = vadd.f32 %v965, %v1448
        %v1453 = vld [vmem:[%s8] sm:$0xff]
        %v1454 = vld [vmem:[%s8 + $0x8] sm:$0xff]
        %v1455 = vld [vmem:[%s8 + $0x10] sm:$0xff]
        %v1456 = vld [vmem:[%s8 + $0x18] sm:$0xff]
        %v1458 = vsel %vm508, %v1451, 0
        %1460 = vmatprep.subr.mxu0 0.0
        %1461 = vmatpush1.msra.mxu0 %v1453
        %1462 = vmatprep.subr.mxu0 0.0
        %1463 = vmatpush1.msra.mxu0 %v1454
        %1464 = vmatprep.subr.mxu0 0.0
        %1465 = vmatpush1.msra.mxu0 %v1455
        %1466 = vmatprep.subr.mxu0 0.0
        %1467 = vmatpush1.msra.mxu0 %v1456
        %1468 = vmatprep.subr.mxu0 0.0
        %1469 = vmatpush1.msra.mxu0 0.0
        %1470 = vmatprep.subr.mxu0 0.0
        %1471 = vmatpush1.msra.mxu0 0.0
        %1472 = vmatprep.subr.mxu0 0.0
        %1473 = vmatpush1.msra.mxu0 0.0
        %1474 = vmatprep.subr.mxu0 0.0
        %1475 = vmatpush1.msra.mxu0 0.0
        %1476 = vmatprep.subr.mxu0 0.0
        %1477 = vmatpush1.msra.mxu0 0.0
        %1478 = vmatprep.subr.mxu0 0.0
        %1479 = vmatpush1.msra.mxu0 0.0
        %1480 = vmatprep.subr.mxu0 0.0
        %1481 = vmatpush1.msra.mxu0 0.0
        %1482 = vmatprep.subr.mxu0 0.0
        %1483 = vmatpush1.msra.mxu0 0.0
        %1484 = vmatprep.subr.mxu0 0.0
        %1485 = vmatpush1.msra.mxu0 0.0
        %1486 = vmatprep.subr.mxu0 0.0
        %1487 = vmatpush1.msra.mxu0 0.0
        %1488 = vmatprep.subr.mxu0 0.0
        %1489 = vmatpush1.msra.mxu0 0.0
        %1490 = vmatprep.subr.mxu0 0.0
        %1491 = vmatpush1.msra.mxu0 0.0
        %1492 = vmatprep.subr.mxu0 0.0
        %1493 = vmatpush1.msra.mxu0 0.0
        %1494 = vmatprep.subr.mxu0 0.0
        %1495 = vmatpush1.msra.mxu0 0.0
        %1496 = vmatprep.subr.mxu0 0.0
        %1497 = vmatpush1.msra.mxu0 0.0
        %1498 = vmatprep.subr.mxu0 0.0
        %1499 = vmatpush1.msra.mxu0 0.0
        %1500 = vmatprep.subr.mxu0 0.0
        %1501 = vmatpush1.msra.mxu0 0.0
        %1502 = vmatprep.subr.mxu0 0.0
        %1503 = vmatpush1.msra.mxu0 0.0
        %1504 = vmatprep.subr.mxu0 0.0
        %1505 = vmatpush1.msra.mxu0 0.0
        %1506 = vmatprep.subr.mxu0 0.0
        %1507 = vmatpush1.msra.mxu0 0.0
        %1508 = vmatprep.subr.mxu0 0.0
        %1509 = vmatpush1.msra.mxu0 0.0
        %1510 = vmatprep.subr.mxu0 0.0
        %1511 = vmatpush1.msra.mxu0 0.0
        %1512 = vmatprep.subr.mxu0 0.0
        %1513 = vmatpush1.msra.mxu0 0.0
        %1514 = vmatprep.subr.mxu0 0.0
        %1515 = vmatpush1.msra.mxu0 0.0
        %1516 = vmatprep.subr.mxu0 0.0
        %1517 = vmatpush1.msra.mxu0 0.0
        %1518 = vmatprep.subr.mxu0 0.0
        %1519 = vmatpush1.msra.mxu0 0.0
        %1520 = vmatprep.subr.mxu0 0.0
        %1521 = vmatpush1.msra.mxu0 0.0
        %1522 = vmatprep.subr.mxu0 0.0
        %1523 = vmatpush1.msra.mxu0 0.0
        %1524 = vmatprep.mubr.f32.mxu0 0.0
        %1525 = vmatmul.mubr.f32.gmra.mrb[0].mxu0 %v1458
        %v1526 = vpop.f32.mrb[0].mxu0
        %v1527 = vadd.f32 0.0, %v1526
        %v1528 = vpop.f32.mrb[0].mxu0
        %1529 = vdwg.mxu0
        %v1530 = vmax.f32 %v1527, 0.0
        %v1531 = vld [vmem:[%s9] sm:$0xff]
        %v1532 = vld [vmem:[%s9 + $0x8] sm:$0xff]
        %v1533 = vld [vmem:[%s9 + $0x10] sm:$0xff]
        %v1534 = vld [vmem:[%s9 + $0x18] sm:$0xff]
        %v1535 = vld [vmem:[%s9 + $0x20] sm:$0xff]
        %v1536 = vld [vmem:[%s9 + $0x28] sm:$0xff]
        %v1537 = vld [vmem:[%s9 + $0x30] sm:$0xff]
        %v1538 = vld [vmem:[%s9 + $0x38] sm:$0xff]
        %v1539 = vld [vmem:[%s9 + $0x40] sm:$0xff]
        %v1540 = vld [vmem:[%s9 + $0x48] sm:$0xff]
        %v1541 = vld [vmem:[%s9 + $0x50] sm:$0xff]
        %v1542 = vld [vmem:[%s9 + $0x58] sm:$0xff]
        %v1543 = vld [vmem:[%s9 + $0x60] sm:$0xff]
        %v1544 = vld [vmem:[%s9 + $0x68] sm:$0xff]
        %v1545 = vld [vmem:[%s9 + $0x70] sm:$0xff]
        %v1546 = vld [vmem:[%s9 + $0x78] sm:$0xff]
        %1547 = vmatprep.subr.mxu0 0.0
        %1548 = vmatpush1.msra.mxu0 %v1531
        %1549 = vmatprep.subr.mxu0 0.0
        %1550 = vmatpush1.msra.mxu0 %v1532
        %1551 = vmatprep.subr.mxu0 0.0
        %1552 = vmatpush1.msra.mxu0 %v1533
        %1553 = vmatprep.subr.mxu0 0.0
        %1554 = vmatpush1.msra.mxu0 %v1534
        %1555 = vmatprep.subr.mxu0 0.0
        %1556 = vmatpush1.msra.mxu0 %v1535
        %1557 = vmatprep.subr.mxu0 0.0
        %1558 = vmatpush1.msra.mxu0 %v1536
        %1559 = vmatprep.subr.mxu0 0.0
        %1560 = vmatpush1.msra.mxu0 %v1537
        %1561 = vmatprep.subr.mxu0 0.0
        %1562 = vmatpush1.msra.mxu0 %v1538
        %1563 = vmatprep.subr.mxu0 0.0
        %1564 = vmatpush1.msra.mxu0 %v1539
        %1565 = vmatprep.subr.mxu0 0.0
        %1566 = vmatpush1.msra.mxu0 %v1540
        %1567 = vmatprep.subr.mxu0 0.0
        %1568 = vmatpush1.msra.mxu0 %v1541
        %1569 = vmatprep.subr.mxu0 0.0
        %1570 = vmatpush1.msra.mxu0 %v1542
        %1571 = vmatprep.subr.mxu0 0.0
        %1572 = vmatpush1.msra.mxu0 %v1543
        %1573 = vmatprep.subr.mxu0 0.0
        %1574 = vmatpush1.msra.mxu0 %v1544
        %1575 = vmatprep.subr.mxu0 0.0
        %1576 = vmatpush1.msra.mxu0 %v1545
        %1577 = vmatprep.subr.mxu0 0.0
        %1578 = vmatpush1.msra.mxu0 %v1546
        %1579 = vmatprep.subr.mxu0 0.0
        %1580 = vmatpush1.msra.mxu0 0.0
        %1581 = vmatprep.subr.mxu0 0.0
        %1582 = vmatpush1.msra.mxu0 0.0
        %1583 = vmatprep.subr.mxu0 0.0
        %1584 = vmatpush1.msra.mxu0 0.0
        %1585 = vmatprep.subr.mxu0 0.0
        %1586 = vmatpush1.msra.mxu0 0.0
        %1587 = vmatprep.subr.mxu0 0.0
        %1588 = vmatpush1.msra.mxu0 0.0
        %1589 = vmatprep.subr.mxu0 0.0
        %1590 = vmatpush1.msra.mxu0 0.0
        %1591 = vmatprep.subr.mxu0 0.0
        %1592 = vmatpush1.msra.mxu0 0.0
        %1593 = vmatprep.subr.mxu0 0.0
        %1594 = vmatpush1.msra.mxu0 0.0
        %1595 = vmatprep.subr.mxu0 0.0
        %1596 = vmatpush1.msra.mxu0 0.0
        %1597 = vmatprep.subr.mxu0 0.0
        %1598 = vmatpush1.msra.mxu0 0.0
        %1599 = vmatprep.subr.mxu0 0.0
        %1600 = vmatpush1.msra.mxu0 0.0
        %1601 = vmatprep.subr.mxu0 0.0
        %1602 = vmatpush1.msra.mxu0 0.0
        %1603 = vmatprep.subr.mxu0 0.0
        %1604 = vmatpush1.msra.mxu0 0.0
        %1605 = vmatprep.subr.mxu0 0.0
        %1606 = vmatpush1.msra.mxu0 0.0
        %1607 = vmatprep.subr.mxu0 0.0
        %1608 = vmatpush1.msra.mxu0 0.0
        %1609 = vmatprep.subr.mxu0 0.0
        %1610 = vmatpush1.msra.mxu0 0.0
        %1611 = vmatprep.mubr.f32.mxu0 0.0
        %1612 = vmatmul.mubr.f32.gmra.mrb[0].mxu0 %v1530
        %v1613 = vpop.f32.mrb[0].mxu0
        %v1614 = vadd.f32 0.0, %v1613
        %v1615 = vpop.f32.mrb[0].mxu0
        %1616 = vdwg.mxu0
        %v1617 = vadd.f32 %v1451, %v1614
        %1618 = vmatprep.subr.mxu0 0.0
        %1619 = vmatpush1.msra.mxu0 %v1617
        %1620 = vmatprep.subr.mxu0 0.0
        %1621 = vmatpush1.msra.mxu0 0.0
        %1622 = vmatprep.subr.mxu0 0.0
        %1623 = vmatpush1.msra.mxu0 0.0
        %1624 = vmatprep.subr.mxu0 0.0
        %1625 = vmatpush1.msra.mxu0 0.0
        %1626 = vmatprep.subr.mxu0 0.0
        %1627 = vmatpush1.msra.mxu0 0.0
        %1628 = vmatprep.subr.mxu0 0.0
        %1629 = vmatpush1.msra.mxu0 0.0
        %1630 = vmatprep.subr.mxu0 0.0
        %1631 = vmatpush1.msra.mxu0 0.0
        %1632 = vmatprep.subr.mxu0 0.0
        %1633 = vmatpush1.msra.mxu0 0.0
        %1634 = vmatprep.subr.mxu0 0.0
        %1635 = vmatpush1.msra.mxu0 0.0
        %1636 = vmatprep.subr.mxu0 0.0
        %1637 = vmatpush1.msra.mxu0 0.0
        %1638 = vmatprep.subr.mxu0 0.0
        %1639 = vmatpush1.msra.mxu0 0.0
        %1640 = vmatprep.subr.mxu0 0.0
        %1641 = vmatpush1.msra.mxu0 0.0
        %1642 = vmatprep.subr.mxu0 0.0
        %1643 = vmatpush1.msra.mxu0 0.0
        %1644 = vmatprep.subr.mxu0 0.0
        %1645 = vmatpush1.msra.mxu0 0.0
        %1646 = vmatprep.subr.mxu0 0.0
        %1647 = vmatpush1.msra.mxu0 0.0
        %1648 = vmatprep.subr.mxu0 0.0
        %1649 = vmatpush1.msra.mxu0 0.0
        %1650 = vmatprep.subr.mxu0 0.0
        %1651 = vmatpush1.msra.mxu0 0.0
        %1652 = vmatprep.subr.mxu0 0.0
        %1653 = vmatpush1.msra.mxu0 0.0
        %1654 = vmatprep.subr.mxu0 0.0
        %1655 = vmatpush1.msra.mxu0 0.0
        %1656 = vmatprep.subr.mxu0 0.0
        %1657 = vmatpush1.msra.mxu0 0.0
        %1658 = vmatprep.subr.mxu0 0.0
        %1659 = vmatpush1.msra.mxu0 0.0
        %1660 = vmatprep.subr.mxu0 0.0
        %1661 = vmatpush1.msra.mxu0 0.0
        %1662 = vmatprep.subr.mxu0 0.0
        %1663 = vmatpush1.msra.mxu0 0.0
        %1664 = vmatprep.subr.mxu0 0.0
        %1665 = vmatpush1.msra.mxu0 0.0
        %1666 = vmatprep.subr.mxu0 0.0
        %1667 = vmatpush1.msra.mxu0 0.0
        %1668 = vmatprep.subr.mxu0 0.0
        %1669 = vmatpush1.msra.mxu0 0.0
        %1670 = vmatprep.subr.mxu0 0.0
        %1671 = vmatpush1.msra.mxu0 0.0
        %1672 = vmatprep.subr.mxu0 0.0
        %1673 = vmatpush1.msra.mxu0 0.0
        %1674 = vmatprep.subr.mxu0 0.0
        %1675 = vmatpush1.msra.mxu0 0.0
        %1676 = vmatprep.subr.mxu0 0.0
        %1677 = vmatpush1.msra.mxu0 0.0
        %1678 = vmatprep.subr.mxu0 0.0
        %1679 = vmatpush1.msra.mxu0 0.0
        %1680 = vmatprep.subr.mxu0 0.0
        %1681 = vmatpush1.msra.mxu0 0.0
        %1682 = vmatprep.mubr.f32.mxu0 0.0
        %1683 = vmatmul.mubr.f32.gmra.mrb[0].mxu0 %v896
        %v1684 = vpop.f32.mrb[0].mxu0
        %v1685 = vadd.f32 0.0, %v1684
        %v1686 = vpop.f32.mrb[0].mxu0
        %1687 = vdwg.mxu0
        %v1688 = vsub.f32 %v1617, %v1685
        %1689 = vst.msk [vmem:[%s477] sm:$0xff] %vm508, %v1688
        %v1690 = vadd.f32 %v1452, %v1685
        %v1691 = vrot.slane %v1690, 7
        %v1692 = vrot.slane %v1690, 1
        %v1693 = vld [vmem:[%s10] sm:$0xff]
        %v1694 = vld [vmem:[%s10 + $0x8] sm:$0xff]
        %v1695 = vld [vmem:[%s10 + $0x10] sm:$0xff]
        %v1696 = vld [vmem:[%s10 + $0x18] sm:$0xff]
        %v1697 = vld [vmem:[%s11] sm:$0xff]
        %v1698 = vld [vmem:[%s11 + $0x8] sm:$0xff]
        %v1699 = vld [vmem:[%s11 + $0x10] sm:$0xff]
        %v1700 = vld [vmem:[%s11 + $0x18] sm:$0xff]
        %v1702 = vsel %vm508, %v1690, 0
        %1704 = vmatprep.subr.mxu0 0.0
        %1705 = vmatpush1.msra.mxu0 %v1697
        %1706 = vmatprep.subr.mxu0 0.0
        %1707 = vmatpush1.msra.mxu0 %v1698
        %1708 = vmatprep.subr.mxu0 0.0
        %1709 = vmatpush1.msra.mxu0 %v1699
        %1710 = vmatprep.subr.mxu0 0.0
        %1711 = vmatpush1.msra.mxu0 %v1700
        %1712 = vmatprep.subr.mxu0 0.0
        %1713 = vmatpush1.msra.mxu0 0.0
        %1714 = vmatprep.subr.mxu0 0.0
        %1715 = vmatpush1.msra.mxu0 0.0
        %1716 = vmatprep.subr.mxu0 0.0
        %1717 = vmatpush1.msra.mxu0 0.0
        %1718 = vmatprep.subr.mxu0 0.0
        %1719 = vmatpush1.msra.mxu0 0.0
        %1720 = vmatprep.subr.mxu0 0.0
        %1721 = vmatpush1.msra.mxu0 0.0
        %1722 = vmatprep.subr.mxu0 0.0
        %1723 = vmatpush1.msra.mxu0 0.0
        %1724 = vmatprep.subr.mxu0 0.0
        %1725 = vmatpush1.msra.mxu0 0.0
        %1726 = vmatprep.subr.mxu0 0.0
        %1727 = vmatpush1.msra.mxu0 0.0
        %1728 = vmatprep.subr.mxu0 0.0
        %1729 = vmatpush1.msra.mxu0 0.0
        %1730 = vmatprep.subr.mxu0 0.0
        %1731 = vmatpush1.msra.mxu0 0.0
        %1732 = vmatprep.subr.mxu0 0.0
        %1733 = vmatpush1.msra.mxu0 0.0
        %1734 = vmatprep.subr.mxu0 0.0
        %1735 = vmatpush1.msra.mxu0 0.0
        %1736 = vmatprep.subr.mxu0 0.0
        %1737 = vmatpush1.msra.mxu0 0.0
        %1738 = vmatprep.subr.mxu0 0.0
        %1739 = vmatpush1.msra.mxu0 0.0
        %1740 = vmatprep.subr.mxu0 0.0
        %1741 = vmatpush1.msra.mxu0 0.0
        %1742 = vmatprep.subr.mxu0 0.0
        %1743 = vmatpush1.msra.mxu0 0.0
        %1744 = vmatprep.subr.mxu0 0.0
        %1745 = vmatpush1.msra.mxu0 0.0
        %1746 = vmatprep.subr.mxu0 0.0
        %1747 = vmatpush1.msra.mxu0 0.0
        %1748 = vmatprep.subr.mxu0 0.0
        %1749 = vmatpush1.msra.mxu0 0.0
        %1750 = vmatprep.subr.mxu0 0.0
        %1751 = vmatpush1.msra.mxu0 0.0
        %1752 = vmatprep.subr.mxu0 0.0
        %1753 = vmatpush1.msra.mxu0 0.0
        %1754 = vmatprep.subr.mxu0 0.0
        %1755 = vmatpush1.msra.mxu0 0.0
        %1756 = vmatprep.subr.mxu0 0.0
        %1757 = vmatpush1.msra.mxu0 0.0
        %1758 = vmatprep.subr.mxu0 0.0
        %1759 = vmatpush1.msra.mxu0 0.0
        %1760 = vmatprep.subr.mxu0 0.0
        %1761 = vmatpush1.msra.mxu0 0.0
        %1762 = vmatprep.subr.mxu0 0.0
        %1763 = vmatpush1.msra.mxu0 0.0
        %1764 = vmatprep.subr.mxu0 0.0
        %1765 = vmatpush1.msra.mxu0 0.0
        %1766 = vmatprep.subr.mxu0 0.0
        %1767 = vmatpush1.msra.mxu0 0.0
        %1768 = vmatprep.mubr.f32.mxu0 0.0
        %1769 = vmatmul.mubr.f32.gmra.mrb[0].mxu0 %v1702
        %v1770 = vpop.f32.mrb[0].mxu0
        %v1771 = vadd.f32 0.0, %v1770
        %v1772 = vpop.f32.mrb[0].mxu0
        %1773 = vdwg.mxu0
        %v1775 = vsel %vm508, %v1691, 0
        %1777 = vmatprep.subr.mxu0 0.0
        %1778 = vmatpush1.msra.mxu0 %v1693
        %1779 = vmatprep.subr.mxu0 0.0
        %1780 = vmatpush1.msra.mxu0 %v1694
        %1781 = vmatprep.subr.mxu0 0.0
        %1782 = vmatpush1.msra.mxu0 %v1695
        %1783 = vmatprep.subr.mxu0 0.0
        %1784 = vmatpush1.msra.mxu0 %v1696
        %1785 = vmatprep.subr.mxu0 0.0
        %1786 = vmatpush1.msra.mxu0 0.0
        %1787 = vmatprep.subr.mxu0 0.0
        %1788 = vmatpush1.msra.mxu0 0.0
        %1789 = vmatprep.subr.mxu0 0.0
        %1790 = vmatpush1.msra.mxu0 0.0
        %1791 = vmatprep.subr.mxu0 0.0
        %1792 = vmatpush1.msra.mxu0 0.0
        %1793 = vmatprep.subr.mxu0 0.0
        %1794 = vmatpush1.msra.mxu0 0.0
        %1795 = vmatprep.subr.mxu0 0.0
        %1796 = vmatpush1.msra.mxu0 0.0
        %1797 = vmatprep.subr.mxu0 0.0
        %1798 = vmatpush1.msra.mxu0 0.0
        %1799 = vmatprep.subr.mxu0 0.0
        %1800 = vmatpush1.msra.mxu0 0.0
        %1801 = vmatprep.subr.mxu0 0.0
        %1802 = vmatpush1.msra.mxu0 0.0
        %1803 = vmatprep.subr.mxu0 0.0
        %1804 = vmatpush1.msra.mxu0 0.0
        %1805 = vmatprep.subr.mxu0 0.0
        %1806 = vmatpush1.msra.mxu0 0.0
        %1807 = vmatprep.subr.mxu0 0.0
        %1808 = vmatpush1.msra.mxu0 0.0
        %1809 = vmatprep.subr.mxu0 0.0
        %1810 = vmatpush1.msra.mxu0 0.0
        %1811 = vmatprep.subr.mxu0 0.0
        %1812 = vmatpush1.msra.mxu0 0.0
        %1813 = vmatprep.subr.mxu0 0.0
        %1814 = vmatpush1.msra.mxu0 0.0
        %1815 = vmatprep.subr.mxu0 0.0
        %1816 = vmatpush1.msra.mxu0 0.0
        %1817 = vmatprep.subr.mxu0 0.0
        %1818 = vmatpush1.msra.mxu0 0.0
        %1819 = vmatprep.subr.mxu0 0.0
        %1820 = vmatpush1.msra.mxu0 0.0
        %1821 = vmatprep.subr.mxu0 0.0
        %1822 = vmatpush1.msra.mxu0 0.0
        %1823 = vmatprep.subr.mxu0 0.0
        %1824 = vmatpush1.msra.mxu0 0.0
        %1825 = vmatprep.subr.mxu0 0.0
        %1826 = vmatpush1.msra.mxu0 0.0
        %1827 = vmatprep.subr.mxu0 0.0
        %1828 = vmatpush1.msra.mxu0 0.0
        %1829 = vmatprep.subr.mxu0 0.0
        %1830 = vmatpush1.msra.mxu0 0.0
        %1831 = vmatprep.subr.mxu0 0.0
        %1832 = vmatpush1.msra.mxu0 0.0
        %1833 = vmatprep.subr.mxu0 0.0
        %1834 = vmatpush1.msra.mxu0 0.0
        %1835 = vmatprep.subr.mxu0 0.0
        %1836 = vmatpush1.msra.mxu0 0.0
        %1837 = vmatprep.subr.mxu0 0.0
        %1838 = vmatpush1.msra.mxu0 0.0
        %1839 = vmatprep.subr.mxu0 0.0
        %1840 = vmatpush1.msra.mxu0 0.0
        %1841 = vmatprep.mubr.f32.mxu0 0.0
        %1842 = vmatmul.mubr.f32.gmra.mrb[0].mxu0 %v1775
        %v1843 = vpop.f32.mrb[0].mxu0
        %v1844 = vadd.f32 %v1771, %v1843
        %v1845 = vpop.f32.mrb[0].mxu0
        %1846 = vdwg.mxu0
        %v1847 = vld [vmem:[%s12] sm:$0xff]
        %v1848 = vld [vmem:[%s12 + $0x8] sm:$0xff]
        %v1849 = vld [vmem:[%s12 + $0x10] sm:$0xff]
        %v1850 = vld [vmem:[%s12 + $0x18] sm:$0xff]
        %v1852 = vsel %vm508, %v1692, 0
        %1854 = vmatprep.subr.mxu0 0.0
        %1855 = vmatpush1.msra.mxu0 %v1847
        %1856 = vmatprep.subr.mxu0 0.0
        %1857 = vmatpush1.msra.mxu0 %v1848
        %1858 = vmatprep.subr.mxu0 0.0
        %1859 = vmatpush1.msra.mxu0 %v1849
        %1860 = vmatprep.subr.mxu0 0.0
        %1861 = vmatpush1.msra.mxu0 %v1850
        %1862 = vmatprep.subr.mxu0 0.0
        %1863 = vmatpush1.msra.mxu0 0.0
        %1864 = vmatprep.subr.mxu0 0.0
        %1865 = vmatpush1.msra.mxu0 0.0
        %1866 = vmatprep.subr.mxu0 0.0
        %1867 = vmatpush1.msra.mxu0 0.0
        %1868 = vmatprep.subr.mxu0 0.0
        %1869 = vmatpush1.msra.mxu0 0.0
        %1870 = vmatprep.subr.mxu0 0.0
        %1871 = vmatpush1.msra.mxu0 0.0
        %1872 = vmatprep.subr.mxu0 0.0
        %1873 = vmatpush1.msra.mxu0 0.0
        %1874 = vmatprep.subr.mxu0 0.0
        %1875 = vmatpush1.msra.mxu0 0.0
        %1876 = vmatprep.subr.mxu0 0.0
        %1877 = vmatpush1.msra.mxu0 0.0
        %1878 = vmatprep.subr.mxu0 0.0
        %1879 = vmatpush1.msra.mxu0 0.0
        %1880 = vmatprep.subr.mxu0 0.0
        %1881 = vmatpush1.msra.mxu0 0.0
        %1882 = vmatprep.subr.mxu0 0.0
        %1883 = vmatpush1.msra.mxu0 0.0
        %1884 = vmatprep.subr.mxu0 0.0
        %1885 = vmatpush1.msra.mxu0 0.0
        %1886 = vmatprep.subr.mxu0 0.0
        %1887 = vmatpush1.msra.mxu0 0.0
        %1888 = vmatprep.subr.mxu0 0.0
        %1889 = vmatpush1.msra.mxu0 0.0
        %1890 = vmatprep.subr.mxu0 0.0
        %1891 = vmatpush1.msra.mxu0 0.0
        %1892 = vmatprep.subr.mxu0 0.0
        %1893 = vmatpush1.msra.mxu0 0.0
        %1894 = vmatprep.subr.mxu0 0.0
        %1895 = vmatpush1.msra.mxu0 0.0
        %1896 = vmatprep.subr.mxu0 0.0
        %1897 = vmatpush1.msra.mxu0 0.0
        %1898 = vmatprep.subr.mxu0 0.0
        %1899 = vmatpush1.msra.mxu0 0.0
        %1900 = vmatprep.subr.mxu0 0.0
        %1901 = vmatpush1.msra.mxu0 0.0
        %1902 = vmatprep.subr.mxu0 0.0
        %1903 = vmatpush1.msra.mxu0 0.0
        %1904 = vmatprep.subr.mxu0 0.0
        %1905 = vmatpush1.msra.mxu0 0.0
        %1906 = vmatprep.subr.mxu0 0.0
        %1907 = vmatpush1.msra.mxu0 0.0
        %1908 = vmatprep.subr.mxu0 0.0
        %1909 = vmatpush1.msra.mxu0 0.0
        %1910 = vmatprep.subr.mxu0 0.0
        %1911 = vmatpush1.msra.mxu0 0.0
        %1912 = vmatprep.subr.mxu0 0.0
        %1913 = vmatpush1.msra.mxu0 0.0
        %1914 = vmatprep.subr.mxu0 0.0
        %1915 = vmatpush1.msra.mxu0 0.0
        %1916 = vmatprep.subr.mxu0 0.0
        %1917 = vmatpush1.msra.mxu0 0.0
        %1918 = vmatprep.mubr.f32.mxu0 0.0
        %1919 = vmatmul.mubr.f32.gmra.mrb[0].mxu0 %v1852
        %v1920 = vpop.f32.mrb[0].mxu0
        %v1921 = vadd.f32 0.0, %v1920
        %v1922 = vpop.f32.mrb[0].mxu0
        %1923 = vdwg.mxu0
        %v1924 = vadd.f32 %v1844, %v1921
        %1925 = vst [vmem:[%s484] sm:$0xff] %v1924
        %s1926 = sand.u32 %s323, 1
        %s1927 = scalar_lea.sflag [#allocation3], %s1926
        %s1928 = sand.u32 %s323, 1
        %s1929 = smul.addr %s1928, 8
        %s1930 = scalar_lea.vmem [#allocation2], %s1929
        %s1931 = sand.u32 %s349, 1
        %s1932 = scalar_lea.sflag [#allocation5], %s1931
        %s1933 = sand.u32 %s349, 1
        %s1934 = smul.addr %s1933, 8
        %s1935 = scalar_lea.vmem [#allocation4], %s1934
        // Predicated region
        $region73: #{tpu_custom_call.1} parent=71 // pred_check
          %p1936 = pneg %p333
        $region74: #{tpu_custom_call.1} parent=71 // pred_check_branch
          %1938 = sbr.rel (%p1936) target = $region76
        $region75: #{tpu_custom_call.1} parent=71 // pred_region
          %s1940 = ssub.s32 128, 128
          %1941 = vsyncadd %s1927, %s1940
          %s1942 = smul.addr %s32, 128
          %s1943 = scalar_lea.hbm %s13, %s1942
          %s1945 = sshll.u32 %s1930, 4
          %s1946 = int_to_ptr.vmem [resolvable:$true] %s1945
          %1948 = dma.vmem_to_hbm [thread:$0]  %s1946, 128, %s1943, %s1927
        $region76: #{tpu_custom_call.1} parent=71 // pred_fallthru
          _
        // Predicated region
        $region77: #{tpu_custom_call.1} parent=71 // pred_check
          %p1949 = pneg %p359
        $region78: #{tpu_custom_call.1} parent=71 // pred_check_branch
          %1951 = sbr.rel (%p1949) target = $region80
        $region79: #{tpu_custom_call.1} parent=71 // pred_region
          %s1953 = ssub.s32 128, 128
          %1954 = vsyncadd %s1932, %s1953
          %s1955 = smul.addr %s32, 128
          %s1956 = scalar_lea.hbm %s14, %s1955
          %s1958 = sshll.u32 %s1935, 4
          %s1959 = int_to_ptr.vmem [resolvable:$true] %s1958
          %1961 = dma.vmem_to_hbm [thread:$0]  %s1959, 128, %s1956, %s1932
        $region80: #{tpu_custom_call.1} parent=71 // pred_fallthru
          _
      $region72: #{tpu_custom_call.1} parent=5 // pred_fallthru
        _
      %p1962 = scmp.le.s32.totalorder 2, %s27
      // Predicated region
      $region81: #{tpu_custom_call.1} parent=5 // pred_check
        %p1963 = pneg %p1962
      $region82: #{tpu_custom_call.1} parent=5 // pred_check_branch
        %1965 = sbr.rel (%p1963) target = $region84
      $region83: #{tpu_custom_call.1} parent=5 // pred_region
        %s1966 = ssub.s32 %s27, 2
        // Predicated region
        $region85: #{tpu_custom_call.1} parent=83 // pred_check
          %p1967 = pneg %p339
        $region86: #{tpu_custom_call.1} parent=83 // pred_check_branch
          %1969 = sbr.rel (%p1967) target = $region88
        $region87: #{tpu_custom_call.1} parent=83 // pred_region
          %s1970 = sand.u32 %s324, 1
          %s1971 = scalar_lea.sflag [#allocation3], %s1970
          %s1972 = sand.u32 %s324, 1
          %s1973 = smul.addr %s1972, 8
          %s1974 = scalar_lea.vmem [#allocation2], %s1973
          %1975 = dma.done %s1971, 128
        $region88: #{tpu_custom_call.1} parent=83 // pred_fallthru
          _
        // Predicated region
        $region89: #{tpu_custom_call.1} parent=83 // pred_check
          %p1976 = pneg %p365
        $region90: #{tpu_custom_call.1} parent=83 // pred_check_branch
          %1978 = sbr.rel (%p1976) target = $region92
        $region91: #{tpu_custom_call.1} parent=83 // pred_region
          %s1979 = sand.u32 %s350, 1
          %s1980 = scalar_lea.sflag [#allocation5], %s1979
          %s1981 = sand.u32 %s350, 1
          %s1982 = smul.addr %s1981, 8
          %s1983 = scalar_lea.vmem [#allocation4], %s1982
          %1984 = dma.done %s1980, 128
        $region92: #{tpu_custom_call.1} parent=83 // pred_fallthru
          _
      $region84: #{tpu_custom_call.1} parent=5 // pred_fallthru
        _
    $region6: #{tpu_custom_call.1} parent=1 // loop_footer
      %s31 = sadd.s32 1, %s27
    $region7: #{tpu_custom_call.1} parent=1 // loop_footer_branch
      %26 = sbr.rel target = $region3
    $region8: #{tpu_custom_call.1} parent=1 // loop_exit
      _
    %1985 = vsyncpa [#allocation3], 1
    %s1986 = scalar_lea.sflag [#allocation3], 1
    %1987 = vsyncpa %s1986, 1
    %1988 = vsyncpa [#allocation5], 1
    %s1989 = scalar_lea.sflag [#allocation5], 1
    %1990 = vsyncpa %s1989, 1

// kernel: tpu_custom_call.1
$region0: #{tpu_custom_call.1}
  #allocation0 [shape = 'u32[]', space=smem, size = 0x4, offset = 0x4, fixed_abs, tag = 'smem constant byte address 0x4 - core index']
  #allocation1 [shape = 'u32[144,128]{1,0:T(1,128)}', space=vmem, size = 0x12000, scoped, tag = 'internal scratch']
  %s0 = inlined_call_operand.vmem [shape: f32[2,8,32], index: 0, kind: input, shape index: {}]
  %s1 = inlined_call_operand.vmem [shape: f32[2,16,32], index: 1, kind: input, shape index: {}]
  %s2 = inlined_call_operand.vmem [shape: f32[8,8], index: 2, kind: input, shape index: {}]
  %s3 = inlined_call_operand.vmem [shape: f32[32,384], index: 3, kind: input, shape index: {}]
  %s4 = inlined_call_operand.vmem [shape: f32[128,32], index: 4, kind: input, shape index: {}]
  %s5 = inlined_call_operand.vmem [shape: f32[32,128], index: 5, kind: input, shape index: {}]
  %s6 = inlined_call_operand.vmem [shape: f32[32,256], index: 6, kind: input, shape index: {}]
  %s7 = inlined_call_operand.vmem [shape: f32[128,32], index: 7, kind: input, shape index: {}]
  %s8 = inlined_call_operand.vmem [shape: f32[32,128], index: 8, kind: input, shape index: {}]
  %s9 = inlined_call_operand.vmem [shape: f32[128,32], index: 9, kind: input, shape index: {}]
  %s10 = inlined_call_operand.vmem [shape: f32[32,128], index: 10, kind: input, shape index: {}]
  %s11 = inlined_call_operand.vmem [shape: f32[32,128], index: 11, kind: input, shape index: {}]
  %s12 = inlined_call_operand.vmem [shape: f32[32,128], index: 12, kind: input, shape index: {}]
  %s13 = inlined_call_operand.hbm [shape: f32[2,8,32], index: 13, kind: output, shape index: {0}]
  %s14 = inlined_call_operand.hbm [shape: f32[2,8,128], index: 14, kind: output, shape index: {1}]
  %15 = xla_tuple %s13, %s14
  %s16 = sld [smem:[#allocation0]]
  $region93: #{tpu_custom_call.1} parent=0
    _
  %s18 = ssub.s32 1, %s16
  %s19 = scalar_select 0, %s18, %s16
  $region1: #{tpu_custom_call.1} parent=0
    #allocation2 [shape = 'u8[8192]{0}', space=vmem, size = 0x2000, scoped, tag = 'output window, operand 0']
    #allocation3 [shape = 's32[2]{0}', space=sflag, size = 0x8, scoped, tag = 'scoped memory for tpu_custom_call.1']
    #allocation4 [shape = 'u8[8192]{0}', space=vmem, size = 0x2000, scoped, tag = 'output window, operand 1']
    #allocation5 [shape = 's32[2]{0}', space=sflag, size = 0x8, scoped, tag = 'scoped memory for tpu_custom_call.1']
    %20 = vsyncpa [#allocation3], 0
    %s21 = scalar_lea.sflag [#allocation3], 1
    %22 = vsyncpa %s21, 0
    %23 = vsyncpa [#allocation5], 0
    %s24 = scalar_lea.sflag [#allocation5], 1
    %25 = vsyncpa %s24, 0
    loop: start=0, step=1, limit=4
    $region2: #{tpu_custom_call.1} parent=1 // loop_pre_header
      _
    $region3: #{tpu_custom_call.1} parent=1 // loop_header
      %s27 = sphi 0, %s31
      %p28 = scmp.ge.s32.totalorder %s27, 4
      %s37 = sphi 0, %s39
      %s40 = sphi 0, %s37
      %s41 = sphi 0, %s40
      %s57 = sphi 0, %s41
      %s63 = sphi 0, %s65
      %s66 = sphi 0, %s63
      %s67 = sphi 0, %s66
      %s83 = sphi 0, %s67
      %s87 = sphi 0, %s87
      %s89 = sphi 0, %s87
      %s90 = sphi 0, %s89
      %s104 = sphi 0, %s90
      %s108 = sphi 0, %s108
      %s110 = sphi 0, %s108
      %s111 = sphi 0, %s110
      %s125 = sphi 0, %s111
      %s129 = sphi 0, %s129
      %s131 = sphi 0, %s129
      %s132 = sphi 0, %s131
      %s146 = sphi 0, %s132
      %s150 = sphi 0, %s150
      %s152 = sphi 0, %s150
      %s153 = sphi 0, %s152
      %s167 = sphi 0, %s153
      %s171 = sphi 0, %s171
      %s173 = sphi 0, %s171
      %s174 = sphi 0, %s173
      %s188 = sphi 0, %s174
      %s192 = sphi 0, %s192
      %s194 = sphi 0, %s192
      %s195 = sphi 0, %s194
      %s209 = sphi 0, %s195
      %s213 = sphi 0, %s213
      %s215 = sphi 0, %s213
      %s216 = sphi 0, %s215
      %s230 = sphi 0, %s216
      %s234 = sphi 0, %s234
      %s236 = sphi 0, %s234
      %s237 = sphi 0, %s236
      %s251 = sphi 0, %s237
      %s255 = sphi 0, %s255
      %s257 = sphi 0, %s255
      %s258 = sphi 0, %s257
      %s272 = sphi 0, %s258
      %s276 = sphi 0, %s276
      %s278 = sphi 0, %s276
      %s279 = sphi 0, %s278
      %s293 = sphi 0, %s279
      %s297 = sphi 0, %s297
      %s299 = sphi 0, %s297
      %s300 = sphi 0, %s299
      %s314 = sphi 0, %s300
      %s320 = sphi 0, %s322
      %s323 = sphi 0, %s320
      %s324 = sphi 0, %s323
      %s340 = sphi 0, %s324
      %s346 = sphi 0, %s348
      %s349 = sphi 0, %s346
      %s350 = sphi 0, %s349
      %s366 = sphi 0, %s350
    $region4: #{tpu_custom_call.1} parent=1 // loop_header_branch
      %30 = sbr.rel (%p28) target = $region8
    $region5: #{tpu_custom_call.1} parent=1 // loop_body
      %s32 = ssub.s32 %s27, 1
      %s33 = ssub.s32 %s27, 2
      %s34 = sadd.s32 %s27, 1
      %s35 = ssub.s32 %s27, %s34
      %p36 = scmp.eq.s32.totalorder %s35, 0
      %s38 = sadd.s32 %s37, 1
      %s39 = scalar_select %p36, %s37, %s38
      %p42 = pneg %p36
      %p43 = scmp.eq.s32.totalorder %s27, 1
      %p44 = por %p42, %p43
      %p45 = scmp.ne.s32.totalorder %s37, %s40
      %p46 = scmp.eq.s32.totalorder %s27, 0
      %p47 = por %p45, %p46
      %p48 = scmp.ne.s32.totalorder %s37, %s40
      %p49 = scmp.eq.s32.totalorder %s32, 1
      %p50 = por %p48, %p49
      %p51 = scmp.ne.s32.totalorder %s40, %s41
      %p52 = scmp.eq.s32.totalorder %s32, 0
      %p53 = por %p51, %p52
      %p54 = scmp.ne.s32.totalorder %s40, %s41
      %p55 = scmp.eq.s32.totalorder %s33, 1
      %p56 = por %p54, %p55
      %p58 = scmp.ne.s32.totalorder %s41, %s57
      %p59 = scmp.eq.s32.totalorder %s33, 0
      %p60 = por %p58, %p59
      %s61 = ssub.s32 %s27, %s34
      %p62 = scmp.eq.s32.totalorder %s61, 0
      %s64 = sadd.s32 %s63, 1
      %s65 = scalar_select %p62, %s63, %s64
      %p68 = pneg %p62
      %p69 = scmp.eq.s32.totalorder %s27, 1
      %p70 = por %p68, %p69
      %p71 = scmp.ne.s32.totalorder %s63, %s66
      %p72 = scmp.eq.s32.totalorder %s27, 0
      %p73 = por %p71, %p72
      %p74 = scmp.ne.s32.totalorder %s63, %s66
      %p75 = scmp.eq.s32.totalorder %s32, 1
      %p76 = por %p74, %p75
      %p77 = scmp.ne.s32.totalorder %s66, %s67
      %p78 = scmp.eq.s32.totalorder %s32, 0
      %p79 = por %p77, %p78
      %p80 = scmp.ne.s32.totalorder %s66, %s67
      %p81 = scmp.eq.s32.totalorder %s33, 1
      %p82 = por %p80, %p81
      %p84 = scmp.ne.s32.totalorder %s67, %s83
      %p85 = scmp.eq.s32.totalorder %s33, 0
      %p86 = por %p84, %p85
      %s88 = sadd.s32 %s87, 1
      %p91 = scmp.eq.s32.totalorder %s27, 1
      %p92 = scmp.ne.s32.totalorder %s87, %s89
      %p93 = scmp.eq.s32.totalorder %s27, 0
      %p94 = por %p92, %p93
      %p95 = scmp.ne.s32.totalorder %s87, %s89
      %p96 = scmp.eq.s32.totalorder %s32, 1
      %p97 = por %p95, %p96
      %p98 = scmp.ne.s32.totalorder %s89, %s90
      %p99 = scmp.eq.s32.totalorder %s32, 0
      %p100 = por %p98, %p99
      %p101 = scmp.ne.s32.totalorder %s89, %s90
      %p102 = scmp.eq.s32.totalorder %s33, 1
      %p103 = por %p101, %p102
      %p105 = scmp.ne.s32.totalorder %s90, %s104
      %p106 = scmp.eq.s32.totalorder %s33, 0
      %p107 = por %p105, %p106
      %s109 = sadd.s32 %s108, 1
      %p112 = scmp.eq.s32.totalorder %s27, 1
      %p113 = scmp.ne.s32.totalorder %s108, %s110
      %p114 = scmp.eq.s32.totalorder %s27, 0
      %p115 = por %p113, %p114
      %p116 = scmp.ne.s32.totalorder %s108, %s110
      %p117 = scmp.eq.s32.totalorder %s32, 1
      %p118 = por %p116, %p117
      %p119 = scmp.ne.s32.totalorder %s110, %s111
      %p120 = scmp.eq.s32.totalorder %s32, 0
      %p121 = por %p119, %p120
      %p122 = scmp.ne.s32.totalorder %s110, %s111
      %p123 = scmp.eq.s32.totalorder %s33, 1
      %p124 = por %p122, %p123
      %p126 = scmp.ne.s32.totalorder %s111, %s125
      %p127 = scmp.eq.s32.totalorder %s33, 0
      %p128 = por %p126, %p127
      %s130 = sadd.s32 %s129, 1
      %p133 = scmp.eq.s32.totalorder %s27, 1
      %p134 = scmp.ne.s32.totalorder %s129, %s131
      %p135 = scmp.eq.s32.totalorder %s27, 0
      %p136 = por %p134, %p135
      %p137 = scmp.ne.s32.totalorder %s129, %s131
      %p138 = scmp.eq.s32.totalorder %s32, 1
      %p139 = por %p137, %p138
      %p140 = scmp.ne.s32.totalorder %s131, %s132
      %p141 = scmp.eq.s32.totalorder %s32, 0
      %p142 = por %p140, %p141
      %p143 = scmp.ne.s32.totalorder %s131, %s132
      %p144 = scmp.eq.s32.totalorder %s33, 1
      %p145 = por %p143, %p144
      %p147 = scmp.ne.s32.totalorder %s132, %s146
      %p148 = scmp.eq.s32.totalorder %s33, 0
      %p149 = por %p147, %p148
      %s151 = sadd.s32 %s150, 1
      %p154 = scmp.eq.s32.totalorder %s27, 1
      %p155 = scmp.ne.s32.totalorder %s150, %s152
      %p156 = scmp.eq.s32.totalorder %s27, 0
      %p157 = por %p155, %p156
      %p158 = scmp.ne.s32.totalorder %s150, %s152
      %p159 = scmp.eq.s32.totalorder %s32, 1
      %p160 = por %p158, %p159
      %p161 = scmp.ne.s32.totalorder %s152, %s153
      %p162 = scmp.eq.s32.totalorder %s32, 0
      %p163 = por %p161, %p162
      %p164 = scmp.ne.s32.totalorder %s152, %s153
      %p165 = scmp.eq.s32.totalorder %s33, 1
      %p166 = por %p164, %p165
      %p168 = scmp.ne.s32.totalorder %s153, %s167
      %p169 = scmp.eq.s32.totalorder %s33, 0
      %p170 = por %p168, %p169
      %s172 = sadd.s32 %s171, 1
      %p175 = scmp.eq.s32.totalorder %s27, 1
      %p176 = scmp.ne.s32.totalorder %s171, %s173
      %p177 = scmp.eq.s32.totalorder %s27, 0
      %p178 = por %p176, %p177
      %p179 = scmp.ne.s32.totalorder %s171, %s173
      %p180 = scmp.eq.s32.totalorder %s32, 1
      %p181 = por %p179, %p180
      %p182 = scmp.ne.s32.totalorder %s173, %s174
      %p183 = scmp.eq.s32.totalorder %s32, 0
      %p184 = por %p182, %p183
      %p185 = scmp.ne.s32.totalorder %s173, %s174
      %p186 = scmp.eq.s32.totalorder %s33, 1
      %p187 = por %p185, %p186
      %p189 = scmp.ne.s32.totalorder %s174, %s188
      %p190 = scmp.eq.s32.totalorder %s33, 0
      %p191 = por %p189, %p190
      %s193 = sadd.s32 %s192, 1
      %p196 = scmp.eq.s32.totalorder %s27, 1
      %p197 = scmp.ne.s32.totalorder %s192, %s194
      %p198 = scmp.eq.s32.totalorder %s27, 0
      %p199 = por %p197, %p198
      %p200 = scmp.ne.s32.totalorder %s192, %s194
      %p201 = scmp.eq.s32.totalorder %s32, 1
      %p202 = por %p200, %p201
      %p203 = scmp.ne.s32.totalorder %s194, %s195
      %p204 = scmp.eq.s32.totalorder %s32, 0
      %p205 = por %p203, %p204
      %p206 = scmp.ne.s32.totalorder %s194, %s195
      %p207 = scmp.eq.s32.totalorder %s33, 1
      %p208 = por %p206, %p207
      %p210 = scmp.ne.s32.totalorder %s195, %s209
      %p211 = scmp.eq.s32.totalorder %s33, 0
      %p212 = por %p210, %p211
      %s214 = sadd.s32 %s213, 1
      %p217 = scmp.eq.s32.totalorder %s27, 1
      %p218 = scmp.ne.s32.totalorder %s213, %s215
      %p219 = scmp.eq.s32.totalorder %s27, 0
      %p220 = por %p218, %p219
      %p221 = scmp.ne.s32.totalorder %s213, %s215
      %p222 = scmp.eq.s32.totalorder %s32, 1
      %p223 = por %p221, %p222
      %p224 = scmp.ne.s32.totalorder %s215, %s216
      %p225 = scmp.eq.s32.totalorder %s32, 0
      %p226 = por %p224, %p225
      %p227 = scmp.ne.s32.totalorder %s215, %s216
      %p228 = scmp.eq.s32.totalorder %s33, 1
      %p229 = por %p227, %p228
      %p231 = scmp.ne.s32.totalorder %s216, %s230
      %p232 = scmp.eq.s32.totalorder %s33, 0
      %p233 = por %p231, %p232
      %s235 = sadd.s32 %s234, 1
      %p238 = scmp.eq.s32.totalorder %s27, 1
      %p239 = scmp.ne.s32.totalorder %s234, %s236
      %p240 = scmp.eq.s32.totalorder %s27, 0
      %p241 = por %p239, %p240
      %p242 = scmp.ne.s32.totalorder %s234, %s236
      %p243 = scmp.eq.s32.totalorder %s32, 1
      %p244 = por %p242, %p243
      %p245 = scmp.ne.s32.totalorder %s236, %s237
      %p246 = scmp.eq.s32.totalorder %s32, 0
      %p247 = por %p245, %p246
      %p248 = scmp.ne.s32.totalorder %s236, %s237
      %p249 = scmp.eq.s32.totalorder %s33, 1
      %p250 = por %p248, %p249
      %p252 = scmp.ne.s32.totalorder %s237, %s251
      %p253 = scmp.eq.s32.totalorder %s33, 0
      %p254 = por %p252, %p253
      %s256 = sadd.s32 %s255, 1
      %p259 = scmp.eq.s32.totalorder %s27, 1
      %p260 = scmp.ne.s32.totalorder %s255, %s257
      %p261 = scmp.eq.s32.totalorder %s27, 0
      %p262 = por %p260, %p261
      %p263 = scmp.ne.s32.totalorder %s255, %s257
      %p264 = scmp.eq.s32.totalorder %s32, 1
      %p265 = por %p263, %p264
      %p266 = scmp.ne.s32.totalorder %s257, %s258
      %p267 = scmp.eq.s32.totalorder %s32, 0
      %p268 = por %p266, %p267
      %p269 = scmp.ne.s32.totalorder %s257, %s258
      %p270 = scmp.eq.s32.totalorder %s33, 1
      %p271 = por %p269, %p270
      %p273 = scmp.ne.s32.totalorder %s258, %s272
      %p274 = scmp.eq.s32.totalorder %s33, 0
      %p275 = por %p273, %p274
      %s277 = sadd.s32 %s276, 1
      %p280 = scmp.eq.s32.totalorder %s27, 1
      %p281 = scmp.ne.s32.totalorder %s276, %s278
      %p282 = scmp.eq.s32.totalorder %s27, 0
      %p283 = por %p281, %p282
      %p284 = scmp.ne.s32.totalorder %s276, %s278
      %p285 = scmp.eq.s32.totalorder %s32, 1
      %p286 = por %p284, %p285
      %p287 = scmp.ne.s32.totalorder %s278, %s279
      %p288 = scmp.eq.s32.totalorder %s32, 0
      %p289 = por %p287, %p288
      %p290 = scmp.ne.s32.totalorder %s278, %s279
      %p291 = scmp.eq.s32.totalorder %s33, 1
      %p292 = por %p290, %p291
      %p294 = scmp.ne.s32.totalorder %s279, %s293
      %p295 = scmp.eq.s32.totalorder %s33, 0
      %p296 = por %p294, %p295
      %s298 = sadd.s32 %s297, 1
      %p301 = scmp.eq.s32.totalorder %s27, 1
      %p302 = scmp.ne.s32.totalorder %s297, %s299
      %p303 = scmp.eq.s32.totalorder %s27, 0
      %p304 = por %p302, %p303
      %p305 = scmp.ne.s32.totalorder %s297, %s299
      %p306 = scmp.eq.s32.totalorder %s32, 1
      %p307 = por %p305, %p306
      %p308 = scmp.ne.s32.totalorder %s299, %s300
      %p309 = scmp.eq.s32.totalorder %s32, 0
      %p310 = por %p308, %p309
      %p311 = scmp.ne.s32.totalorder %s299, %s300
      %p312 = scmp.eq.s32.totalorder %s33, 1
      %p313 = por %p311, %p312
      %p315 = scmp.ne.s32.totalorder %s300, %s314
      %p316 = scmp.eq.s32.totalorder %s33, 0
      %p317 = por %p315, %p316
      %s318 = ssub.s32 %s27, %s34
      %p319 = scmp.eq.s32.totalorder %s318, 0
      %s321 = sadd.s32 %s320, 1
      %s322 = scalar_select %p319, %s320, %s321
      %p325 = pneg %p319
      %p326 = scmp.eq.s32.totalorder %s27, 1
      %p327 = por %p325, %p326
      %p328 = scmp.ne.s32.totalorder %s320, %s323
      %p329 = scmp.eq.s32.totalorder %s27, 0
      %p330 = por %p328, %p329
      %p331 = scmp.ne.s32.totalorder %s320, %s323
      %p332 = scmp.eq.s32.totalorder %s32, 1
      %p333 = por %p331, %p332
      %p334 = scmp.ne.s32.totalorder %s323, %s324
      %p335 = scmp.eq.s32.totalorder %s32, 0
      %p336 = por %p334, %p335
      %p337 = scmp.ne.s32.totalorder %s323, %s324
      %p338 = scmp.eq.s32.totalorder %s33, 1
      %p339 = por %p337, %p338
      %p341 = scmp.ne.s32.totalorder %s324, %s340
      %p342 = scmp.eq.s32.totalorder %s33, 0
      %p343 = por %p341, %p342
      %s344 = ssub.s32 %s27, %s34
      %p345 = scmp.eq.s32.totalorder %s344, 0
      %s347 = sadd.s32 %s346, 1
      %s348 = scalar_select %p345, %s346, %s347
      %p351 = pneg %p345
      %p352 = scmp.eq.s32.totalorder %s27, 1
      %p353 = por %p351, %p352
      %p354 = scmp.ne.s32.totalorder %s346, %s349
      %p355 = scmp.eq.s32.totalorder %s27, 0
      %p356 = por %p354, %p355
      %p357 = scmp.ne.s32.totalorder %s346, %s349
      %p358 = scmp.eq.s32.totalorder %s32, 1
      %p359 = por %p357, %p358
      %p360 = scmp.ne.s32.totalorder %s349, %s350
      %p361 = scmp.eq.s32.totalorder %s32, 0
      %p362 = por %p360, %p361
      %p363 = scmp.ne.s32.totalorder %s349, %s350
      %p364 = scmp.eq.s32.totalorder %s33, 1
      %p365 = por %p363, %p364
      %p367 = scmp.ne.s32.totalorder %s350, %s366
      %p368 = scmp.eq.s32.totalorder %s33, 0
      %p369 = por %p367, %p368
      %p370 = scmp.le.s32.totalorder 1, %s27
      %p371 = scmp.lt.s32.totalorder %s27, 3
      %p372 = pnand %p370, %p371
      %p373 = pneg %p372
      // Predicated region
      $region9: #{tpu_custom_call.1} parent=5 // pred_check
        _
      $region10: #{tpu_custom_call.1} parent=5 // pred_check_branch
        %375 = sbr.rel (%p372) target = $region12
      $region11: #{tpu_custom_call.1} parent=5 // pred_region
        %s376 = ssub.s32 %s27, 1
        // Predicated region
        $region13: #{tpu_custom_call.1} parent=11 // pred_check
          %p377 = pneg %p100
        $region14: #{tpu_custom_call.1} parent=11 // pred_check_branch
          %379 = sbr.rel (%p377) target = $region16
        $region15: #{tpu_custom_call.1} parent=11 // pred_region
          _
        $region16: #{tpu_custom_call.1} parent=11 // pred_fallthru
          _
        // Predicated region
        $region17: #{tpu_custom_call.1} parent=11 // pred_check
          %p380 = pneg %p121
        $region18: #{tpu_custom_call.1} parent=11 // pred_check_branch
          %382 = sbr.rel (%p380) target = $region20
        $region19: #{tpu_custom_call.1} parent=11 // pred_region
          _
        $region20: #{tpu_custom_call.1} parent=11 // pred_fallthru
          _
        // Predicated region
        $region21: #{tpu_custom_call.1} parent=11 // pred_check
          %p383 = pneg %p142
        $region22: #{tpu_custom_call.1} parent=11 // pred_check_branch
          %385 = sbr.rel (%p383) target = $region24
        $region23: #{tpu_custom_call.1} parent=11 // pred_region
          _
        $region24: #{tpu_custom_call.1} parent=11 // pred_fallthru
          _
        // Predicated region
        $region25: #{tpu_custom_call.1} parent=11 // pred_check
          %p386 = pneg %p163
        $region26: #{tpu_custom_call.1} parent=11 // pred_check_branch
          %388 = sbr.rel (%p386) target = $region28
        $region27: #{tpu_custom_call.1} parent=11 // pred_region
          _
        $region28: #{tpu_custom_call.1} parent=11 // pred_fallthru
          _
        // Predicated region
        $region29: #{tpu_custom_call.1} parent=11 // pred_check
          %p389 = pneg %p184
        $region30: #{tpu_custom_call.1} parent=11 // pred_check_branch
          %391 = sbr.rel (%p389) target = $region32
        $region31: #{tpu_custom_call.1} parent=11 // pred_region
          _
        $region32: #{tpu_custom_call.1} parent=11 // pred_fallthru
          _
        // Predicated region
        $region33: #{tpu_custom_call.1} parent=11 // pred_check
          %p392 = pneg %p205
        $region34: #{tpu_custom_call.1} parent=11 // pred_check_branch
          %394 = sbr.rel (%p392) target = $region36
        $region35: #{tpu_custom_call.1} parent=11 // pred_region
          _
        $region36: #{tpu_custom_call.1} parent=11 // pred_fallthru
          _
        // Predicated region
        $region37: #{tpu_custom_call.1} parent=11 // pred_check
          %p395 = pneg %p226
        $region38: #{tpu_custom_call.1} parent=11 // pred_check_branch
          %397 = sbr.rel (%p395) target = $region40
        $region39: #{tpu_custom_call.1} parent=11 // pred_region
          _
        $region40: #{tpu_custom_call.1} parent=11 // pred_fallthru
          _
        // Predicated region
        $region41: #{tpu_custom_call.1} parent=11 // pred_check
          %p398 = pneg %p247
        $region42: #{tpu_custom_call.1} parent=11 // pred_check_branch
          %400 = sbr.rel (%p398) target = $region44
        $region43: #{tpu_custom_call.1} parent=11 // pred_region
          _
        $region44: #{tpu_custom_call.1} parent=11 // pred_fallthru
          _
        // Predicated region
        $region45: #{tpu_custom_call.1} parent=11 // pred_check
          %p401 = pneg %p268
        $region46: #{tpu_custom_call.1} parent=11 // pred_check_branch
          %403 = sbr.rel (%p401) target = $region48
        $region47: #{tpu_custom_call.1} parent=11 // pred_region
          _
        $region48: #{tpu_custom_call.1} parent=11 // pred_fallthru
          _
        // Predicated region
        $region49: #{tpu_custom_call.1} parent=11 // pred_check
          %p404 = pneg %p289
        $region50: #{tpu_custom_call.1} parent=11 // pred_check_branch
          %406 = sbr.rel (%p404) target = $region52
        $region51: #{tpu_custom_call.1} parent=11 // pred_region
          _
        $region52: #{tpu_custom_call.1} parent=11 // pred_fallthru
          _
        // Predicated region
        $region53: #{tpu_custom_call.1} parent=11 // pred_check
          %p407 = pneg %p310
        $region54: #{tpu_custom_call.1} parent=11 // pred_check_branch
          %409 = sbr.rel (%p407) target = $region56
        $region55: #{tpu_custom_call.1} parent=11 // pred_region
          _
        $region56: #{tpu_custom_call.1} parent=11 // pred_fallthru
          _
      $region12: #{tpu_custom_call.1} parent=5 // pred_fallthru
        _
      %p410 = scmp.lt.s32.totalorder %s27, 2
      // Predicated region
      $region57: #{tpu_custom_call.1} parent=5 // pred_check
        %p411 = pneg %p410
      $region58: #{tpu_custom_call.1} parent=5 // pred_check_branch
        %413 = sbr.rel (%p411) target = $region60
      $region59: #{tpu_custom_call.1} parent=5 // pred_region
        // Predicated region
        $region61: #{tpu_custom_call.1} parent=59 // pred_check
          %p414 = pneg %p47
        $region62: #{tpu_custom_call.1} parent=59 // pred_check_branch
          %416 = sbr.rel (%p414) target = $region64
        $region63: #{tpu_custom_call.1} parent=59 // pred_region
          %p417 = scmp.lt.s32.totalorder %s27, 1
          %s418 = scalar_select %p417, %s27, 1
          %s419 = smul.addr %s418, 8
          %s420 = scalar_lea.vmem %s0, %s419
        $region64: #{tpu_custom_call.1} parent=59 // pred_fallthru
          _
        // Predicated region
        $region65: #{tpu_custom_call.1} parent=59 // pred_check
          %p421 = pneg %p73
        $region66: #{tpu_custom_call.1} parent=59 // pred_check_branch
          %423 = sbr.rel (%p421) target = $region68
        $region67: #{tpu_custom_call.1} parent=59 // pred_region
          %p424 = scmp.lt.s32.totalorder %s27, 1
          %s425 = scalar_select %p424, %s27, 1
          %s426 = smul.addr %s425, 2
          %s427 = smul.addr %s426, 8
          %s428 = scalar_lea.vmem %s1, %s427
        $region68: #{tpu_custom_call.1} parent=59 // pred_fallthru
          _
      $region60: #{tpu_custom_call.1} parent=5 // pred_fallthru
        _
      %p429 = scmp.le.s32.totalorder 1, %s27
      %p430 = scmp.lt.s32.totalorder %s27, 3
      %p431 = pnand %p429, %p430
      %p432 = pneg %p431
      // Predicated region
      $region69: #{tpu_custom_call.1} parent=5 // pred_check
        _
      $region70: #{tpu_custom_call.1} parent=5 // pred_check_branch
        %434 = sbr.rel (%p431) target = $region72
      $region71: #{tpu_custom_call.1} parent=5 // pred_region
        %s435 = ssub.s32 %s27, 1
        %p436 = scmp.lt.s32.totalorder %s32, 1
        %s437 = scalar_select %p436, %s32, 1
        %s438 = smul.addr %s437, 8
        %s439 = scalar_lea.vmem %s0, %s438
        %p440 = pneg %p53
        %p441 = pneg %p50
        %p442 = scmp.lt.s32.totalorder %s32, 1
        %s443 = scalar_select %p442, %s32, 1
        %s444 = smul.addr %s443, 2
        %s445 = smul.addr %s444, 8
        %s446 = scalar_lea.vmem %s1, %s445
        %p447 = pneg %p79
        %p448 = pneg %p76
        %p449 = pneg %p100
        %p450 = pneg %p97
        %p451 = pneg %p121
        %p452 = pneg %p118
        %p453 = pneg %p142
        %p454 = pneg %p139
        %p455 = pneg %p163
        %p456 = pneg %p160
        %p457 = pneg %p184
        %p458 = pneg %p181
        %p459 = pneg %p205
        %p460 = pneg %p202
        %p461 = pneg %p226
        %p462 = pneg %p223
        %p463 = pneg %p247
        %p464 = pneg %p244
        %p465 = pneg %p268
        %p466 = pneg %p265
        %p467 = pneg %p289
        %p468 = pneg %p286
        %p469 = pneg %p310
        %p470 = pneg %p307
        %p471 = pneg %p336
        %p472 = pneg %p333
        %s473 = sand.u32 %s323, 1
        %s474 = scalar_lea.sflag [#allocation3], %s473
        %s475 = sand.u32 %s323, 1
        %s476 = smul.addr %s475, 8
        %s477 = scalar_lea.vmem [#allocation2], %s476
        %p478 = pneg %p362
        %p479 = pneg %p359
        %s480 = sand.u32 %s349, 1
        %s481 = scalar_lea.sflag [#allocation5], %s480
        %s482 = sand.u32 %s349, 1
        %s483 = smul.addr %s482, 8
        %s484 = scalar_lea.vmem [#allocation4], %s483
        %p485 = scmp.lt.s32.totalorder %s32, 1
        %s486 = scalar_select %p485, %s32, 1
        %s487 = smul.addr %s486, 8
        %s488 = scalar_lea.vmem %s0, %s487
        %p489 = scmp.lt.s32.totalorder %s32, 1
        %s490 = scalar_select %p489, %s32, 1
        %s491 = smul.addr %s490, 2
        %s492 = smul.addr %s491, 8
        %s493 = scalar_lea.vmem %s1, %s492
        %v494 = vld [vmem:[%s488] sm:$0xff]
        %v495 = vld [vmem:[%s2] sm:$0xff]
        %v496 = vld [vmem:[%s3] sm:$0xff]
        %v497 = vld [vmem:[%s3 + $0x8] sm:$0xff]
        %v498 = vld [vmem:[%s3 + $0x10] sm:$0xff]
        %v499 = vld [vmem:[%s3 + $0x18] sm:$0xff]
        %v500 = vld [vmem:[%s3 + $0x20] sm:$0xff]
        %v501 = vld [vmem:[%s3 + $0x28] sm:$0xff]
        %v502 = vld [vmem:[%s3 + $0x30] sm:$0xff]
        %v503 = vld [vmem:[%s3 + $0x38] sm:$0xff]
        %v504 = vld [vmem:[%s3 + $0x40] sm:$0xff]
        %v505 = vld [vmem:[%s3 + $0x48] sm:$0xff]
        %v506 = vld [vmem:[%s3 + $0x50] sm:$0xff]
        %v507 = vld [vmem:[%s3 + $0x58] sm:$0xff]
        %vm508 = vcmask 261120
        %v510 = vsel %vm508, %v494, 0
        %512 = vmatprep.subr.mxu0 %v497
        %513 = vmatpush1.msra.mxu0 %v496
        %514 = vmatprep.subr.mxu0 %v500
        %515 = vmatpush1.msra.mxu0 %v499
        %516 = vmatprep.subr.mxu0 %v503
        %517 = vmatpush1.msra.mxu0 %v502
        %518 = vmatprep.subr.mxu0 %v506
        %519 = vmatpush1.msra.mxu0 %v505
        %520 = vmatprep.subr.mxu0 0.0
        %521 = vmatpush1.msra.mxu0 0.0
        %522 = vmatprep.subr.mxu0 0.0
        %523 = vmatpush1.msra.mxu0 0.0
        %524 = vmatprep.subr.mxu0 0.0
        %525 = vmatpush1.msra.mxu0 0.0
        %526 = vmatprep.subr.mxu0 0.0
        %527 = vmatpush1.msra.mxu0 0.0
        %528 = vmatprep.subr.mxu0 0.0
        %529 = vmatpush1.msra.mxu0 0.0
        %530 = vmatprep.subr.mxu0 0.0
        %531 = vmatpush1.msra.mxu0 0.0
        %532 = vmatprep.subr.mxu0 0.0
        %533 = vmatpush1.msra.mxu0 0.0
        %534 = vmatprep.subr.mxu0 0.0
        %535 = vmatpush1.msra.mxu0 0.0
        %536 = vmatprep.subr.mxu0 0.0
        %537 = vmatpush1.msra.mxu0 0.0
        %538 = vmatprep.subr.mxu0 0.0
        %539 = vmatpush1.msra.mxu0 0.0
        %540 = vmatprep.subr.mxu0 0.0
        %541 = vmatpush1.msra.mxu0 0.0
        %542 = vmatprep.subr.mxu0 0.0
        %543 = vmatpush1.msra.mxu0 0.0
        %544 = vmatprep.subr.mxu0 0.0
        %545 = vmatpush1.msra.mxu0 0.0
        %546 = vmatprep.subr.mxu0 0.0
        %547 = vmatpush1.msra.mxu0 0.0
        %548 = vmatprep.subr.mxu0 0.0
        %549 = vmatpush1.msra.mxu0 0.0
        %550 = vmatprep.subr.mxu0 0.0
        %551 = vmatpush1.msra.mxu0 0.0
        %552 = vmatprep.subr.mxu0 0.0
        %553 = vmatpush1.msra.mxu0 0.0
        %554 = vmatprep.subr.mxu0 0.0
        %555 = vmatpush1.msra.mxu0 0.0
        %556 = vmatprep.subr.mxu0 0.0
        %557 = vmatpush1.msra.mxu0 0.0
        %558 = vmatprep.subr.mxu0 0.0
        %559 = vmatpush1.msra.mxu0 0.0
        %560 = vmatprep.subr.mxu0 0.0
        %561 = vmatpush1.msra.mxu0 0.0
        %562 = vmatprep.subr.mxu0 0.0
        %563 = vmatpush1.msra.mxu0 0.0
        %564 = vmatprep.subr.mxu0 0.0
        %565 = vmatpush1.msra.mxu0 0.0
        %566 = vmatprep.subr.mxu0 0.0
        %567 = vmatpush1.msra.mxu0 0.0
        %568 = vmatprep.subr.mxu0 0.0
        %569 = vmatpush1.msra.mxu0 0.0
        %570 = vmatprep.subr.mxu0 0.0
        %571 = vmatpush1.msra.mxu0 0.0
        %572 = vmatprep.subr.mxu0 0.0
        %573 = vmatpush1.msra.mxu0 0.0
        %574 = vmatprep.subr.mxu0 0.0
        %575 = vmatpush1.msra.mxu0 0.0
        %576 = vmatprep.mubr.f32.mxu0 0.0
        %577 = vmatmul.mubr.f32.gmra.mrb[0].mxu0 %v510
        %v578 = vpop.f32.mrb[0].mxu0
        %v579 = vadd.f32 0.0, %v578
        %v580 = vpop.f32.mrb[0].mxu0
        %v581 = vadd.f32 0.0, %v580
        %582 = vdwg.mxu0
        %583 = vmatprep.subr.mxu0 0.0
        %584 = vmatpush1.msra.mxu0 %v498
        %585 = vmatprep.subr.mxu0 0.0
        %586 = vmatpush1.msra.mxu0 %v501
        %587 = vmatprep.subr.mxu0 0.0
        %588 = vmatpush1.msra.mxu0 %v504
        %589 = vmatprep.subr.mxu0 0.0
        %590 = vmatpush1.msra.mxu0 %v507
        %591 = vmatprep.subr.mxu0 0.0
        %592 = vmatpush1.msra.mxu0 0.0
        %593 = vmatprep.subr.mxu0 0.0
        %594 = vmatpush1.msra.mxu0 0.0
        %595 = vmatprep.subr.mxu0 0.0
        %596 = vmatpush1.msra.mxu0 0.0
        %597 = vmatprep.subr.mxu0 0.0
        %598 = vmatpush1.msra.mxu0 0.0
        %599 = vmatprep.subr.mxu0 0.0
        %600 = vmatpush1.msra.mxu0 0.0
        %601 = vmatprep.subr.mxu0 0.0
        %602 = vmatpush1.msra.mxu0 0.0
        %603 = vmatprep.subr.mxu0 0.0
        %604 = vmatpush1.msra.mxu0 0.0
        %605 = vmatprep.subr.mxu0 0.0
        %606 = vmatpush1.msra.mxu0 0.0
        %607 = vmatprep.subr.mxu0 0.0
        %608 = vmatpush1.msra.mxu0 0.0
        %609 = vmatprep.subr.mxu0 0.0
        %610 = vmatpush1.msra.mxu0 0.0
        %611 = vmatprep.subr.mxu0 0.0
        %612 = vmatpush1.msra.mxu0 0.0
        %613 = vmatprep.subr.mxu0 0.0
        %614 = vmatpush1.msra.mxu0 0.0
        %615 = vmatprep.subr.mxu0 0.0
        %616 = vmatpush1.msra.mxu0 0.0
        %617 = vmatprep.subr.mxu0 0.0
        %618 = vmatpush1.msra.mxu0 0.0
        %619 = vmatprep.subr.mxu0 0.0
        %620 = vmatpush1.msra.mxu0 0.0
        %621 = vmatprep.subr.mxu0 0.0
        %622 = vmatpush1.msra.mxu0 0.0
        %623 = vmatprep.subr.mxu0 0.0
        %624 = vmatpush1.msra.mxu0 0.0
        %625 = vmatprep.subr.mxu0 0.0
        %626 = vmatpush1.msra.mxu0 0.0
        %627 = vmatprep.subr.mxu0 0.0
        %628 = vmatpush1.msra.mxu0 0.0
        %629 = vmatprep.subr.mxu0 0.0
        %630 = vmatpush1.msra.mxu0 0.0
        %631 = vmatprep.subr.mxu0 0.0
        %632 = vmatpush1.msra.mxu0 0.0
        %633 = vmatprep.subr.mxu0 0.0
        %634 = vmatpush1.msra.mxu0 0.0
        %635 = vmatprep.subr.mxu0 0.0
        %636 = vmatpush1.msra.mxu0 0.0
        %637 = vmatprep.subr.mxu0 0.0
        %638 = vmatpush1.msra.mxu0 0.0
        %639 = vmatprep.subr.mxu0 0.0
        %640 = vmatpush1.msra.mxu0 0.0
        %641 = vmatprep.subr.mxu0 0.0
        %642 = vmatpush1.msra.mxu0 0.0
        %643 = vmatprep.subr.mxu0 0.0
        %644 = vmatpush1.msra.mxu0 0.0
        %645 = vmatprep.subr.mxu0 0.0
        %646 = vmatpush1.msra.mxu0 0.0
        %647 = vmatprep.mubr.f32.mxu0 0.0
        %648 = vmatmul.mubr.f32.gmra.mrb[0].mxu0 %v510
        %v649 = vpop.f32.mrb[0].mxu0
        %v650 = vadd.f32 0.0, %v649
        %v651 = vpop.f32.mrb[0].mxu0
        %652 = vdwg.mxu0
        %653 = vmatprep.subr.mxu0 0.0
        %654 = vmatpush1.xpose.msra.mxu0 %v581
        %655 = vmatprep.subr.mxu0 0.0
        %656 = vmatpush1.xpose.msra.mxu0 0.0
        %657 = vmatprep.subr.mxu0 0.0
        %658 = vmatpush1.xpose.msra.mxu0 0.0
        %659 = vmatprep.subr.mxu0 0.0
        %660 = vmatpush1.xpose.msra.mxu0 0.0
        %661 = vmatprep.subr.mxu0 0.0
        %662 = vmatpush1.xpose.msra.mxu0 0.0
        %663 = vmatprep.subr.mxu0 0.0
        %664 = vmatpush1.xpose.msra.mxu0 0.0
        %665 = vmatprep.subr.mxu0 0.0
        %666 = vmatpush1.xpose.msra.mxu0 0.0
        %667 = vmatprep.subr.mxu0 0.0
        %668 = vmatpush1.xpose.msra.mxu0 0.0
        %669 = vmatprep.subr.mxu0 0.0
        %670 = vmatpush1.xpose.msra.mxu0 0.0
        %671 = vmatprep.subr.mxu0 0.0
        %672 = vmatpush1.xpose.msra.mxu0 0.0
        %673 = vmatprep.subr.mxu0 0.0
        %674 = vmatpush1.xpose.msra.mxu0 0.0
        %675 = vmatprep.subr.mxu0 0.0
        %676 = vmatpush1.xpose.msra.mxu0 0.0
        %677 = vmatprep.subr.mxu0 0.0
        %678 = vmatpush1.xpose.msra.mxu0 0.0
        %679 = vmatprep.subr.mxu0 0.0
        %680 = vmatpush1.xpose.msra.mxu0 0.0
        %681 = vmatprep.subr.mxu0 0.0
        %682 = vmatpush1.xpose.msra.mxu0 0.0
        %683 = vmatprep.subr.mxu0 0.0
        %684 = vmatpush1.xpose.msra.mxu0 0.0
        %685 = vmatprep.subr.mxu0 0.0
        %686 = vmatpush1.xpose.msra.mxu0 0.0
        %687 = vmatprep.subr.mxu0 0.0
        %688 = vmatpush1.xpose.msra.mxu0 0.0
        %689 = vmatprep.subr.mxu0 0.0
        %690 = vmatpush1.xpose.msra.mxu0 0.0
        %691 = vmatprep.subr.mxu0 0.0
        %692 = vmatpush1.xpose.msra.mxu0 0.0
        %693 = vmatprep.subr.mxu0 0.0
        %694 = vmatpush1.xpose.msra.mxu0 0.0
        %695 = vmatprep.subr.mxu0 0.0
        %696 = vmatpush1.xpose.msra.mxu0 0.0
        %697 = vmatprep.subr.mxu0 0.0
        %698 = vmatpush1.xpose.msra.mxu0 0.0
        %699 = vmatprep.subr.mxu0 0.0
        %700 = vmatpush1.xpose.msra.mxu0 0.0
        %701 = vmatprep.subr.mxu0 0.0
        %702 = vmatpush1.xpose.msra.mxu0 0.0
        %703 = vmatprep.subr.mxu0 0.0
        %704 = vmatpush1.xpose.msra.mxu0 0.0
        %705 = vmatprep.subr.mxu0 0.0
        %706 = vmatpush1.xpose.msra.mxu0 0.0
        %707 = vmatprep.subr.mxu0 0.0
        %708 = vmatpush1.xpose.msra.mxu0 0.0
        %709 = vmatprep.subr.mxu0 0.0
        %710 = vmatpush1.xpose.msra.mxu0 0.0
        %711 = vmatprep.subr.mxu0 0.0
        %712 = vmatpush1.xpose.msra.mxu0 0.0
        %713 = vmatprep.subr.mxu0 0.0
        %714 = vmatpush1.xpose.msra.mxu0 0.0
        %715 = vmatprep.subr.mxu0 0.0
        %716 = vmatpush1.xpose.msra.mxu0 0.0
        %717 = vmatprep.mubr.f32.mxu0 0.0
        %718 = vmatmul.mubr.f32.gmra.mrb[0].mxu0 %v579
        %v719 = vpop.f32.mrb[0].mxu0
        %v720 = vadd.f32 0.0, %v719
        %v721 = vpop.f32.mrb[0].mxu0
        %722 = vdwg.mxu0
        %vm723 = vcmask 64512
        %v724 = vsel %vm723, %v720, -inf
        %725 = vmax.xlane.f32.xlu0 %v724
        %v726 = vpop.xlane.xlu0 %725
        %v727 = vsub.f32 %v720, %v726
        %v728 = vmul.f32 %v727, 1.442695
        %v729 = vpow.pop %v728
        %v730 = vsel %vm723, %v729, 0.0
        %731 = vadd.xlane.f32.xlu0 %v730
        %v732 = vpop.xlane.xlu0 %731
        %v733 = vrcp.pop %v732
        %v734 = vmul.f32 %v729, %v733
        %v736 = vsel %vm723, %v734, 0
        %738 = vmatprep.subr.mxu0 0.0
        %739 = vmatpush1.msra.mxu0 %v650
        %740 = vmatprep.subr.mxu0 0.0
        %741 = vmatpush1.msra.mxu0 0.0
        %742 = vmatprep.subr.mxu0 0.0
        %743 = vmatpush1.msra.mxu0 0.0
        %744 = vmatprep.subr.mxu0 0.0
        %745 = vmatpush1.msra.mxu0 0.0
        %746 = vmatprep.subr.mxu0 0.0
        %747 = vmatpush1.msra.mxu0 0.0
        %748 = vmatprep.subr.mxu0 0.0
        %749 = vmatpush1.msra.mxu0 0.0
        %750 = vmatprep.subr.mxu0 0.0
        %751 = vmatpush1.msra.mxu0 0.0
        %752 = vmatprep.subr.mxu0 0.0
        %753 = vmatpush1.msra.mxu0 0.0
        %754 = vmatprep.subr.mxu0 0.0
        %755 = vmatpush1.msra.mxu0 0.0
        %756 = vmatprep.subr.mxu0 0.0
        %757 = vmatpush1.msra.mxu0 0.0
        %758 = vmatprep.subr.mxu0 0.0
        %759 = vmatpush1.msra.mxu0 0.0
        %760 = vmatprep.subr.mxu0 0.0
        %761 = vmatpush1.msra.mxu0 0.0
        %762 = vmatprep.subr.mxu0 0.0
        %763 = vmatpush1.msra.mxu0 0.0
        %764 = vmatprep.subr.mxu0 0.0
        %765 = vmatpush1.msra.mxu0 0.0
        %766 = vmatprep.subr.mxu0 0.0
        %767 = vmatpush1.msra.mxu0 0.0
        %768 = vmatprep.subr.mxu0 0.0
        %769 = vmatpush1.msra.mxu0 0.0
        %770 = vmatprep.subr.mxu0 0.0
        %771 = vmatpush1.msra.mxu0 0.0
        %772 = vmatprep.subr.mxu0 0.0
        %773 = vmatpush1.msra.mxu0 0.0
        %774 = vmatprep.subr.mxu0 0.0
        %775 = vmatpush1.msra.mxu0 0.0
        %776 = vmatprep.subr.mxu0 0.0
        %777 = vmatpush1.msra.mxu0 0.0
        %778 = vmatprep.subr.mxu0 0.0
        %779 = vmatpush1.msra.mxu0 0.0
        %780 = vmatprep.subr.mxu0 0.0
        %781 = vmatpush1.msra.mxu0 0.0
        %782 = vmatprep.subr.mxu0 0.0
        %783 = vmatpush1.msra.mxu0 0.0
        %784 = vmatprep.subr.mxu0 0.0
        %785 = vmatpush1.msra.mxu0 0.0
        %786 = vmatprep.subr.mxu0 0.0
        %787 = vmatpush1.msra.mxu0 0.0
        %788 = vmatprep.subr.mxu0 0.0
        %789 = vmatpush1.msra.mxu0 0.0
        %790 = vmatprep.subr.mxu0 0.0
        %791 = vmatpush1.msra.mxu0 0.0
        %792 = vmatprep.subr.mxu0 0.0
        %793 = vmatpush1.msra.mxu0 0.0
        %794 = vmatprep.subr.mxu0 0.0
        %795 = vmatpush1.msra.mxu0 0.0
        %796 = vmatprep.subr.mxu0 0.0
        %797 = vmatpush1.msra.mxu0 0.0
        %798 = vmatprep.subr.mxu0 0.0
        %799 = vmatpush1.msra.mxu0 0.0
        %800 = vmatprep.subr.mxu0 0.0
        %801 = vmatpush1.msra.mxu0 0.0
        %802 = vmatprep.mubr.f32.mxu0 0.0
        %803 = vmatmul.mubr.f32.gmra.mrb[0].mxu0 %v736
        %v804 = vpop.f32.mrb[0].mxu0
        %v805 = vadd.f32 0.0, %v804
        %v806 = vpop.f32.mrb[0].mxu0
        %807 = vdwg.mxu0
        %v808 = vld [vmem:[%s4] sm:$0xff]
        %v809 = vld [vmem:[%s4 + $0x8] sm:$0xff]
        %v810 = vld [vmem:[%s4 + $0x10] sm:$0xff]
        %v811 = vld [vmem:[%s4 + $0x18] sm:$0xff]
        %v812 = vld [vmem:[%s4 + $0x20] sm:$0xff]
        %v813 = vld [vmem:[%s4 + $0x28] sm:$0xff]
        %v814 = vld [vmem:[%s4 + $0x30] sm:$0xff]
        %v815 = vld [vmem:[%s4 + $0x38] sm:$0xff]
        %v816 = vld [vmem:[%s4 + $0x40] sm:$0xff]
        %v817 = vld [vmem:[%s4 + $0x48] sm:$0xff]
        %v818 = vld [vmem:[%s4 + $0x50] sm:$0xff]
        %v819 = vld [vmem:[%s4 + $0x58] sm:$0xff]
        %v820 = vld [vmem:[%s4 + $0x60] sm:$0xff]
        %v821 = vld [vmem:[%s4 + $0x68] sm:$0xff]
        %v822 = vld [vmem:[%s4 + $0x70] sm:$0xff]
        %v823 = vld [vmem:[%s4 + $0x78] sm:$0xff]
        %824 = vmatprep.subr.mxu0 0.0
        %825 = vmatpush1.msra.mxu0 %v808
        %826 = vmatprep.subr.mxu0 0.0
        %827 = vmatpush1.msra.mxu0 %v809
        %828 = vmatprep.subr.mxu0 0.0
        %829 = vmatpush1.msra.mxu0 %v810
        %830 = vmatprep.subr.mxu0 0.0
        %831 = vmatpush1.msra.mxu0 %v811
        %832 = vmatprep.subr.mxu0 0.0
        %833 = vmatpush1.msra.mxu0 %v812
        %834 = vmatprep.subr.mxu0 0.0
        %835 = vmatpush1.msra.mxu0 %v813
        %836 = vmatprep.subr.mxu0 0.0
        %837 = vmatpush1.msra.mxu0 %v814
        %838 = vmatprep.subr.mxu0 0.0
        %839 = vmatpush1.msra.mxu0 %v815
        %840 = vmatprep.subr.mxu0 0.0
        %841 = vmatpush1.msra.mxu0 %v816
        %842 = vmatprep.subr.mxu0 0.0
        %843 = vmatpush1.msra.mxu0 %v817
        %844 = vmatprep.subr.mxu0 0.0
        %845 = vmatpush1.msra.mxu0 %v818
        %846 = vmatprep.subr.mxu0 0.0
        %847 = vmatpush1.msra.mxu0 %v819
        %848 = vmatprep.subr.mxu0 0.0
        %849 = vmatpush1.msra.mxu0 %v820
        %850 = vmatprep.subr.mxu0 0.0
        %851 = vmatpush1.msra.mxu0 %v821
        %852 = vmatprep.subr.mxu0 0.0
        %853 = vmatpush1.msra.mxu0 %v822
        %854 = vmatprep.subr.mxu0 0.0
        %855 = vmatpush1.msra.mxu0 %v823
        %856 = vmatprep.subr.mxu0 0.0
        %857 = vmatpush1.msra.mxu0 0.0
        %858 = vmatprep.subr.mxu0 0.0
        %859 = vmatpush1.msra.mxu0 0.0
        %860 = vmatprep.subr.mxu0 0.0
        %861 = vmatpush1.msra.mxu0 0.0
        %862 = vmatprep.subr.mxu0 0.0
        %863 = vmatpush1.msra.mxu0 0.0
        %864 = vmatprep.subr.mxu0 0.0
        %865 = vmatpush1.msra.mxu0 0.0
        %866 = vmatprep.subr.mxu0 0.0
        %867 = vmatpush1.msra.mxu0 0.0
        %868 = vmatprep.subr.mxu0 0.0
        %869 = vmatpush1.msra.mxu0 0.0
        %870 = vmatprep.subr.mxu0 0.0
        %871 = vmatpush1.msra.mxu0 0.0
        %872 = vmatprep.subr.mxu0 0.0
        %873 = vmatpush1.msra.mxu0 0.0
        %874 = vmatprep.subr.mxu0 0.0
        %875 = vmatpush1.msra.mxu0 0.0
        %876 = vmatprep.subr.mxu0 0.0
        %877 = vmatpush1.msra.mxu0 0.0
        %878 = vmatprep.subr.mxu0 0.0
        %879 = vmatpush1.msra.mxu0 0.0
        %880 = vmatprep.subr.mxu0 0.0
        %881 = vmatpush1.msra.mxu0 0.0
        %882 = vmatprep.subr.mxu0 0.0
        %883 = vmatpush1.msra.mxu0 0.0
        %884 = vmatprep.subr.mxu0 0.0
        %885 = vmatpush1.msra.mxu0 0.0
        %886 = vmatprep.subr.mxu0 0.0
        %887 = vmatpush1.msra.mxu0 0.0
        %888 = vmatprep.mubr.f32.mxu0 0.0
        %889 = vmatmul.mubr.f32.gmra.mrb[0].mxu0 %v805
        %v890 = vpop.f32.mrb[0].mxu0
        %v891 = vadd.f32 0.0, %v890
        %v892 = vpop.f32.mrb[0].mxu0
        %893 = vdwg.mxu0
        %v894 = vadd.f32 %v494, %v891
        %v896 = vsel %vm723, %v495, 0
        %898 = vmatprep.subr.mxu0 0.0
        %899 = vmatpush1.msra.mxu0 %v894
        %900 = vmatprep.subr.mxu0 0.0
        %901 = vmatpush1.msra.mxu0 0.0
        %902 = vmatprep.subr.mxu0 0.0
        %903 = vmatpush1.msra.mxu0 0.0
        %904 = vmatprep.subr.mxu0 0.0
        %905 = vmatpush1.msra.mxu0 0.0
        %906 = vmatprep.subr.mxu0 0.0
        %907 = vmatpush1.msra.mxu0 0.0
        %908 = vmatprep.subr.mxu0 0.0
        %909 = vmatpush1.msra.mxu0 0.0
        %910 = vmatprep.subr.mxu0 0.0
        %911 = vmatpush1.msra.mxu0 0.0
        %912 = vmatprep.subr.mxu0 0.0
        %913 = vmatpush1.msra.mxu0 0.0
        %914 = vmatprep.subr.mxu0 0.0
        %915 = vmatpush1.msra.mxu0 0.0
        %916 = vmatprep.subr.mxu0 0.0
        %917 = vmatpush1.msra.mxu0 0.0
        %918 = vmatprep.subr.mxu0 0.0
        %919 = vmatpush1.msra.mxu0 0.0
        %920 = vmatprep.subr.mxu0 0.0
        %921 = vmatpush1.msra.mxu0 0.0
        %922 = vmatprep.subr.mxu0 0.0
        %923 = vmatpush1.msra.mxu0 0.0
        %924 = vmatprep.subr.mxu0 0.0
        %925 = vmatpush1.msra.mxu0 0.0
        %926 = vmatprep.subr.mxu0 0.0
        %927 = vmatpush1.msra.mxu0 0.0
        %928 = vmatprep.subr.mxu0 0.0
        %929 = vmatpush1.msra.mxu0 0.0
        %930 = vmatprep.subr.mxu0 0.0
        %931 = vmatpush1.msra.mxu0 0.0
        %932 = vmatprep.subr.mxu0 0.0
        %933 = vmatpush1.msra.mxu0 0.0
        %934 = vmatprep.subr.mxu0 0.0
        %935 = vmatpush1.msra.mxu0 0.0
        %936 = vmatprep.subr.mxu0 0.0
        %937 = vmatpush1.msra.mxu0 0.0
        %938 = vmatprep.subr.mxu0 0.0
        %939 = vmatpush1.msra.mxu0 0.0
        %940 = vmatprep.subr.mxu0 0.0
        %941 = vmatpush1.msra.mxu0 0.0
        %942 = vmatprep.subr.mxu0 0.0
        %943 = vmatpush1.msra.mxu0 0.0
        %944 = vmatprep.subr.mxu0 0.0
        %945 = vmatpush1.msra.mxu0 0.0
        %946 = vmatprep.subr.mxu0 0.0
        %947 = vmatpush1.msra.mxu0 0.0
        %948 = vmatprep.subr.mxu0 0.0
        %949 = vmatpush1.msra.mxu0 0.0
        %950 = vmatprep.subr.mxu0 0.0
        %951 = vmatpush1.msra.mxu0 0.0
        %952 = vmatprep.subr.mxu0 0.0
        %953 = vmatpush1.msra.mxu0 0.0
        %954 = vmatprep.subr.mxu0 0.0
        %955 = vmatpush1.msra.mxu0 0.0
        %956 = vmatprep.subr.mxu0 0.0
        %957 = vmatpush1.msra.mxu0 0.0
        %958 = vmatprep.subr.mxu0 0.0
        %959 = vmatpush1.msra.mxu0 0.0
        %960 = vmatprep.subr.mxu0 0.0
        %961 = vmatpush1.msra.mxu0 0.0
        %962 = vmatprep.mubr.f32.mxu0 0.0
        %963 = vmatmul.mubr.f32.gmra.mrb[0].mxu0 %v896
        %v964 = vpop.f32.mrb[0].mxu0
        %v965 = vadd.f32 0.0, %v964
        %v966 = vpop.f32.mrb[0].mxu0
        %967 = vdwg.mxu0
        %v968 = vsub.f32 %v894, %v965
        %v969 = vld [vmem:[%s5] sm:$0xff]
        %v970 = vld [vmem:[%s5 + $0x8] sm:$0xff]
        %v971 = vld [vmem:[%s5 + $0x10] sm:$0xff]
        %v972 = vld [vmem:[%s5 + $0x18] sm:$0xff]
        %v974 = vsel %vm508, %v968, 0
        %976 = vmatprep.subr.mxu0 0.0
        %977 = vmatpush1.msra.mxu0 %v969
        %978 = vmatprep.subr.mxu0 0.0
        %979 = vmatpush1.msra.mxu0 %v970
        %980 = vmatprep.subr.mxu0 0.0
        %981 = vmatpush1.msra.mxu0 %v971
        %982 = vmatprep.subr.mxu0 0.0
        %983 = vmatpush1.msra.mxu0 %v972
        %984 = vmatprep.subr.mxu0 0.0
        %985 = vmatpush1.msra.mxu0 0.0
        %986 = vmatprep.subr.mxu0 0.0
        %987 = vmatpush1.msra.mxu0 0.0
        %988 = vmatprep.subr.mxu0 0.0
        %989 = vmatpush1.msra.mxu0 0.0
        %990 = vmatprep.subr.mxu0 0.0
        %991 = vmatpush1.msra.mxu0 0.0
        %992 = vmatprep.subr.mxu0 0.0
        %993 = vmatpush1.msra.mxu0 0.0
        %994 = vmatprep.subr.mxu0 0.0
        %995 = vmatpush1.msra.mxu0 0.0
        %996 = vmatprep.subr.mxu0 0.0
        %997 = vmatpush1.msra.mxu0 0.0
        %998 = vmatprep.subr.mxu0 0.0
        %999 = vmatpush1.msra.mxu0 0.0
        %1000 = vmatprep.subr.mxu0 0.0
        %1001 = vmatpush1.msra.mxu0 0.0
        %1002 = vmatprep.subr.mxu0 0.0
        %1003 = vmatpush1.msra.mxu0 0.0
        %1004 = vmatprep.subr.mxu0 0.0
        %1005 = vmatpush1.msra.mxu0 0.0
        %1006 = vmatprep.subr.mxu0 0.0
        %1007 = vmatpush1.msra.mxu0 0.0
        %1008 = vmatprep.subr.mxu0 0.0
        %1009 = vmatpush1.msra.mxu0 0.0
        %1010 = vmatprep.subr.mxu0 0.0
        %1011 = vmatpush1.msra.mxu0 0.0
        %1012 = vmatprep.subr.mxu0 0.0
        %1013 = vmatpush1.msra.mxu0 0.0
        %1014 = vmatprep.subr.mxu0 0.0
        %1015 = vmatpush1.msra.mxu0 0.0
        %1016 = vmatprep.subr.mxu0 0.0
        %1017 = vmatpush1.msra.mxu0 0.0
        %1018 = vmatprep.subr.mxu0 0.0
        %1019 = vmatpush1.msra.mxu0 0.0
        %1020 = vmatprep.subr.mxu0 0.0
        %1021 = vmatpush1.msra.mxu0 0.0
        %1022 = vmatprep.subr.mxu0 0.0
        %1023 = vmatpush1.msra.mxu0 0.0
        %1024 = vmatprep.subr.mxu0 0.0
        %1025 = vmatpush1.msra.mxu0 0.0
        %1026 = vmatprep.subr.mxu0 0.0
        %1027 = vmatpush1.msra.mxu0 0.0
        %1028 = vmatprep.subr.mxu0 0.0
        %1029 = vmatpush1.msra.mxu0 0.0
        %1030 = vmatprep.subr.mxu0 0.0
        %1031 = vmatpush1.msra.mxu0 0.0
        %1032 = vmatprep.subr.mxu0 0.0
        %1033 = vmatpush1.msra.mxu0 0.0
        %1034 = vmatprep.subr.mxu0 0.0
        %1035 = vmatpush1.msra.mxu0 0.0
        %1036 = vmatprep.subr.mxu0 0.0
        %1037 = vmatpush1.msra.mxu0 0.0
        %1038 = vmatprep.subr.mxu0 0.0
        %1039 = vmatpush1.msra.mxu0 0.0
        %1040 = vmatprep.mubr.f32.mxu0 0.0
        %1041 = vmatmul.mubr.f32.gmra.mrb[0].mxu0 %v974
        %v1042 = vpop.f32.mrb[0].mxu0
        %v1043 = vadd.f32 0.0, %v1042
        %v1044 = vpop.f32.mrb[0].mxu0
        %1045 = vdwg.mxu0
        %v1046 = vld [vmem:[%s493] sm:$0xff]
        %v1047 = vld [vmem:[%s493 + $0x8] sm:$0xff]
        %v1048 = vld [vmem:[%s6] sm:$0xff]
        %v1049 = vld [vmem:[%s6 + $0x8] sm:$0xff]
        %v1050 = vld [vmem:[%s6 + $0x10] sm:$0xff]
        %v1051 = vld [vmem:[%s6 + $0x18] sm:$0xff]
        %v1052 = vld [vmem:[%s6 + $0x20] sm:$0xff]
        %v1053 = vld [vmem:[%s6 + $0x28] sm:$0xff]
        %v1054 = vld [vmem:[%s6 + $0x30] sm:$0xff]
        %v1055 = vld [vmem:[%s6 + $0x38] sm:$0xff]
        %v1057 = vsel %vm508, %v1046, 0
        %v1060 = vsel %vm508, %v1047, 0
        %1062 = vmatprep.subr.mxu0 %v1049
        %1063 = vmatpush1.msra.mxu0 %v1048
        %1064 = vmatprep.subr.mxu0 %v1051
        %1065 = vmatpush1.msra.mxu0 %v1050
        %1066 = vmatprep.subr.mxu0 %v1053
        %1067 = vmatpush1.msra.mxu0 %v1052
        %1068 = vmatprep.subr.mxu0 %v1055
        %1069 = vmatpush1.msra.mxu0 %v1054
        %1070 = vmatprep.subr.mxu0 0.0
        %1071 = vmatpush1.msra.mxu0 0.0
        %1072 = vmatprep.subr.mxu0 0.0
        %1073 = vmatpush1.msra.mxu0 0.0
        %1074 = vmatprep.subr.mxu0 0.0
        %1075 = vmatpush1.msra.mxu0 0.0
        %1076 = vmatprep.subr.mxu0 0.0
        %1077 = vmatpush1.msra.mxu0 0.0
        %1078 = vmatprep.subr.mxu0 0.0
        %1079 = vmatpush1.msra.mxu0 0.0
        %1080 = vmatprep.subr.mxu0 0.0
        %1081 = vmatpush1.msra.mxu0 0.0
        %1082 = vmatprep.subr.mxu0 0.0
        %1083 = vmatpush1.msra.mxu0 0.0
        %1084 = vmatprep.subr.mxu0 0.0
        %1085 = vmatpush1.msra.mxu0 0.0
        %1086 = vmatprep.subr.mxu0 0.0
        %1087 = vmatpush1.msra.mxu0 0.0
        %1088 = vmatprep.subr.mxu0 0.0
        %1089 = vmatpush1.msra.mxu0 0.0
        %1090 = vmatprep.subr.mxu0 0.0
        %1091 = vmatpush1.msra.mxu0 0.0
        %1092 = vmatprep.subr.mxu0 0.0
        %1093 = vmatpush1.msra.mxu0 0.0
        %1094 = vmatprep.subr.mxu0 0.0
        %1095 = vmatpush1.msra.mxu0 0.0
        %1096 = vmatprep.subr.mxu0 0.0
        %1097 = vmatpush1.msra.mxu0 0.0
        %1098 = vmatprep.subr.mxu0 0.0
        %1099 = vmatpush1.msra.mxu0 0.0
        %1100 = vmatprep.subr.mxu0 0.0
        %1101 = vmatpush1.msra.mxu0 0.0
        %1102 = vmatprep.subr.mxu0 0.0
        %1103 = vmatpush1.msra.mxu0 0.0
        %1104 = vmatprep.subr.mxu0 0.0
        %1105 = vmatpush1.msra.mxu0 0.0
        %1106 = vmatprep.subr.mxu0 0.0
        %1107 = vmatpush1.msra.mxu0 0.0
        %1108 = vmatprep.subr.mxu0 0.0
        %1109 = vmatpush1.msra.mxu0 0.0
        %1110 = vmatprep.subr.mxu0 0.0
        %1111 = vmatpush1.msra.mxu0 0.0
        %1112 = vmatprep.subr.mxu0 0.0
        %1113 = vmatpush1.msra.mxu0 0.0
        %1114 = vmatprep.subr.mxu0 0.0
        %1115 = vmatpush1.msra.mxu0 0.0
        %1116 = vmatprep.subr.mxu0 0.0
        %1117 = vmatpush1.msra.mxu0 0.0
        %1118 = vmatprep.subr.mxu0 0.0
        %1119 = vmatpush1.msra.mxu0 0.0
        %1120 = vmatprep.subr.mxu0 0.0
        %1121 = vmatpush1.msra.mxu0 0.0
        %1122 = vmatprep.subr.mxu0 0.0
        %1123 = vmatpush1.msra.mxu0 0.0
        %1124 = vmatprep.subr.mxu0 0.0
        %1125 = vmatpush1.msra.mxu0 0.0
        %1126 = vmatprep.mubr.f32.mxu0 0.0
        %1127 = vmatmul.mubr.f32.gmra.mrb[0].mxu0 %v1057
        %v1128 = vpop.f32.mrb[0].mxu0
        %v1129 = vadd.f32 0.0, %v1128
        %v1130 = vpop.f32.mrb[0].mxu0
        %v1131 = vadd.f32 0.0, %v1130
        %1132 = vmatprep.mubr.f32.mxu0 0.0
        %1133 = vmatmul.mubr.f32.gmra.mrb[0].mxu0 %v1060
        %v1134 = vpop.f32.mrb[0].mxu0
        %v1135 = vadd.f32 0.0, %v1134
        %v1136 = vpop.f32.mrb[0].mxu0
        %v1137 = vadd.f32 0.0, %v1136
        %1138 = vdwg.mxu0
        %1139 = vmatprep.subr.mxu0 0.0
        %1140 = vmatpush1.xpose.msra.mxu0 %v1129
        %1141 = vmatprep.subr.mxu0 0.0
        %1142 = vmatpush1.xpose.msra.mxu0 %v1135
        %1143 = vmatprep.subr.mxu0 0.0
        %1144 = vmatpush1.xpose.msra.mxu0 0.0
        %1145 = vmatprep.subr.mxu0 0.0
        %1146 = vmatpush1.xpose.msra.mxu0 0.0
        %1147 = vmatprep.subr.mxu0 0.0
        %1148 = vmatpush1.xpose.msra.mxu0 0.0
        %1149 = vmatprep.subr.mxu0 0.0
        %1150 = vmatpush1.xpose.msra.mxu0 0.0
        %1151 = vmatprep.subr.mxu0 0.0
        %1152 = vmatpush1.xpose.msra.mxu0 0.0
        %1153 = vmatprep.subr.mxu0 0.0
        %1154 = vmatpush1.xpose.msra.mxu0 0.0
        %1155 = vmatprep.subr.mxu0 0.0
        %1156 = vmatpush1.xpose.msra.mxu0 0.0
        %1157 = vmatprep.subr.mxu0 0.0
        %1158 = vmatpush1.xpose.msra.mxu0 0.0
        %1159 = vmatprep.subr.mxu0 0.0
        %1160 = vmatpush1.xpose.msra.mxu0 0.0
        %1161 = vmatprep.subr.mxu0 0.0
        %1162 = vmatpush1.xpose.msra.mxu0 0.0
        %1163 = vmatprep.subr.mxu0 0.0
        %1164 = vmatpush1.xpose.msra.mxu0 0.0
        %1165 = vmatprep.subr.mxu0 0.0
        %1166 = vmatpush1.xpose.msra.mxu0 0.0
        %1167 = vmatprep.subr.mxu0 0.0
        %1168 = vmatpush1.xpose.msra.mxu0 0.0
        %1169 = vmatprep.subr.mxu0 0.0
        %1170 = vmatpush1.xpose.msra.mxu0 0.0
        %1171 = vmatprep.subr.mxu0 0.0
        %1172 = vmatpush1.xpose.msra.mxu0 0.0
        %1173 = vmatprep.subr.mxu0 0.0
        %1174 = vmatpush1.xpose.msra.mxu0 0.0
        %1175 = vmatprep.subr.mxu0 0.0
        %1176 = vmatpush1.xpose.msra.mxu0 0.0
        %1177 = vmatprep.subr.mxu0 0.0
        %1178 = vmatpush1.xpose.msra.mxu0 0.0
        %1179 = vmatprep.subr.mxu0 0.0
        %1180 = vmatpush1.xpose.msra.mxu0 0.0
        %1181 = vmatprep.subr.mxu0 0.0
        %1182 = vmatpush1.xpose.msra.mxu0 0.0
        %1183 = vmatprep.subr.mxu0 0.0
        %1184 = vmatpush1.xpose.msra.mxu0 0.0
        %1185 = vmatprep.subr.mxu0 0.0
        %1186 = vmatpush1.xpose.msra.mxu0 0.0
        %1187 = vmatprep.subr.mxu0 0.0
        %1188 = vmatpush1.xpose.msra.mxu0 0.0
        %1189 = vmatprep.subr.mxu0 0.0
        %1190 = vmatpush1.xpose.msra.mxu0 0.0
        %1191 = vmatprep.subr.mxu0 0.0
        %1192 = vmatpush1.xpose.msra.mxu0 0.0
        %1193 = vmatprep.subr.mxu0 0.0
        %1194 = vmatpush1.xpose.msra.mxu0 0.0
        %1195 = vmatprep.subr.mxu0 0.0
        %1196 = vmatpush1.xpose.msra.mxu0 0.0
        %1197 = vmatprep.subr.mxu0 0.0
        %1198 = vmatpush1.xpose.msra.mxu0 0.0
        %1199 = vmatprep.subr.mxu0 0.0
        %1200 = vmatpush1.xpose.msra.mxu0 0.0
        %1201 = vmatprep.subr.mxu0 0.0
        %1202 = vmatpush1.xpose.msra.mxu0 0.0
        %1203 = vmatprep.mubr.f32.mxu0 0.0
        %1204 = vmatmul.mubr.f32.gmra.mrb[0].mxu0 %v1043
        %v1205 = vpop.f32.mrb[0].mxu0
        %v1206 = vadd.f32 0.0, %v1205
        %v1207 = vpop.f32.mrb[0].mxu0
        %1208 = vdwg.mxu0
        %vm1209 = vcmask 130048
        %v1210 = vsel %vm1209, %v1206, -inf
        %1211 = vmax.xlane.f32.xlu0 %v1210
        %v1212 = vpop.xlane.xlu0 %1211
        %v1213 = vsub.f32 %v1206, %v1212
        %v1214 = vmul.f32 %v1213, 1.442695
        %v1215 = vpow.pop %v1214
        %v1216 = vsel %vm1209, %v1215, 0.0
        %1217 = vadd.xlane.f32.xlu0 %v1216
        %v1218 = vpop.xlane.xlu0 %1217
        %v1219 = vrcp.pop %v1218
        %v1220 = vmul.f32 %v1215, %v1219
        %v1222 = vsel %vm1209, %v1220, 0
        %1224 = vmatprep.subr.mxu0 0.0
        %1225 = vmatpush1.msra.mxu0 %v1131
        %1226 = vmatprep.subr.mxu0 0.0
        %1227 = vmatpush1.msra.mxu0 %v1137
        %1228 = vmatprep.subr.mxu0 0.0
        %1229 = vmatpush1.msra.mxu0 0.0
        %1230 = vmatprep.subr.mxu0 0.0
        %1231 = vmatpush1.msra.mxu0 0.0
        %1232 = vmatprep.subr.mxu0 0.0
        %1233 = vmatpush1.msra.mxu0 0.0
        %1234 = vmatprep.subr.mxu0 0.0
        %1235 = vmatpush1.msra.mxu0 0.0
        %1236 = vmatprep.subr.mxu0 0.0
        %1237 = vmatpush1.msra.mxu0 0.0
        %1238 = vmatprep.subr.mxu0 0.0
        %1239 = vmatpush1.msra.mxu0 0.0
        %1240 = vmatprep.subr.mxu0 0.0
        %1241 = vmatpush1.msra.mxu0 0.0
        %1242 = vmatprep.subr.mxu0 0.0
        %1243 = vmatpush1.msra.mxu0 0.0
        %1244 = vmatprep.subr.mxu0 0.0
        %1245 = vmatpush1.msra.mxu0 0.0
        %1246 = vmatprep.subr.mxu0 0.0
        %1247 = vmatpush1.msra.mxu0 0.0
        %1248 = vmatprep.subr.mxu0 0.0
        %1249 = vmatpush1.msra.mxu0 0.0
        %1250 = vmatprep.subr.mxu0 0.0
        %1251 = vmatpush1.msra.mxu0 0.0
        %1252 = vmatprep.subr.mxu0 0.0
        %1253 = vmatpush1.msra.mxu0 0.0
        %1254 = vmatprep.subr.mxu0 0.0
        %1255 = vmatpush1.msra.mxu0 0.0
        %1256 = vmatprep.subr.mxu0 0.0
        %1257 = vmatpush1.msra.mxu0 0.0
        %1258 = vmatprep.subr.mxu0 0.0
        %1259 = vmatpush1.msra.mxu0 0.0
        %1260 = vmatprep.subr.mxu0 0.0
        %1261 = vmatpush1.msra.mxu0 0.0
        %1262 = vmatprep.subr.mxu0 0.0
        %1263 = vmatpush1.msra.mxu0 0.0
        %1264 = vmatprep.subr.mxu0 0.0
        %1265 = vmatpush1.msra.mxu0 0.0
        %1266 = vmatprep.subr.mxu0 0.0
        %1267 = vmatpush1.msra.mxu0 0.0
        %1268 = vmatprep.subr.mxu0 0.0
        %1269 = vmatpush1.msra.mxu0 0.0
        %1270 = vmatprep.subr.mxu0 0.0
        %1271 = vmatpush1.msra.mxu0 0.0
        %1272 = vmatprep.subr.mxu0 0.0
        %1273 = vmatpush1.msra.mxu0 0.0
        %1274 = vmatprep.subr.mxu0 0.0
        %1275 = vmatpush1.msra.mxu0 0.0
        %1276 = vmatprep.subr.mxu0 0.0
        %1277 = vmatpush1.msra.mxu0 0.0
        %1278 = vmatprep.subr.mxu0 0.0
        %1279 = vmatpush1.msra.mxu0 0.0
        %1280 = vmatprep.subr.mxu0 0.0
        %1281 = vmatpush1.msra.mxu0 0.0
        %1282 = vmatprep.subr.mxu0 0.0
        %1283 = vmatpush1.msra.mxu0 0.0
        %1284 = vmatprep.subr.mxu0 0.0
        %1285 = vmatpush1.msra.mxu0 0.0
        %1286 = vmatprep.subr.mxu0 0.0
        %1287 = vmatpush1.msra.mxu0 0.0
        %1288 = vmatprep.mubr.f32.mxu0 0.0
        %1289 = vmatmul.mubr.f32.gmra.mrb[0].mxu0 %v1222
        %v1290 = vpop.f32.mrb[0].mxu0
        %v1291 = vadd.f32 0.0, %v1290
        %v1292 = vpop.f32.mrb[0].mxu0
        %1293 = vdwg.mxu0
        %v1294 = vld [vmem:[%s7] sm:$0xff]
        %v1295 = vld [vmem:[%s7 + $0x8] sm:$0xff]
        %v1296 = vld [vmem:[%s7 + $0x10] sm:$0xff]
        %v1297 = vld [vmem:[%s7 + $0x18] sm:$0xff]
        %v1298 = vld [vmem:[%s7 + $0x20] sm:$0xff]
        %v1299 = vld [vmem:[%s7 + $0x28] sm:$0xff]
        %v1300 = vld [vmem:[%s7 + $0x30] sm:$0xff]
        %v1301 = vld [vmem:[%s7 + $0x38] sm:$0xff]
        %v1302 = vld [vmem:[%s7 + $0x40] sm:$0xff]
        %v1303 = vld [vmem:[%s7 + $0x48] sm:$0xff]
        %v1304 = vld [vmem:[%s7 + $0x50] sm:$0xff]
        %v1305 = vld [vmem:[%s7 + $0x58] sm:$0xff]
        %v1306 = vld [vmem:[%s7 + $0x60] sm:$0xff]
        %v1307 = vld [vmem:[%s7 + $0x68] sm:$0xff]
        %v1308 = vld [vmem:[%s7 + $0x70] sm:$0xff]
        %v1309 = vld [vmem:[%s7 + $0x78] sm:$0xff]
        %1310 = vmatprep.subr.mxu0 0.0
        %1311 = vmatpush1.msra.mxu0 %v1294
        %1312 = vmatprep.subr.mxu0 0.0
        %1313 = vmatpush1.msra.mxu0 %v1295
        %1314 = vmatprep.subr.mxu0 0.0
        %1315 = vmatpush1.msra.mxu0 %v1296
        %1316 = vmatprep.subr.mxu0 0.0
        %1317 = vmatpush1.msra.mxu0 %v1297
        %1318 = vmatprep.subr.mxu0 0.0
        %1319 = vmatpush1.msra.mxu0 %v1298
        %1320 = vmatprep.subr.mxu0 0.0
        %1321 = vmatpush1.msra.mxu0 %v1299
        %1322 = vmatprep.subr.mxu0 0.0
        %1323 = vmatpush1.msra.mxu0 %v1300
        %1324 = vmatprep.subr.mxu0 0.0
        %1325 = vmatpush1.msra.mxu0 %v1301
        %1326 = vmatprep.subr.mxu0 0.0
        %1327 = vmatpush1.msra.mxu0 %v1302
        %1328 = vmatprep.subr.mxu0 0.0
        %1329 = vmatpush1.msra.mxu0 %v1303
        %1330 = vmatprep.subr.mxu0 0.0
        %1331 = vmatpush1.msra.mxu0 %v1304
        %1332 = vmatprep.subr.mxu0 0.0
        %1333 = vmatpush1.msra.mxu0 %v1305
        %1334 = vmatprep.subr.mxu0 0.0
        %1335 = vmatpush1.msra.mxu0 %v1306
        %1336 = vmatprep.subr.mxu0 0.0
        %1337 = vmatpush1.msra.mxu0 %v1307
        %1338 = vmatprep.subr.mxu0 0.0
        %1339 = vmatpush1.msra.mxu0 %v1308
        %1340 = vmatprep.subr.mxu0 0.0
        %1341 = vmatpush1.msra.mxu0 %v1309
        %1342 = vmatprep.subr.mxu0 0.0
        %1343 = vmatpush1.msra.mxu0 0.0
        %1344 = vmatprep.subr.mxu0 0.0
        %1345 = vmatpush1.msra.mxu0 0.0
        %1346 = vmatprep.subr.mxu0 0.0
        %1347 = vmatpush1.msra.mxu0 0.0
        %1348 = vmatprep.subr.mxu0 0.0
        %1349 = vmatpush1.msra.mxu0 0.0
        %1350 = vmatprep.subr.mxu0 0.0
        %1351 = vmatpush1.msra.mxu0 0.0
        %1352 = vmatprep.subr.mxu0 0.0
        %1353 = vmatpush1.msra.mxu0 0.0
        %1354 = vmatprep.subr.mxu0 0.0
        %1355 = vmatpush1.msra.mxu0 0.0
        %1356 = vmatprep.subr.mxu0 0.0
        %1357 = vmatpush1.msra.mxu0 0.0
        %1358 = vmatprep.subr.mxu0 0.0
        %1359 = vmatpush1.msra.mxu0 0.0
        %1360 = vmatprep.subr.mxu0 0.0
        %1361 = vmatpush1.msra.mxu0 0.0
        %1362 = vmatprep.subr.mxu0 0.0
        %1363 = vmatpush1.msra.mxu0 0.0
        %1364 = vmatprep.subr.mxu0 0.0
        %1365 = vmatpush1.msra.mxu0 0.0
        %1366 = vmatprep.subr.mxu0 0.0
        %1367 = vmatpush1.msra.mxu0 0.0
        %1368 = vmatprep.subr.mxu0 0.0
        %1369 = vmatpush1.msra.mxu0 0.0
        %1370 = vmatprep.subr.mxu0 0.0
        %1371 = vmatpush1.msra.mxu0 0.0
        %1372 = vmatprep.subr.mxu0 0.0
        %1373 = vmatpush1.msra.mxu0 0.0
        %1374 = vmatprep.mubr.f32.mxu0 0.0
        %1375 = vmatmul.mubr.f32.gmra.mrb[0].mxu0 %v1291
        %v1376 = vpop.f32.mrb[0].mxu0
        %v1377 = vadd.f32 0.0, %v1376
        %v1378 = vpop.f32.mrb[0].mxu0
        %1379 = vdwg.mxu0
        %v1380 = vadd.f32 %v968, %v1377
        %1381 = vmatprep.subr.mxu0 0.0
        %1382 = vmatpush1.msra.mxu0 %v1380
        %1383 = vmatprep.subr.mxu0 0.0
        %1384 = vmatpush1.msra.mxu0 0.0
        %1385 = vmatprep.subr.mxu0 0.0
        %1386 = vmatpush1.msra.mxu0 0.0
        %1387 = vmatprep.subr.mxu0 0.0
        %1388 = vmatpush1.msra.mxu0 0.0
        %1389 = vmatprep.subr.mxu0 0.0
        %1390 = vmatpush1.msra.mxu0 0.0
        %1391 = vmatprep.subr.mxu0 0.0
        %1392 = vmatpush1.msra.mxu0 0.0
        %1393 = vmatprep.subr.mxu0 0.0
        %1394 = vmatpush1.msra.mxu0 0.0
        %1395 = vmatprep.subr.mxu0 0.0
        %1396 = vmatpush1.msra.mxu0 0.0
        %1397 = vmatprep.subr.mxu0 0.0
        %1398 = vmatpush1.msra.mxu0 0.0
        %1399 = vmatprep.subr.mxu0 0.0
        %1400 = vmatpush1.msra.mxu0 0.0
        %1401 = vmatprep.subr.mxu0 0.0
        %1402 = vmatpush1.msra.mxu0 0.0
        %1403 = vmatprep.subr.mxu0 0.0
        %1404 = vmatpush1.msra.mxu0 0.0
        %1405 = vmatprep.subr.mxu0 0.0
        %1406 = vmatpush1.msra.mxu0 0.0
        %1407 = vmatprep.subr.mxu0 0.0
        %1408 = vmatpush1.msra.mxu0 0.0
        %1409 = vmatprep.subr.mxu0 0.0
        %1410 = vmatpush1.msra.mxu0 0.0
        %1411 = vmatprep.subr.mxu0 0.0
        %1412 = vmatpush1.msra.mxu0 0.0
        %1413 = vmatprep.subr.mxu0 0.0
        %1414 = vmatpush1.msra.mxu0 0.0
        %1415 = vmatprep.subr.mxu0 0.0
        %1416 = vmatpush1.msra.mxu0 0.0
        %1417 = vmatprep.subr.mxu0 0.0
        %1418 = vmatpush1.msra.mxu0 0.0
        %1419 = vmatprep.subr.mxu0 0.0
        %1420 = vmatpush1.msra.mxu0 0.0
        %1421 = vmatprep.subr.mxu0 0.0
        %1422 = vmatpush1.msra.mxu0 0.0
        %1423 = vmatprep.subr.mxu0 0.0
        %1424 = vmatpush1.msra.mxu0 0.0
        %1425 = vmatprep.subr.mxu0 0.0
        %1426 = vmatpush1.msra.mxu0 0.0
        %1427 = vmatprep.subr.mxu0 0.0
        %1428 = vmatpush1.msra.mxu0 0.0
        %1429 = vmatprep.subr.mxu0 0.0
        %1430 = vmatpush1.msra.mxu0 0.0
        %1431 = vmatprep.subr.mxu0 0.0
        %1432 = vmatpush1.msra.mxu0 0.0
        %1433 = vmatprep.subr.mxu0 0.0
        %1434 = vmatpush1.msra.mxu0 0.0
        %1435 = vmatprep.subr.mxu0 0.0
        %1436 = vmatpush1.msra.mxu0 0.0
        %1437 = vmatprep.subr.mxu0 0.0
        %1438 = vmatpush1.msra.mxu0 0.0
        %1439 = vmatprep.subr.mxu0 0.0
        %1440 = vmatpush1.msra.mxu0 0.0
        %1441 = vmatprep.subr.mxu0 0.0
        %1442 = vmatpush1.msra.mxu0 0.0
        %1443 = vmatprep.subr.mxu0 0.0
        %1444 = vmatpush1.msra.mxu0 0.0
        %1445 = vmatprep.mubr.f32.mxu0 0.0
        %1446 = vmatmul.mubr.f32.gmra.mrb[0].mxu0 %v896
        %v1447 = vpop.f32.mrb[0].mxu0
        %v1448 = vadd.f32 0.0, %v1447
        %v1449 = vpop.f32.mrb[0].mxu0
        %1450 = vdwg.mxu0
        %v1451 = vsub.f32 %v1380, %v1448
        %v1452 = vadd.f32 %v965, %v1448
        %v1453 = vld [vmem:[%s8] sm:$0xff]
        %v1454 = vld [vmem:[%s8 + $0x8] sm:$0xff]
        %v1455 = vld [vmem:[%s8 + $0x10] sm:$0xff]
        %v1456 = vld [vmem:[%s8 + $0x18] sm:$0xff]
        %v1458 = vsel %vm508, %v1451, 0
        %1460 = vmatprep.subr.mxu0 0.0
        %1461 = vmatpush1.msra.mxu0 %v1453
        %1462 = vmatprep.subr.mxu0 0.0
        %1463 = vmatpush1.msra.mxu0 %v1454
        %1464 = vmatprep.subr.mxu0 0.0
        %1465 = vmatpush1.msra.mxu0 %v1455
        %1466 = vmatprep.subr.mxu0 0.0
        %1467 = vmatpush1.msra.mxu0 %v1456
        %1468 = vmatprep.subr.mxu0 0.0
        %1469 = vmatpush1.msra.mxu0 0.0
        %1470 = vmatprep.subr.mxu0 0.0
        %1471 = vmatpush1.msra.mxu0 0.0
        %1472 = vmatprep.subr.mxu0 0.0
        %1473 = vmatpush1.msra.mxu0 0.0
        %1474 = vmatprep.subr.mxu0 0.0
        %1475 = vmatpush1.msra.mxu0 0.0
        %1476 = vmatprep.subr.mxu0 0.0
        %1477 = vmatpush1.msra.mxu0 0.0
        %1478 = vmatprep.subr.mxu0 0.0
        %1479 = vmatpush1.msra.mxu0 0.0
        %1480 = vmatprep.subr.mxu0 0.0
        %1481 = vmatpush1.msra.mxu0 0.0
        %1482 = vmatprep.subr.mxu0 0.0
        %1483 = vmatpush1.msra.mxu0 0.0
        %1484 = vmatprep.subr.mxu0 0.0
        %1485 = vmatpush1.msra.mxu0 0.0
        %1486 = vmatprep.subr.mxu0 0.0
        %1487 = vmatpush1.msra.mxu0 0.0
        %1488 = vmatprep.subr.mxu0 0.0
        %1489 = vmatpush1.msra.mxu0 0.0
        %1490 = vmatprep.subr.mxu0 0.0
        %1491 = vmatpush1.msra.mxu0 0.0
        %1492 = vmatprep.subr.mxu0 0.0
        %1493 = vmatpush1.msra.mxu0 0.0
        %1494 = vmatprep.subr.mxu0 0.0
        %1495 = vmatpush1.msra.mxu0 0.0
        %1496 = vmatprep.subr.mxu0 0.0
        %1497 = vmatpush1.msra.mxu0 0.0
        %1498 = vmatprep.subr.mxu0 0.0
        %1499 = vmatpush1.msra.mxu0 0.0
        %1500 = vmatprep.subr.mxu0 0.0
        %1501 = vmatpush1.msra.mxu0 0.0
        %1502 = vmatprep.subr.mxu0 0.0
        %1503 = vmatpush1.msra.mxu0 0.0
        %1504 = vmatprep.subr.mxu0 0.0
        %1505 = vmatpush1.msra.mxu0 0.0
        %1506 = vmatprep.subr.mxu0 0.0
        %1507 = vmatpush1.msra.mxu0 0.0
        %1508 = vmatprep.subr.mxu0 0.0
        %1509 = vmatpush1.msra.mxu0 0.0
        %1510 = vmatprep.subr.mxu0 0.0
        %1511 = vmatpush1.msra.mxu0 0.0
        %1512 = vmatprep.subr.mxu0 0.0
        %1513 = vmatpush1.msra.mxu0 0.0
        %1514 = vmatprep.subr.mxu0 0.0
        %1515 = vmatpush1.msra.mxu0 0.0
        %1516 = vmatprep.subr.mxu0 0.0
        %1517 = vmatpush1.msra.mxu0 0.0
        %1518 = vmatprep.subr.mxu0 0.0
        %1519 = vmatpush1.msra.mxu0 0.0
        %1520 = vmatprep.subr.mxu0 0.0
        %1521 = vmatpush1.msra.mxu0 0.0
        %1522 = vmatprep.subr.mxu0 0.0
        %1523 = vmatpush1.msra.mxu0 0.0
        %1524 = vmatprep.mubr.f32.mxu0 0.0
        %1525 = vmatmul.mubr.f32.gmra.mrb[0].mxu0 %v1458
        %v1526 = vpop.f32.mrb[0].mxu0
        %v1527 = vadd.f32 0.0, %v1526
        %v1528 = vpop.f32.mrb[0].mxu0
        %1529 = vdwg.mxu0
        %v1530 = vmax.f32 %v1527, 0.0
        %v1531 = vld [vmem:[%s9] sm:$0xff]
        %v1532 = vld [vmem:[%s9 + $0x8] sm:$0xff]
        %v1533 = vld [vmem:[%s9 + $0x10] sm:$0xff]
        %v1534 = vld [vmem:[%s9 + $0x18] sm:$0xff]
        %v1535 = vld [vmem:[%s9 + $0x20] sm:$0xff]
        %v1536 = vld [vmem:[%s9 + $0x28] sm:$0xff]
        %v1537 = vld [vmem:[%s9 + $0x30] sm:$0xff]
        %v1538 = vld [vmem:[%s9 + $0x38] sm:$0xff]
        %v1539 = vld [vmem:[%s9 + $0x40] sm:$0xff]
        %v1540 = vld [vmem:[%s9 + $0x48] sm:$0xff]
        %v1541 = vld [vmem:[%s9 + $0x50] sm:$0xff]
        %v1542 = vld [vmem:[%s9 + $0x58] sm:$0xff]
        %v1543 = vld [vmem:[%s9 + $0x60] sm:$0xff]
        %v1544 = vld [vmem:[%s9 + $0x68] sm:$0xff]
        %v1545 = vld [vmem:[%s9 + $0x70] sm:$0xff]
        %v1546 = vld [vmem:[%s9 + $0x78] sm:$0xff]
        %1547 = vmatprep.subr.mxu0 0.0
        %1548 = vmatpush1.msra.mxu0 %v1531
        %1549 = vmatprep.subr.mxu0 0.0
        %1550 = vmatpush1.msra.mxu0 %v1532
        %1551 = vmatprep.subr.mxu0 0.0
        %1552 = vmatpush1.msra.mxu0 %v1533
        %1553 = vmatprep.subr.mxu0 0.0
        %1554 = vmatpush1.msra.mxu0 %v1534
        %1555 = vmatprep.subr.mxu0 0.0
        %1556 = vmatpush1.msra.mxu0 %v1535
        %1557 = vmatprep.subr.mxu0 0.0
        %1558 = vmatpush1.msra.mxu0 %v1536
        %1559 = vmatprep.subr.mxu0 0.0
        %1560 = vmatpush1.msra.mxu0 %v1537
        %1561 = vmatprep.subr.mxu0 0.0
        %1562 = vmatpush1.msra.mxu0 %v1538
        %1563 = vmatprep.subr.mxu0 0.0
        %1564 = vmatpush1.msra.mxu0 %v1539
        %1565 = vmatprep.subr.mxu0 0.0
        %1566 = vmatpush1.msra.mxu0 %v1540
        %1567 = vmatprep.subr.mxu0 0.0
        %1568 = vmatpush1.msra.mxu0 %v1541
        %1569 = vmatprep.subr.mxu0 0.0
        %1570 = vmatpush1.msra.mxu0 %v1542
        %1571 = vmatprep.subr.mxu0 0.0
        %1572 = vmatpush1.msra.mxu0 %v1543
        %1573 = vmatprep.subr.mxu0 0.0
        %1574 = vmatpush1.msra.mxu0 %v1544
        %1575 = vmatprep.subr.mxu0 0.0
        %1576 = vmatpush1.msra.mxu0 %v1545
        %1577 = vmatprep.subr.mxu0 0.0
        %1578 = vmatpush1.msra.mxu0 %v1546
        %1579 = vmatprep.subr.mxu0 0.0
        %1580 = vmatpush1.msra.mxu0 0.0
        %1581 = vmatprep.subr.mxu0 0.0
        %1582 = vmatpush1.msra.mxu0 0.0
        %1583 = vmatprep.subr.mxu0 0.0
        %1584 = vmatpush1.msra.mxu0 0.0
        %1585 = vmatprep.subr.mxu0 0.0
        %1586 = vmatpush1.msra.mxu0 0.0
        %1587 = vmatprep.subr.mxu0 0.0
        %1588 = vmatpush1.msra.mxu0 0.0
        %1589 = vmatprep.subr.mxu0 0.0
        %1590 = vmatpush1.msra.mxu0 0.0
        %1591 = vmatprep.subr.mxu0 0.0
        %1592 = vmatpush1.msra.mxu0 0.0
        %1593 = vmatprep.subr.mxu0 0.0
        %1594 = vmatpush1.msra.mxu0 0.0
        %1595 = vmatprep.subr.mxu0 0.0
        %1596 = vmatpush1.msra.mxu0 0.0
        %1597 = vmatprep.subr.mxu0 0.0
        %1598 = vmatpush1.msra.mxu0 0.0
        %1599 = vmatprep.subr.mxu0 0.0
        %1600 = vmatpush1.msra.mxu0 0.0
        %1601 = vmatprep.subr.mxu0 0.0
        %1602 = vmatpush1.msra.mxu0 0.0
        %1603 = vmatprep.subr.mxu0 0.0
        %1604 = vmatpush1.msra.mxu0 0.0
        %1605 = vmatprep.subr.mxu0 0.0
        %1606 = vmatpush1.msra.mxu0 0.0
        %1607 = vmatprep.subr.mxu0 0.0
        %1608 = vmatpush1.msra.mxu0 0.0
        %1609 = vmatprep.subr.mxu0 0.0
        %1610 = vmatpush1.msra.mxu0 0.0
        %1611 = vmatprep.mubr.f32.mxu0 0.0
        %1612 = vmatmul.mubr.f32.gmra.mrb[0].mxu0 %v1530
        %v1613 = vpop.f32.mrb[0].mxu0
        %v1614 = vadd.f32 0.0, %v1613
        %v1615 = vpop.f32.mrb[0].mxu0
        %1616 = vdwg.mxu0
        %v1617 = vadd.f32 %v1451, %v1614
        %1618 = vmatprep.subr.mxu0 0.0
        %1619 = vmatpush1.msra.mxu0 %v1617
        %1620 = vmatprep.subr.mxu0 0.0
        %1621 = vmatpush1.msra.mxu0 0.0
        %1622 = vmatprep.subr.mxu0 0.0
        %1623 = vmatpush1.msra.mxu0 0.0
        %1624 = vmatprep.subr.mxu0 0.0
        %1625 = vmatpush1.msra.mxu0 0.0
        %1626 = vmatprep.subr.mxu0 0.0
        %1627 = vmatpush1.msra.mxu0 0.0
        %1628 = vmatprep.subr.mxu0 0.0
        %1629 = vmatpush1.msra.mxu0 0.0
        %1630 = vmatprep.subr.mxu0 0.0
        %1631 = vmatpush1.msra.mxu0 0.0
        %1632 = vmatprep.subr.mxu0 0.0
        %1633 = vmatpush1.msra.mxu0 0.0
        %1634 = vmatprep.subr.mxu0 0.0
        %1635 = vmatpush1.msra.mxu0 0.0
        %1636 = vmatprep.subr.mxu0 0.0
        %1637 = vmatpush1.msra.mxu0 0.0
        %1638 = vmatprep.subr.mxu0 0.0
        %1639 = vmatpush1.msra.mxu0 0.0
        %1640 = vmatprep.subr.mxu0 0.0
        %1641 = vmatpush1.msra.mxu0 0.0
        %1642 = vmatprep.subr.mxu0 0.0
        %1643 = vmatpush1.msra.mxu0 0.0
        %1644 = vmatprep.subr.mxu0 0.0
        %1645 = vmatpush1.msra.mxu0 0.0
        %1646 = vmatprep.subr.mxu0 0.0
        %1647 = vmatpush1.msra.mxu0 0.0
        %1648 = vmatprep.subr.mxu0 0.0
        %1649 = vmatpush1.msra.mxu0 0.0
        %1650 = vmatprep.subr.mxu0 0.0
        %1651 = vmatpush1.msra.mxu0 0.0
        %1652 = vmatprep.subr.mxu0 0.0
        %1653 = vmatpush1.msra.mxu0 0.0
        %1654 = vmatprep.subr.mxu0 0.0
        %1655 = vmatpush1.msra.mxu0 0.0
        %1656 = vmatprep.subr.mxu0 0.0
        %1657 = vmatpush1.msra.mxu0 0.0
        %1658 = vmatprep.subr.mxu0 0.0
        %1659 = vmatpush1.msra.mxu0 0.0
        %1660 = vmatprep.subr.mxu0 0.0
        %1661 = vmatpush1.msra.mxu0 0.0
        %1662 = vmatprep.subr.mxu0 0.0
        %1663 = vmatpush1.msra.mxu0 0.0
        %1664 = vmatprep.subr.mxu0 0.0
        %1665 = vmatpush1.msra.mxu0 0.0
        %1666 = vmatprep.subr.mxu0 0.0
        %1667 = vmatpush1.msra.mxu0 0.0
        %1668 = vmatprep.subr.mxu0 0.0
        %1669 = vmatpush1.msra.mxu0 0.0
        %1670 = vmatprep.subr.mxu0 0.0
        %1671 = vmatpush1.msra.mxu0 0.0
        %1672 = vmatprep.subr.mxu0 0.0
        %1673 = vmatpush1.msra.mxu0 0.0
        %1674 = vmatprep.subr.mxu0 0.0
        %1675 = vmatpush1.msra.mxu0 0.0
        %1676 = vmatprep.subr.mxu0 0.0
        %1677 = vmatpush1.msra.mxu0 0.0
        %1678 = vmatprep.subr.mxu0 0.0
        %1679 = vmatpush1.msra.mxu0 0.0
        %1680 = vmatprep.subr.mxu0 0.0
        %1681 = vmatpush1.msra.mxu0 0.0
        %1682 = vmatprep.mubr.f32.mxu0 0.0
        %1683 = vmatmul.mubr.f32.gmra.mrb[0].mxu0 %v896
        %v1684 = vpop.f32.mrb[0].mxu0
        %v1685 = vadd.f32 0.0, %v1684
        %v1686 = vpop.f32.mrb[0].mxu0
        %1687 = vdwg.mxu0
        %v1688 = vsub.f32 %v1617, %v1685
        %1689 = vst.msk [vmem:[%s477] sm:$0xff] %vm508, %v1688
        %v1690 = vadd.f32 %v1452, %v1685
        %v1691 = vrot.slane %v1690, 7
        %v1692 = vrot.slane %v1690, 1
        %v1693 = vld [vmem:[%s10] sm:$0xff]
        %v1694 = vld [vmem:[%s10 + $0x8] sm:$0xff]
        %v1695 = vld [vmem:[%s10 + $0x10] sm:$0xff]
        %v1696 = vld [vmem:[%s10 + $0x18] sm:$0xff]
        %v1697 = vld [vmem:[%s11] sm:$0xff]
        %v1698 = vld [vmem:[%s11 + $0x8] sm:$0xff]
        %v1699 = vld [vmem:[%s11 + $0x10] sm:$0xff]
        %v1700 = vld [vmem:[%s11 + $0x18] sm:$0xff]
        %v1702 = vsel %vm508, %v1690, 0
        %1704 = vmatprep.subr.mxu0 0.0
        %1705 = vmatpush1.msra.mxu0 %v1697
        %1706 = vmatprep.subr.mxu0 0.0
        %1707 = vmatpush1.msra.mxu0 %v1698
        %1708 = vmatprep.subr.mxu0 0.0
        %1709 = vmatpush1.msra.mxu0 %v1699
        %1710 = vmatprep.subr.mxu0 0.0
        %1711 = vmatpush1.msra.mxu0 %v1700
        %1712 = vmatprep.subr.mxu0 0.0
        %1713 = vmatpush1.msra.mxu0 0.0
        %1714 = vmatprep.subr.mxu0 0.0
        %1715 = vmatpush1.msra.mxu0 0.0
        %1716 = vmatprep.subr.mxu0 0.0
        %1717 = vmatpush1.msra.mxu0 0.0
        %1718 = vmatprep.subr.mxu0 0.0
        %1719 = vmatpush1.msra.mxu0 0.0
        %1720 = vmatprep.subr.mxu0 0.0
        %1721 = vmatpush1.msra.mxu0 0.0
        %1722 = vmatprep.subr.mxu0 0.0
        %1723 = vmatpush1.msra.mxu0 0.0
        %1724 = vmatprep.subr.mxu0 0.0
        %1725 = vmatpush1.msra.mxu0 0.0
        %1726 = vmatprep.subr.mxu0 0.0
        %1727 = vmatpush1.msra.mxu0 0.0
        %1728 = vmatprep.subr.mxu0 0.0
        %1729 = vmatpush1.msra.mxu0 0.0
        %1730 = vmatprep.subr.mxu0 0.0
        %1731 = vmatpush1.msra.mxu0 0.0
        %1732 = vmatprep.subr.mxu0 0.0
        %1733 = vmatpush1.msra.mxu0 0.0
        %1734 = vmatprep.subr.mxu0 0.0
        %1735 = vmatpush1.msra.mxu0 0.0
        %1736 = vmatprep.subr.mxu0 0.0
        %1737 = vmatpush1.msra.mxu0 0.0
        %1738 = vmatprep.subr.mxu0 0.0
        %1739 = vmatpush1.msra.mxu0 0.0
        %1740 = vmatprep.subr.mxu0 0.0
        %1741 = vmatpush1.msra.mxu0 0.0
        %1742 = vmatprep.subr.mxu0 0.0
        %1743 = vmatpush1.msra.mxu0 0.0
        %1744 = vmatprep.subr.mxu0 0.0
        %1745 = vmatpush1.msra.mxu0 0.0
        %1746 = vmatprep.subr.mxu0 0.0
        %1747 = vmatpush1.msra.mxu0 0.0
        %1748 = vmatprep.subr.mxu0 0.0
        %1749 = vmatpush1.msra.mxu0 0.0
        %1750 = vmatprep.subr.mxu0 0.0
        %1751 = vmatpush1.msra.mxu0 0.0
        %1752 = vmatprep.subr.mxu0 0.0
        %1753 = vmatpush1.msra.mxu0 0.0
        %1754 = vmatprep.subr.mxu0 0.0
        %1755 = vmatpush1.msra.mxu0 0.0
        %1756 = vmatprep.subr.mxu0 0.0
        %1757 = vmatpush1.msra.mxu0 0.0
        %1758 = vmatprep.subr.mxu0 0.0
        %1759 = vmatpush1.msra.mxu0 0.0
        %1760 = vmatprep.subr.mxu0 0.0
        %1761 = vmatpush1.msra.mxu0 0.0
        %1762 = vmatprep.subr.mxu0 0.0
        %1763 = vmatpush1.msra.mxu0 0.0
        %1764 = vmatprep.subr.mxu0 0.0
        %1765 = vmatpush1.msra.mxu0 0.0
        %1766 = vmatprep.subr.mxu0 0.0
        %1767 = vmatpush1.msra.mxu0 0.0
        %1768 = vmatprep.mubr.f32.mxu0 0.0
        %1769 = vmatmul.mubr.f32.gmra.mrb[0].mxu0 %v1702
        %v1770 = vpop.f32.mrb[0].mxu0
        %v1771 = vadd.f32 0.0, %v1770
        %v1772 = vpop.f32.mrb[0].mxu0
        %1773 = vdwg.mxu0
        %v1775 = vsel %vm508, %v1691, 0
        %1777 = vmatprep.subr.mxu0 0.0
        %1778 = vmatpush1.msra.mxu0 %v1693
        %1779 = vmatprep.subr.mxu0 0.0
        %1780 = vmatpush1.msra.mxu0 %v1694
        %1781 = vmatprep.subr.mxu0 0.0
        %1782 = vmatpush1.msra.mxu0 %v1695
        %1783 = vmatprep.subr.mxu0 0.0
        %1784 = vmatpush1.msra.mxu0 %v1696
        %1785 = vmatprep.subr.mxu0 0.0
        %1786 = vmatpush1.msra.mxu0 0.0
        %1787 = vmatprep.subr.mxu0 0.0
        %1788 = vmatpush1.msra.mxu0 0.0
        %1789 = vmatprep.subr.mxu0 0.0
        %1790 = vmatpush1.msra.mxu0 0.0
        %1791 = vmatprep.subr.mxu0 0.0
        %1792 = vmatpush1.msra.mxu0 0.0
        %1793 = vmatprep.subr.mxu0 0.0
        %1794 = vmatpush1.msra.mxu0 0.0
        %1795 = vmatprep.subr.mxu0 0.0
        %1796 = vmatpush1.msra.mxu0 0.0
        %1797 = vmatprep.subr.mxu0 0.0
        %1798 = vmatpush1.msra.mxu0 0.0
        %1799 = vmatprep.subr.mxu0 0.0
        %1800 = vmatpush1.msra.mxu0 0.0
        %1801 = vmatprep.subr.mxu0 0.0
        %1802 = vmatpush1.msra.mxu0 0.0
        %1803 = vmatprep.subr.mxu0 0.0
        %1804 = vmatpush1.msra.mxu0 0.0
        %1805 = vmatprep.subr.mxu0 0.0
        %1806 = vmatpush1.msra.mxu0 0.0
        %1807 = vmatprep.subr.mxu0 0.0
        %1808 = vmatpush1.msra.mxu0 0.0
        %1809 = vmatprep.subr.mxu0 0.0
        %1810 = vmatpush1.msra.mxu0 0.0
        %1811 = vmatprep.subr.mxu0 0.0
        %1812 = vmatpush1.msra.mxu0 0.0
        %1813 = vmatprep.subr.mxu0 0.0
        %1814 = vmatpush1.msra.mxu0 0.0
        %1815 = vmatprep.subr.mxu0 0.0
        %1816 = vmatpush1.msra.mxu0 0.0
        %1817 = vmatprep.subr.mxu0 0.0
        %1818 = vmatpush1.msra.mxu0 0.0
        %1819 = vmatprep.subr.mxu0 0.0
        %1820 = vmatpush1.msra.mxu0 0.0
        %1821 = vmatprep.subr.mxu0 0.0
        %1822 = vmatpush1.msra.mxu0 0.0
        %1823 = vmatprep.subr.mxu0 0.0
        %1824 = vmatpush1.msra.mxu0 0.0
        %1825 = vmatprep.subr.mxu0 0.0
        %1826 = vmatpush1.msra.mxu0 0.0
        %1827 = vmatprep.subr.mxu0 0.0
        %1828 = vmatpush1.msra.mxu0 0.0
        %1829 = vmatprep.subr.mxu0 0.0
        %1830 = vmatpush1.msra.mxu0 0.0
        %1831 = vmatprep.subr.mxu0 0.0
        %1832 = vmatpush1.msra.mxu0 0.0
        %1833 = vmatprep.subr.mxu0 0.0
        %1834 = vmatpush1.msra.mxu0 0.0
        %1835 = vmatprep.subr.mxu0 0.0
        %1836 = vmatpush1.msra.mxu0 0.0
        %1837 = vmatprep.subr.mxu0 0.0
        %1838 = vmatpush1.msra.mxu0 0.0
        %1839 = vmatprep.subr.mxu0 0.0
        %1840 = vmatpush1.msra.mxu0 0.0
        %1841 = vmatprep.mubr.f32.mxu0 0.0
        %1842 = vmatmul.mubr.f32.gmra.mrb[0].mxu0 %v1775
        %v1843 = vpop.f32.mrb[0].mxu0
        %v1844 = vadd.f32 %v1771, %v1843
        %v1845 = vpop.f32.mrb[0].mxu0
        %1846 = vdwg.mxu0
        %v1847 = vld [vmem:[%s12] sm:$0xff]
        %v1848 = vld [vmem:[%s12 + $0x8] sm:$0xff]
        %v1849 = vld [vmem:[%s12 + $0x10] sm:$0xff]
        %v1850 = vld [vmem:[%s12 + $0x18] sm:$0xff]
        %v1852 = vsel %vm508, %v1692, 0
        %1854 = vmatprep.subr.mxu0 0.0
        %1855 = vmatpush1.msra.mxu0 %v1847
        %1856 = vmatprep.subr.mxu0 0.0
        %1857 = vmatpush1.msra.mxu0 %v1848
        %1858 = vmatprep.subr.mxu0 0.0
        %1859 = vmatpush1.msra.mxu0 %v1849
        %1860 = vmatprep.subr.mxu0 0.0
        %1861 = vmatpush1.msra.mxu0 %v1850
        %1862 = vmatprep.subr.mxu0 0.0
        %1863 = vmatpush1.msra.mxu0 0.0
        %1864 = vmatprep.subr.mxu0 0.0
        %1865 = vmatpush1.msra.mxu0 0.0
        %1866 = vmatprep.subr.mxu0 0.0
        %1867 = vmatpush1.msra.mxu0 0.0
        %1868 = vmatprep.subr.mxu0 0.0
        %1869 = vmatpush1.msra.mxu0 0.0
        %1870 = vmatprep.subr.mxu0 0.0
        %1871 = vmatpush1.msra.mxu0 0.0
        %1872 = vmatprep.subr.mxu0 0.0
        %1873 = vmatpush1.msra.mxu0 0.0
        %1874 = vmatprep.subr.mxu0 0.0
        %1875 = vmatpush1.msra.mxu0 0.0
        %1876 = vmatprep.subr.mxu0 0.0
        %1877 = vmatpush1.msra.mxu0 0.0
        %1878 = vmatprep.subr.mxu0 0.0
        %1879 = vmatpush1.msra.mxu0 0.0
        %1880 = vmatprep.subr.mxu0 0.0
        %1881 = vmatpush1.msra.mxu0 0.0
        %1882 = vmatprep.subr.mxu0 0.0
        %1883 = vmatpush1.msra.mxu0 0.0
        %1884 = vmatprep.subr.mxu0 0.0
        %1885 = vmatpush1.msra.mxu0 0.0
        %1886 = vmatprep.subr.mxu0 0.0
        %1887 = vmatpush1.msra.mxu0 0.0
        %1888 = vmatprep.subr.mxu0 0.0
        %1889 = vmatpush1.msra.mxu0 0.0
        %1890 = vmatprep.subr.mxu0 0.0
        %1891 = vmatpush1.msra.mxu0 0.0
        %1892 = vmatprep.subr.mxu0 0.0
        %1893 = vmatpush1.msra.mxu0 0.0
        %1894 = vmatprep.subr.mxu0 0.0
        %1895 = vmatpush1.msra.mxu0 0.0
        %1896 = vmatprep.subr.mxu0 0.0
        %1897 = vmatpush1.msra.mxu0 0.0
        %1898 = vmatprep.subr.mxu0 0.0
        %1899 = vmatpush1.msra.mxu0 0.0
        %1900 = vmatprep.subr.mxu0 0.0
        %1901 = vmatpush1.msra.mxu0 0.0
        %1902 = vmatprep.subr.mxu0 0.0
        %1903 = vmatpush1.msra.mxu0 0.0
        %1904 = vmatprep.subr.mxu0 0.0
        %1905 = vmatpush1.msra.mxu0 0.0
        %1906 = vmatprep.subr.mxu0 0.0
        %1907 = vmatpush1.msra.mxu0 0.0
        %1908 = vmatprep.subr.mxu0 0.0
        %1909 = vmatpush1.msra.mxu0 0.0
        %1910 = vmatprep.subr.mxu0 0.0
        %1911 = vmatpush1.msra.mxu0 0.0
        %1912 = vmatprep.subr.mxu0 0.0
        %1913 = vmatpush1.msra.mxu0 0.0
        %1914 = vmatprep.subr.mxu0 0.0
        %1915 = vmatpush1.msra.mxu0 0.0
        %1916 = vmatprep.subr.mxu0 0.0
        %1917 = vmatpush1.msra.mxu0 0.0
        %1918 = vmatprep.mubr.f32.mxu0 0.0
        %1919 = vmatmul.mubr.f32.gmra.mrb[0].mxu0 %v1852
        %v1920 = vpop.f32.mrb[0].mxu0
        %v1921 = vadd.f32 0.0, %v1920
        %v1922 = vpop.f32.mrb[0].mxu0
        %1923 = vdwg.mxu0
        %v1924 = vadd.f32 %v1844, %v1921
        %1925 = vst [vmem:[%s484] sm:$0xff] %v1924
        %s1926 = sand.u32 %s323, 1
        %s1927 = scalar_lea.sflag [#allocation3], %s1926
        %s1928 = sand.u32 %s323, 1
        %s1929 = smul.addr %s1928, 8
        %s1930 = scalar_lea.vmem [#allocation2], %s1929
        %s1931 = sand.u32 %s349, 1
        %s1932 = scalar_lea.sflag [#allocation5], %s1931
        %s1933 = sand.u32 %s349, 1
        %s1934 = smul.addr %s1933, 8
        %s1935 = scalar_lea.vmem [#allocation4], %s1934
        // Predicated region
        $region73: #{tpu_custom_call.1} parent=71 // pred_check
          %p1936 = pneg %p333
        $region74: #{tpu_custom_call.1} parent=71 // pred_check_branch
          %1938 = sbr.rel (%p1936) target = $region76
        $region75: #{tpu_custom_call.1} parent=71 // pred_region
          %s1940 = ssub.s32 128, 128
          %1941 = vsyncadd %s1927, %s1940
          %s1942 = smul.addr %s32, 128
          %s1943 = scalar_lea.hbm %s13, %s1942
          %s1945 = sshll.u32 %s1930, 4
          %s1946 = int_to_ptr.vmem [resolvable:$true] %s1945
          %1948 = dma.vmem_to_hbm [thread:$0]  %s1946, 128, %s1943, %s1927
        $region76: #{tpu_custom_call.1} parent=71 // pred_fallthru
          _
        // Predicated region
        $region77: #{tpu_custom_call.1} parent=71 // pred_check
          %p1949 = pneg %p359
        $region78: #{tpu_custom_call.1} parent=71 // pred_check_branch
          %1951 = sbr.rel (%p1949) target = $region80
        $region79: #{tpu_custom_call.1} parent=71 // pred_region
          %s1953 = ssub.s32 128, 128
          %1954 = vsyncadd %s1932, %s1953
          %s1955 = smul.addr %s32, 128
          %s1956 = scalar_lea.hbm %s14, %s1955
          %s1958 = sshll.u32 %s1935, 4
          %s1959 = int_to_ptr.vmem [resolvable:$true] %s1958
          %1961 = dma.vmem_to_hbm [thread:$0]  %s1959, 128, %s1956, %s1932
        $region80: #{tpu_custom_call.1} parent=71 // pred_fallthru
          _
      $region72: #{tpu_custom_call.1} parent=5 // pred_fallthru
        _
      %p1962 = scmp.le.s32.totalorder 2, %s27
      // Predicated region
      $region81: #{tpu_custom_call.1} parent=5 // pred_check
        %p1963 = pneg %p1962
      $region82: #{tpu_custom_call.1} parent=5 // pred_check_branch
        %1965 = sbr.rel (%p1963) target = $region84
      $region83: #{tpu_custom_call.1} parent=5 // pred_region
        %s1966 = ssub.s32 %s27, 2
        // Predicated region
        $region85: #{tpu_custom_call.1} parent=83 // pred_check
          %p1967 = pneg %p339
        $region86: #{tpu_custom_call.1} parent=83 // pred_check_branch
          %1969 = sbr.rel (%p1967) target = $region88
        $region87: #{tpu_custom_call.1} parent=83 // pred_region
          %s1970 = sand.u32 %s324, 1
          %s1971 = scalar_lea.sflag [#allocation3], %s1970
          %s1972 = sand.u32 %s324, 1
          %s1973 = smul.addr %s1972, 8
          %s1974 = scalar_lea.vmem [#allocation2], %s1973
          %1975 = dma.done %s1971, 128
        $region88: #{tpu_custom_call.1} parent=83 // pred_fallthru
          _
        // Predicated region
        $region89: #{tpu_custom_call.1} parent=83 // pred_check
          %p1976 = pneg %p365
        $region90: #{tpu_custom_call.1} parent=83 // pred_check_branch
          %1978 = sbr.rel (%p1976) target = $region92
        $region91: #{tpu_custom_call.1} parent=83 // pred_region
          %s1979 = sand.u32 %s350, 1
          %s1980 = scalar_lea.sflag [#allocation5], %s1979
          %s1981 = sand.u32 %s350, 1
          %s1982 = smul.addr %s1981, 8
          %s1983 = scalar_lea.vmem [#allocation4], %s1982
          %1984 = dma.done %s1980, 128
        $region92: #{tpu_custom_call.1} parent=83 // pred_fallthru
          _
      $region84: #{tpu_custom_call.1} parent=5 // pred_fallthru
        _
    $region6: #{tpu_custom_call.1} parent=1 // loop_footer
      %s31 = sadd.s32 1, %s27
    $region7: #{tpu_custom_call.1} parent=1 // loop_footer_branch
      %26 = sbr.rel target = $region3
    $region8: #{tpu_custom_call.1} parent=1 // loop_exit
      _
    %1985 = vsyncpa [#allocation3], 1
    %s1986 = scalar_lea.sflag [#allocation3], 1
    %1987 = vsyncpa %s1986, 1
    %1988 = vsyncpa [#allocation5], 1
    %s1989 = scalar_lea.sflag [#allocation5], 1
    %1990 = vsyncpa %s1989, 1

</llo_original>
